<compile_context>
chip_gen: v7x
topology: tpu7x:2x2x1
jax: 0.10.0
libtpu: 0.0.40
codegen_flags: <defaults>
</compile_context>

<pallas_src>
import math

import jax
import jax.numpy as jnp
from jax.experimental import pallas as pl
from jax.experimental.pallas import tpu as pltpu


CFG = [64, "M", 128, "M", 512, "M"]   # conv3x3+ReLU per int, 'M' = maxpool 2x2 stride 2
PROTO_DIM, NUM_CLASSES = 64, 10


# ------------------------------ fused kernel --------------------------------

def vgg_fused_kernel(
    patches_ref,                            # (TN, 64, 27) bf16  conv1 im2col patches
    w1_ref, b1_ref,                         # (27, 64) bf16,   (1, 64) f32
    w2_ref, b2_ref,                         # (576, 128) bf16, (1, 128) f32
    w3_ref, b3_ref,                         # (1152, 512) bf16,(1, 512) f32
    wfc1_ref, bfc1_ref,                     # (512, 512) bf16, (1, 512) f32
    wfc2_ref, bfc2_ref,                     # (512, 512) bf16, (1, 512) f32
    wph_ref, bph_ref,                       # (512, 128) bf16, (1, 128) f32 [proto|head|0]
    comb_ref,                               # out: (TN, 128) f32 [l2-normed proto | logits | 0]
    out_ref,                                # out: (TN, 512) f32 intermediate features
    pad2_ref, pad3_ref,                     # padded activation scratch (VMEM, f32)
):
    TN = patches_ref.shape[0]

    def maxpool2x2(y, H, W, C):
        # y: (TN*H*W, C), rows ordered (n, h, w).  Vectorized 2x2 / stride-2 max pool.
        Ho, Wo = H // 2, W // 2
        y = y.reshape(TN * H * Wo, 2, C)
        y = jnp.maximum(y[:, 0, :], y[:, 1, :])
        y = y.reshape(TN * Ho, 2, Wo, C)
        y = jnp.maximum(y[:, 0, :, :], y[:, 1, :, :])
        return y.reshape(TN * Ho * Wo, C)

    def conv3x3_relu(y, pad_ref, w_ref, b_ref, H, W):
        # y: (TN*H*W, Cin) f32; w_ref: (9*Cin, Cout) bf16 (kh, kw, cin ordering).
        Cin = pad_ref.shape[-1]
        # Zero only the border (interior is fully overwritten right below).
        pad_ref[:, 0:1, :, :] = jnp.zeros((TN, 1, W + 2, Cin), jnp.float32)
        pad_ref[:, H + 1:H + 2, :, :] = jnp.zeros((TN, 1, W + 2, Cin), jnp.float32)
        pad_ref[:, 1:H + 1, 0:1, :] = jnp.zeros((TN, H, 1, Cin), jnp.float32)
        pad_ref[:, 1:H + 1, W + 1:W + 2, :] = jnp.zeros((TN, H, 1, Cin), jnp.float32)
        pad_ref[:, 1:H + 1, 1:W + 1, :] = y.reshape(TN, H, W, Cin)
        xp = pad_ref[...]
        # Full im2col: one wide (K = 9*Cin) matmul instead of 9 shallow MXU pushes.
        pieces = [xp[:, kh:kh + H, kw:kw + W, :].reshape(TN * H * W, Cin)
                  for kh in range(3) for kw in range(3)]
        patch = jnp.concatenate(pieces, axis=-1).astype(jnp.bfloat16)   # (M, 9*Cin)
        acc = jnp.dot(patch, w_ref[...], preferred_element_type=jnp.float32)
        return jnp.maximum(acc + b_ref[...], 0.0)                       # (M, Cout) f32

    # ---- features: conv64 -> pool -> conv128 -> pool -> conv512 -> pool ----
    y = jnp.dot(patches_ref[...].reshape(TN * 64, 27), w1_ref[...],
                preferred_element_type=jnp.float32)
    y = jnp.maximum(y + b1_ref[...], 0.0)                   # (TN*64, 64)
    y = maxpool2x2(y, 8, 8, 64)                             # (TN*16, 64)

    y = conv3x3_relu(y, pad2_ref, w2_ref, b2_ref, 4, 4)     # (TN*16, 128)
    y = maxpool2x2(y, 4, 4, 128)                            # (TN*4, 128)

    y = conv3x3_relu(y, pad3_ref, w3_ref, b3_ref, 2, 2)     # (TN*4, 512)
    y = maxpool2x2(y, 2, 2, 512)                            # (TN, 512) == x.view(N, -1)

    # ---- intermediate classifier: (Dropout) Linear ReLU (Dropout) Linear ReLU ----
    # TODO(synk): Dropout is identity at inference; stochastic training dropout omitted.
    h = jnp.dot(y.astype(jnp.bfloat16), wfc1_ref[...],
                preferred_element_type=jnp.float32) + bfc1_ref[...]
    h = jnp.maximum(h, 0.0)
    h = jnp.dot(h.astype(jnp.bfloat16), wfc2_ref[...],
                preferred_element_type=jnp.float32) + bfc2_ref[...]
    h = jnp.maximum(h, 0.0)
    out_ref[...] = h.astype(out_ref.dtype)

    # ---- fused linear_proto + linear_head: one lane-dense 128-wide matmul ----
    z = jnp.dot(h.astype(jnp.bfloat16), wph_ref[...],
                preferred_element_type=jnp.float32) + bph_ref[...]
    lane = jax.lax.broadcasted_iota(jnp.int32, z.shape, 1)
    is_proto = lane < PROTO_DIM
    sq = jnp.where(is_proto, z * z, 0.0)
    norm = jnp.maximum(jnp.sqrt(jnp.sum(sq, axis=1, keepdims=True)), 1e-12)
    inv = pl.reciprocal(norm, approx=True)                  # EUP, keeps VPU clear
    z = jnp.where(is_proto, z * inv, z)
    comb_ref[...] = z.astype(comb_ref.dtype)


# ------------------------------ param packing (once) --------------------------

def pack_params(params):
    """Reshape / cast / fuse weights once, outside the per-call path (bf16 in HBM)."""
    (w1, b1), (w2, b2), (w3, b3) = params["convs"]
    wfc1, bfc1 = params["fc1"]
    wfc2, bfc2 = params["fc2"]
    wp, bp = params["proto"]
    wh, bh = params["head"]

    pad_cols = 128 - PROTO_DIM - NUM_CLASSES
    wph = jnp.concatenate([wp, wh, jnp.zeros((512, pad_cols), jnp.float32)], axis=1)
    bph = jnp.concatenate([bp, bh, jnp.zeros((pad_cols,), jnp.float32)])[None, :]

    return {
        "w1": w1.reshape(27, 64).astype(jnp.bfloat16),
        "b1": b1.reshape(1, 64).astype(jnp.float32),
        "w2": w2.reshape(9 * 64, 128).astype(jnp.bfloat16),
        "b2": b2.reshape(1, 128).astype(jnp.float32),
        "w3": w3.reshape(9 * 128, 512).astype(jnp.bfloat16),
        "b3": b3.reshape(1, 512).astype(jnp.float32),
        "wfc1": wfc1.astype(jnp.bfloat16), "bfc1": bfc1.reshape(1, 512).astype(jnp.float32),
        "wfc2": wfc2.astype(jnp.bfloat16), "bfc2": bfc2.reshape(1, 512).astype(jnp.float32),
        "wph": wph.astype(jnp.bfloat16), "bph": bph.astype(jnp.float32),
    }


# ------------------------------ forward wrapper ------------------------------

@jax.jit
def vgg_forward(packed, x_nchw):
    x = jnp.transpose(x_nchw, (0, 2, 3, 1)).astype(jnp.float32)   # NCHW -> NHWC
    N, H, W, Cin = x.shape
    assert (H, W, Cin) == (8, 8, 3)

    # conv1 im2col in the wrapper: (N, 64, 27) with (kh, kw, cin) column ordering.
    xpad = jnp.pad(x, ((0, 0), (1, 1), (1, 1), (0, 0)))
    cols = [xpad[:, kh:kh + 8, kw:kw + 8, :] for kh in range(3) for kw in range(3)]
    patches = jnp.concatenate(cols, axis=-1).reshape(N, 64, 27).astype(jnp.bfloat16)

    # Batch tile: whole batch in one program when small, else 64-image tiles
    # (weights ~2.5 MiB bf16 + per-tile activations stay well under v7x's 64 MiB VMEM).
    TN = N if N <= 64 else 64
    G = (N + TN - 1) // TN
    Np = G * TN
    if Np != N:
        patches = jnp.pad(patches, ((0, Np - N), (0, 0), (0, 0)))

    comb, out = pl.pallas_call(
        vgg_fused_kernel,
        out_shape=(
            jax.ShapeDtypeStruct((Np, 128), jnp.float32),
            jax.ShapeDtypeStruct((Np, 512), jnp.float32),
        ),
        grid_spec=pltpu.PrefetchScalarGridSpec(
            num_scalar_prefetch=0,
            grid=(G,),
            in_specs=[
                pl.BlockSpec((TN, 64, 27), lambda i: (i, 0, 0)),     # per-tile patches
                pl.BlockSpec((27, 64), lambda i: (0, 0)),            # weights: resident
                pl.BlockSpec((1, 64), lambda i: (0, 0)),
                pl.BlockSpec((9 * 64, 128), lambda i: (0, 0)),
                pl.BlockSpec((1, 128), lambda i: (0, 0)),
                pl.BlockSpec((9 * 128, 512), lambda i: (0, 0)),
                pl.BlockSpec((1, 512), lambda i: (0, 0)),
                pl.BlockSpec((512, 512), lambda i: (0, 0)),
                pl.BlockSpec((1, 512), lambda i: (0, 0)),
                pl.BlockSpec((512, 512), lambda i: (0, 0)),
                pl.BlockSpec((1, 512), lambda i: (0, 0)),
                pl.BlockSpec((512, 128), lambda i: (0, 0)),
                pl.BlockSpec((1, 128), lambda i: (0, 0)),
            ],
            out_specs=(
                pl.BlockSpec((TN, 128), lambda i: (i, 0)),
                pl.BlockSpec((TN, 512), lambda i: (i, 0)),
            ),
            scratch_shapes=[
                pltpu.VMEM((TN, 6, 6, 64), jnp.float32),     # padded conv2 input
                pltpu.VMEM((TN, 4, 4, 128), jnp.float32),    # padded conv3 input
            ],
        ),
        compiler_params=pltpu.CompilerParams(
            dimension_semantics=("parallel",),               # shards batch across TCs on v7x
            vmem_limit_bytes=32 * 1024 * 1024,
        ),
    )(
        patches,
        packed["w1"], packed["b1"],
        packed["w2"], packed["b2"],
        packed["w3"], packed["b3"],
        packed["wfc1"], packed["bfc1"],
        packed["wfc2"], packed["bfc2"],
        packed["wph"], packed["bph"],
    )

    comb = comb[:N]
    out = out[:N]
    feature = comb[:, :PROTO_DIM]
    logit = comb[:, PROTO_DIM:PROTO_DIM + NUM_CLASSES]
    return feature, logit, out


# ------------------------------ params / reference ---------------------------

def init_vgg_params(key, cfg, in_ch=3):
    params = {"convs": []}
    k = key
    c = in_ch
    for v in cfg:
        if v == "M":
            continue
        k, kw = jax.random.split(k)
        n = 3 * 3 * v  # PyTorch init: normal(0, sqrt(2/n)), bias zero
        w = jax.random.normal(kw, (3, 3, c, v), jnp.float32) * math.sqrt(2.0 / n)
        b = jnp.zeros((v,), jnp.float32)
        params["convs"].append((w, b))
        c = v

    def lin(kk, din, dout):
        k1, k2 = jax.random.split(kk)
        bound = 1.0 / math.sqrt(din)
        w = jax.random.uniform(k1, (din, dout), jnp.float32, -bound, bound)
        b = jax.random.uniform(k2, (dout,), jnp.float32, -bound, bound)
        return w, b

    keys = jax.random.split(k, 4)
    params["fc1"] = lin(keys[0], 512, 512)     # intermediate_classifier Linear 1
    params["fc2"] = lin(keys[1], 512, 512)     # intermediate_classifier Linear 2
    params["proto"] = lin(keys[2], 512, 64)    # linear_proto
    params["head"] = lin(keys[3], 512, 10)     # linear_head
    # TODO(synk): scaling_train / Proto_Classifier exist in __init__ but are unused in forward.
    return params


def vgg_reference(params, x_nchw):
    """Pure-JAX f32 reference (numerical sanity check only)."""
    hp = jax.lax.Precision.HIGHEST
    x = jnp.transpose(x_nchw, (0, 2, 3, 1)).astype(jnp.float32)
    ci = 0
    for v in CFG:
        if v == "M":
            x = jax.lax.reduce_window(x, -jnp.inf, jax.lax.max,
                                      (1, 2, 2, 1), (1, 2, 2, 1), "VALID")
        else:
            w, b = params["convs"][ci]
            x = jax.lax.conv_general_dilated(
                x, w, (1, 1), "SAME",
                dimension_numbers=("NHWC", "HWIO", "NHWC"), precision=hp)
            x = jnp.maximum(x + b, 0.0)
            ci += 1
    x = x.reshape(x.shape[0], -1)
    wfc1, bfc1 = params["fc1"]
    wfc2, bfc2 = params["fc2"]
    x = jnp.maximum(jnp.dot(x, wfc1, precision=hp) + bfc1, 0.0)
    x = jnp.maximum(jnp.dot(x, wfc2, precision=hp) + bfc2, 0.0)
    out = x
    wp, bp = params["proto"]
    wh, bh = params["head"]
    f = jnp.dot(out, wp, precision=hp) + bp
    n = jnp.maximum(jnp.sqrt(jnp.sum(f * f, axis=1, keepdims=True)), 1e-12)
    feature = f / n
    logit = jnp.dot(out, wh, precision=hp) + bh
    return feature, logit, out


if __name__ == "__main__":
    key = jax.random.PRNGKey(0)
    kx, kp = jax.random.split(key)
    x = jax.random.normal(kx, (2, 3, 8, 8), jnp.float32)       # NCHW, like PyTorch
    params = init_vgg_params(kp, CFG)
    packed = pack_params(params)

    feature, logit, out = vgg_forward(packed, x)
    jax.block_until_ready((feature, logit, out))

    assert feature.shape == (2, 64)
    assert logit.shape == (2, 10)
    assert out.shape == (2, 512)

    f_ref, l_ref, o_ref = vgg_reference(params, x)
    assert jnp.allclose(out, o_ref, atol=5e-2, rtol=5e-2)
    assert jnp.allclose(logit, l_ref, atol=5e-2, rtol=5e-2)
    assert jnp.allclose(feature, f_ref, atol=5e-2, rtol=5e-2)

    print("KERNEL_OK")
</pallas_src>

<mosaic_0001>
module attributes {stable_mosaic.version = 11 : i64} {
  func.func @vgg_fused_kernel(%arg0: i32, %arg1: memref<2x64x27xbf16, #tpu.memory_space<vmem>>, %arg2: memref<27x64xbf16, #tpu.memory_space<vmem>>, %arg3: memref<1x64xf32, #tpu.memory_space<vmem>>, %arg4: memref<576x128xbf16, #tpu.memory_space<vmem>>, %arg5: memref<1x128xf32, #tpu.memory_space<vmem>>, %arg6: memref<1152x512xbf16, #tpu.memory_space<vmem>>, %arg7: memref<1x512xf32, #tpu.memory_space<vmem>>, %arg8: memref<512x512xbf16, #tpu.memory_space<vmem>>, %arg9: memref<1x512xf32, #tpu.memory_space<vmem>>, %arg10: memref<512x512xbf16, #tpu.memory_space<vmem>>, %arg11: memref<1x512xf32, #tpu.memory_space<vmem>>, %arg12: memref<512x128xbf16, #tpu.memory_space<vmem>>, %arg13: memref<1x128xf32, #tpu.memory_space<vmem>>, %arg14: memref<2x128xf32, #tpu.memory_space<vmem>>, %arg15: memref<2x512xf32, #tpu.memory_space<vmem>>, %arg16: memref<2x6x6x64xf32, #tpu.memory_space<vmem>>, %arg17: memref<2x4x4x128xf32, #tpu.memory_space<vmem>>) attributes {dimension_semantics = [#tpu.dimension_semantics<parallel>], iteration_bounds = array<i64: 1>, scalar_prefetch = 0 : i64, scratch_operands = 2 : i64, tpu.core_type = #tpu.core_type<tc>, window_params = [{transform_indices = @transform_0, window_bounds = array<i64: 2, 64, 27>}, {pipeline_mode = #tpu.pipeline_mode<synchronous>, transform_indices = @transform_1, window_bounds = array<i64: 27, 64>}, {pipeline_mode = #tpu.pipeline_mode<synchronous>, transform_indices = @transform_2, window_bounds = array<i64: 1, 64>}, {pipeline_mode = #tpu.pipeline_mode<synchronous>, transform_indices = @transform_3, window_bounds = array<i64: 576, 128>}, {pipeline_mode = #tpu.pipeline_mode<synchronous>, transform_indices = @transform_4, window_bounds = array<i64: 1, 128>}, {pipeline_mode = #tpu.pipeline_mode<synchronous>, transform_indices = @transform_5, window_bounds = array<i64: 1152, 512>}, {pipeline_mode = #tpu.pipeline_mode<synchronous>, transform_indices = @transform_6, window_bounds = array<i64: 1, 512>}, {pipeline_mode = #tpu.pipeline_mode<synchronous>, transform_indices = @transform_7, window_bounds = array<i64: 512, 512>}, {pipeline_mode = #tpu.pipeline_mode<synchronous>, transform_indices = @transform_8, window_bounds = array<i64: 1, 512>}, {pipeline_mode = #tpu.pipeline_mode<synchronous>, transform_indices = @transform_9, window_bounds = array<i64: 512, 512>}, {pipeline_mode = #tpu.pipeline_mode<synchronous>, transform_indices = @transform_10, window_bounds = array<i64: 1, 512>}, {pipeline_mode = #tpu.pipeline_mode<synchronous>, transform_indices = @transform_11, window_bounds = array<i64: 512, 128>}, {pipeline_mode = #tpu.pipeline_mode<synchronous>, transform_indices = @transform_12, window_bounds = array<i64: 1, 128>}, {transform_indices = @transform_13, window_bounds = array<i64: 2, 128>}, {transform_indices = @transform_14, window_bounds = array<i64: 2, 512>}]} {
    %c0 = arith.constant 0 : index
    %c0_0 = arith.constant 0 : index
    %c0_1 = arith.constant 0 : index
    %0 = vector.load %arg1[%c0, %c0_0, %c0_1] : memref<2x64x27xbf16, #tpu.memory_space<vmem>>, vector<2x64x27xbf16>
    %1 = vector.shape_cast %0 : vector<2x64x27xbf16> to vector<128x27xbf16>
    %c0_2 = arith.constant 0 : index
    %c0_3 = arith.constant 0 : index
    %2 = vector.load %arg2[%c0_2, %c0_3] : memref<27x64xbf16, #tpu.memory_space<vmem>>, vector<27x64xbf16>
    %cst = arith.constant dense<0.000000e+00> : vector<128x64xf32>
    %3 = tpu.matmul %1, %2, %cst {dimension_numbers = #tpu.dot_dimension_numbers<[1], [0], [0], [1], [0, 0, 1, 1], [], []>} : vector<128x27xbf16>, vector<27x64xbf16>, vector<128x64xf32> -> vector<128x64xf32>
    %c0_4 = arith.constant 0 : index
    %c0_5 = arith.constant 0 : index
    %4 = vector.load %arg3[%c0_4, %c0_5] : memref<1x64xf32, #tpu.memory_space<vmem>>, vector<1x64xf32>
    %5 = vector.broadcast %4 : vector<1x64xf32> to vector<128x64xf32>
    %6 = arith.addf %3, %5 : vector<128x64xf32>
    %cst_6 = arith.constant 0.000000e+00 : f32
    %7 = vector.broadcast %cst_6 : f32 to vector<128x64xf32>
    %8 = arith.maximumf %6, %7 : vector<128x64xf32>
    %9 = vector.shape_cast %8 : vector<128x64xf32> to vector<64x2x64xf32>
    %10 = vector.extract_strided_slice %9 {offsets = [0, 0, 0], sizes = [64, 1, 64], strides = [1, 1, 1]} : vector<64x2x64xf32> to vector<64x1x64xf32>
    %11 = vector.shape_cast %10 : vector<64x1x64xf32> to vector<64x64xf32>
    %12 = vector.extract_strided_slice %9 {offsets = [0, 1, 0], sizes = [64, 1, 64], strides = [1, 1, 1]} : vector<64x2x64xf32> to vector<64x1x64xf32>
    %13 = vector.shape_cast %12 : vector<64x1x64xf32> to vector<64x64xf32>
    %14 = arith.maximumf %11, %13 : vector<64x64xf32>
    %15 = vector.shape_cast %14 : vector<64x64xf32> to vector<8x2x4x64xf32>
    %16 = vector.extract_strided_slice %15 {offsets = [0, 0, 0, 0], sizes = [8, 1, 4, 64], strides = [1, 1, 1, 1]} : vector<8x2x4x64xf32> to vector<8x1x4x64xf32>
    %17 = vector.shape_cast %16 : vector<8x1x4x64xf32> to vector<8x4x64xf32>
    %18 = vector.extract_strided_slice %15 {offsets = [0, 1, 0, 0], sizes = [8, 1, 4, 64], strides = [1, 1, 1, 1]} : vector<8x2x4x64xf32> to vector<8x1x4x64xf32>
    %19 = vector.shape_cast %18 : vector<8x1x4x64xf32> to vector<8x4x64xf32>
    %20 = arith.maximumf %17, %19 : vector<8x4x64xf32>
    %21 = vector.shape_cast %20 : vector<8x4x64xf32> to vector<32x64xf32>
    %cst_7 = arith.constant 0.000000e+00 : f32
    %22 = vector.broadcast %cst_7 : f32 to vector<2x1x6x64xf32>
    %c0_8 = arith.constant 0 : index
    %c0_9 = arith.constant 0 : index
    %c0_10 = arith.constant 0 : index
    %c0_11 = arith.constant 0 : index
    %23 = vector.load %arg16[%c0_8, %c0_9, %c0_10, %c0_11] : memref<2x6x6x64xf32, #tpu.memory_space<vmem>>, vector<2x1x6x64xf32>
    tpu.vector_store %arg16[%c0_8, %c0_9, %c0_10, %c0_11], %22 {strides = array<i32>} : memref<2x6x6x64xf32, #tpu.memory_space<vmem>>, vector<2x1x6x64xf32>,
    %cst_12 = arith.constant 0.000000e+00 : f32
    %24 = vector.broadcast %cst_12 : f32 to vector<2x1x6x64xf32>
    %c0_13 = arith.constant 0 : index
    %c5 = arith.constant 5 : index
    %c0_14 = arith.constant 0 : index
    %c0_15 = arith.constant 0 : index
    %25 = vector.load %arg16[%c0_13, %c5, %c0_14, %c0_15] : memref<2x6x6x64xf32, #tpu.memory_space<vmem>>, vector<2x1x6x64xf32>
    tpu.vector_store %arg16[%c0_13, %c5, %c0_14, %c0_15], %24 {strides = array<i32>} : memref<2x6x6x64xf32, #tpu.memory_space<vmem>>, vector<2x1x6x64xf32>,
    %cst_16 = arith.constant 0.000000e+00 : f32
    %26 = vector.broadcast %cst_16 : f32 to vector<2x4x1x64xf32>
    %c0_17 = arith.constant 0 : index
    %c1 = arith.constant 1 : index
    %c0_18 = arith.constant 0 : index
    %c0_19 = arith.constant 0 : index
    %27 = vector.load %arg16[%c0_17, %c1, %c0_18, %c0_19] : memref<2x6x6x64xf32, #tpu.memory_space<vmem>>, vector<2x4x1x64xf32>
    tpu.vector_store %arg16[%c0_17, %c1, %c0_18, %c0_19], %26 {strides = array<i32>} : memref<2x6x6x64xf32, #tpu.memory_space<vmem>>, vector<2x4x1x64xf32>,
    %cst_20 = arith.constant 0.000000e+00 : f32
    %28 = vector.broadcast %cst_20 : f32 to vector<2x4x1x64xf32>
    %c0_21 = arith.constant 0 : index
    %c1_22 = arith.constant 1 : index
    %c5_23 = arith.constant 5 : index
    %c0_24 = arith.constant 0 : index
    %29 = vector.load %arg16[%c0_21, %c1_22, %c5_23, %c0_24] : memref<2x6x6x64xf32, #tpu.memory_space<vmem>>, vector<2x4x1x64xf32>
    tpu.vector_store %arg16[%c0_21, %c1_22, %c5_23, %c0_24], %28 {strides = array<i32>} : memref<2x6x6x64xf32, #tpu.memory_space<vmem>>, vector<2x4x1x64xf32>,
    %30 = vector.shape_cast %21 : vector<32x64xf32> to vector<2x4x4x64xf32>
    %c0_25 = arith.constant 0 : index
    %c1_26 = arith.constant 1 : index
    %c1_27 = arith.constant 1 : index
    %c0_28 = arith.constant 0 : index
    %31 = vector.load %arg16[%c0_25, %c1_26, %c1_27, %c0_28] : memref<2x6x6x64xf32, #tpu.memory_space<vmem>>, vector<2x4x4x64xf32>
    tpu.vector_store %arg16[%c0_25, %c1_26, %c1_27, %c0_28], %30 {strides = array<i32>} : memref<2x6x6x64xf32, #tpu.memory_space<vmem>>, vector<2x4x4x64xf32>,
    %c0_29 = arith.constant 0 : index
    %c0_30 = arith.constant 0 : index
    %c0_31 = arith.constant 0 : index
    %c0_32 = arith.constant 0 : index
    %32 = vector.load %arg16[%c0_29, %c0_30, %c0_31, %c0_32] : memref<2x6x6x64xf32, #tpu.memory_space<vmem>>, vector<2x6x6x64xf32>
    %33 = vector.extract_strided_slice %32 {offsets = [0, 0, 0, 0], sizes = [2, 4, 4, 64], strides = [1, 1, 1, 1]} : vector<2x6x6x64xf32> to vector<2x4x4x64xf32>
    %34 = vector.shape_cast %33 : vector<2x4x4x64xf32> to vector<32x64xf32>
    %35 = vector.extract_strided_slice %32 {offsets = [0, 0, 1, 0], sizes = [2, 4, 4, 64], strides = [1, 1, 1, 1]} : vector<2x6x6x64xf32> to vector<2x4x4x64xf32>
    %36 = vector.shape_cast %35 : vector<2x4x4x64xf32> to vector<32x64xf32>
    %37 = vector.extract_strided_slice %32 {offsets = [0, 0, 2, 0], sizes = [2, 4, 4, 64], strides = [1, 1, 1, 1]} : vector<2x6x6x64xf32> to vector<2x4x4x64xf32>
    %38 = vector.shape_cast %37 : vector<2x4x4x64xf32> to vector<32x64xf32>
    %39 = vector.extract_strided_slice %32 {offsets = [0, 1, 0, 0], sizes = [2, 4, 4, 64], strides = [1, 1, 1, 1]} : vector<2x6x6x64xf32> to vector<2x4x4x64xf32>
    %40 = vector.shape_cast %39 : vector<2x4x4x64xf32> to vector<32x64xf32>
    %41 = vector.extract_strided_slice %32 {offsets = [0, 1, 1, 0], sizes = [2, 4, 4, 64], strides = [1, 1, 1, 1]} : vector<2x6x6x64xf32> to vector<2x4x4x64xf32>
    %42 = vector.shape_cast %41 : vector<2x4x4x64xf32> to vector<32x64xf32>
    %43 = vector.extract_strided_slice %32 {offsets = [0, 1, 2, 0], sizes = [2, 4, 4, 64], strides = [1, 1, 1, 1]} : vector<2x6x6x64xf32> to vector<2x4x4x64xf32>
    %44 = vector.shape_cast %43 : vector<2x4x4x64xf32> to vector<32x64xf32>
    %45 = vector.extract_strided_slice %32 {offsets = [0, 2, 0, 0], sizes = [2, 4, 4, 64], strides = [1, 1, 1, 1]} : vector<2x6x6x64xf32> to vector<2x4x4x64xf32>
    %46 = vector.shape_cast %45 : vector<2x4x4x64xf32> to vector<32x64xf32>
    %47 = vector.extract_strided_slice %32 {offsets = [0, 2, 1, 0], sizes = [2, 4, 4, 64], strides = [1, 1, 1, 1]} : vector<2x6x6x64xf32> to vector<2x4x4x64xf32>
    %48 = vector.shape_cast %47 : vector<2x4x4x64xf32> to vector<32x64xf32>
    %49 = vector.extract_strided_slice %32 {offsets = [0, 2, 2, 0], sizes = [2, 4, 4, 64], strides = [1, 1, 1, 1]} : vector<2x6x6x64xf32> to vector<2x4x4x64xf32>
    %50 = vector.shape_cast %49 : vector<2x4x4x64xf32> to vector<32x64xf32>
    %51 = tpu.concatenate %34, %36, %38, %40, %42, %44, %46, %48, %50 in 1 : vector<32x64xf32>, vector<32x64xf32>, vector<32x64xf32>, vector<32x64xf32>, vector<32x64xf32>, vector<32x64xf32>, vector<32x64xf32>, vector<32x64xf32>, vector<32x64xf32> -> vector<32x576xf32>
    %52 = arith.truncf %51 : vector<32x576xf32> to vector<32x576xbf16>
    %c0_33 = arith.constant 0 : index
    %c0_34 = arith.constant 0 : index
    %53 = vector.load %arg4[%c0_33, %c0_34] : memref<576x128xbf16, #tpu.memory_space<vmem>>, vector<576x128xbf16>
    %cst_35 = arith.constant dense<0.000000e+00> : vector<32x128xf32>
    %54 = tpu.matmul %52, %53, %cst_35 {dimension_numbers = #tpu.dot_dimension_numbers<[1], [0], [0], [1], [0, 0, 1, 1], [], []>} : vector<32x576xbf16>, vector<576x128xbf16>, vector<32x128xf32> -> vector<32x128xf32>
    %c0_36 = arith.constant 0 : index
    %c0_37 = arith.constant 0 : index
    %55 = vector.load %arg5[%c0_36, %c0_37] : memref<1x128xf32, #tpu.memory_space<vmem>>, vector<1x128xf32>
    %56 = vector.broadcast %55 : vector<1x128xf32> to vector<32x128xf32>
    %57 = arith.addf %54, %56 : vector<32x128xf32>
    %cst_38 = arith.constant 0.000000e+00 : f32
    %58 = vector.broadcast %cst_38 : f32 to vector<32x128xf32>
    %59 = arith.maximumf %57, %58 : vector<32x128xf32>
    %60 = vector.shape_cast %59 : vector<32x128xf32> to vector<16x2x128xf32>
    %61 = vector.extract_strided_slice %60 {offsets = [0, 0, 0], sizes = [16, 1, 128], strides = [1, 1, 1]} : vector<16x2x128xf32> to vector<16x1x128xf32>
    %62 = vector.shape_cast %61 : vector<16x1x128xf32> to vector<16x128xf32>
    %63 = vector.extract_strided_slice %60 {offsets = [0, 1, 0], sizes = [16, 1, 128], strides = [1, 1, 1]} : vector<16x2x128xf32> to vector<16x1x128xf32>
    %64 = vector.shape_cast %63 : vector<16x1x128xf32> to vector<16x128xf32>
    %65 = arith.maximumf %62, %64 : vector<16x128xf32>
    %66 = vector.shape_cast %65 : vector<16x128xf32> to vector<4x2x2x128xf32>
    %67 = vector.extract_strided_slice %66 {offsets = [0, 0, 0, 0], sizes = [4, 1, 2, 128], strides = [1, 1, 1, 1]} : vector<4x2x2x128xf32> to vector<4x1x2x128xf32>
    %68 = vector.shape_cast %67 : vector<4x1x2x128xf32> to vector<4x2x128xf32>
    %69 = vector.extract_strided_slice %66 {offsets = [0, 1, 0, 0], sizes = [4, 1, 2, 128], strides = [1, 1, 1, 1]} : vector<4x2x2x128xf32> to vector<4x1x2x128xf32>
    %70 = vector.shape_cast %69 : vector<4x1x2x128xf32> to vector<4x2x128xf32>
    %71 = arith.maximumf %68, %70 : vector<4x2x128xf32>
    %72 = vector.shape_cast %71 : vector<4x2x128xf32> to vector<8x128xf32>
    %cst_39 = arith.constant 0.000000e+00 : f32
    %73 = vector.broadcast %cst_39 : f32 to vector<2x1x4x128xf32>
    %c0_40 = arith.constant 0 : index
    %c0_41 = arith.constant 0 : index
    %c0_42 = arith.constant 0 : index
    %c0_43 = arith.constant 0 : index
    %74 = vector.load %arg17[%c0_40, %c0_41, %c0_42, %c0_43] : memref<2x4x4x128xf32, #tpu.memory_space<vmem>>, vector<2x1x4x128xf32>
    tpu.vector_store %arg17[%c0_40, %c0_41, %c0_42, %c0_43], %73 {strides = array<i32>} : memref<2x4x4x128xf32, #tpu.memory_space<vmem>>, vector<2x1x4x128xf32>,
    %cst_44 = arith.constant 0.000000e+00 : f32
    %75 = vector.broadcast %cst_44 : f32 to vector<2x1x4x128xf32>
    %c0_45 = arith.constant 0 : index
    %c3 = arith.constant 3 : index
    %c0_46 = arith.constant 0 : index
    %c0_47 = arith.constant 0 : index
    %76 = vector.load %arg17[%c0_45, %c3, %c0_46, %c0_47] : memref<2x4x4x128xf32, #tpu.memory_space<vmem>>, vector<2x1x4x128xf32>
    tpu.vector_store %arg17[%c0_45, %c3, %c0_46, %c0_47], %75 {strides = array<i32>} : memref<2x4x4x128xf32, #tpu.memory_space<vmem>>, vector<2x1x4x128xf32>,
    %cst_48 = arith.constant 0.000000e+00 : f32
    %77 = vector.broadcast %cst_48 : f32 to vector<2x2x1x128xf32>
    %c0_49 = arith.constant 0 : index
    %c1_50 = arith.constant 1 : index
    %c0_51 = arith.constant 0 : index
    %c0_52 = arith.constant 0 : index
    %78 = vector.load %arg17[%c0_49, %c1_50, %c0_51, %c0_52] : memref<2x4x4x128xf32, #tpu.memory_space<vmem>>, vector<2x2x1x128xf32>
    tpu.vector_store %arg17[%c0_49, %c1_50, %c0_51, %c0_52], %77 {strides = array<i32>} : memref<2x4x4x128xf32, #tpu.memory_space<vmem>>, vector<2x2x1x128xf32>,
    %cst_53 = arith.constant 0.000000e+00 : f32
    %79 = vector.broadcast %cst_53 : f32 to vector<2x2x1x128xf32>
    %c0_54 = arith.constant 0 : index
    %c1_55 = arith.constant 1 : index
    %c3_56 = arith.constant 3 : index
    %c0_57 = arith.constant 0 : index
    %80 = vector.load %arg17[%c0_54, %c1_55, %c3_56, %c0_57] : memref<2x4x4x128xf32, #tpu.memory_space<vmem>>, vector<2x2x1x128xf32>
    tpu.vector_store %arg17[%c0_54, %c1_55, %c3_56, %c0_57], %79 {strides = array<i32>} : memref<2x4x4x128xf32, #tpu.memory_space<vmem>>, vector<2x2x1x128xf32>,
    %81 = vector.shape_cast %72 : vector<8x128xf32> to vector<2x2x2x128xf32>
    %c0_58 = arith.constant 0 : index
    %c1_59 = arith.constant 1 : index
    %c1_60 = arith.constant 1 : index
    %c0_61 = arith.constant 0 : index
    %82 = vector.load %arg17[%c0_58, %c1_59, %c1_60, %c0_61] : memref<2x4x4x128xf32, #tpu.memory_space<vmem>>, vector<2x2x2x128xf32>
    tpu.vector_store %arg17[%c0_58, %c1_59, %c1_60, %c0_61], %81 {strides = array<i32>} : memref<2x4x4x128xf32, #tpu.memory_space<vmem>>, vector<2x2x2x128xf32>,
    %c0_62 = arith.constant 0 : index
    %c0_63 = arith.constant 0 : index
    %c0_64 = arith.constant 0 : index
    %c0_65 = arith.constant 0 : index
    %83 = vector.load %arg17[%c0_62, %c0_63, %c0_64, %c0_65] : memref<2x4x4x128xf32, #tpu.memory_space<vmem>>, vector<2x4x4x128xf32>
    %84 = vector.extract_strided_slice %83 {offsets = [0, 0, 0, 0], sizes = [2, 2, 2, 128], strides = [1, 1, 1, 1]} : vector<2x4x4x128xf32> to vector<2x2x2x128xf32>
    %85 = vector.shape_cast %84 : vector<2x2x2x128xf32> to vector<8x128xf32>
    %86 = vector.extract_strided_slice %83 {offsets = [0, 0, 1, 0], sizes = [2, 2, 2, 128], strides = [1, 1, 1, 1]} : vector<2x4x4x128xf32> to vector<2x2x2x128xf32>
    %87 = vector.shape_cast %86 : vector<2x2x2x128xf32> to vector<8x128xf32>
    %88 = vector.extract_strided_slice %83 {offsets = [0, 0, 2, 0], sizes = [2, 2, 2, 128], strides = [1, 1, 1, 1]} : vector<2x4x4x128xf32> to vector<2x2x2x128xf32>
    %89 = vector.shape_cast %88 : vector<2x2x2x128xf32> to vector<8x128xf32>
    %90 = vector.extract_strided_slice %83 {offsets = [0, 1, 0, 0], sizes = [2, 2, 2, 128], strides = [1, 1, 1, 1]} : vector<2x4x4x128xf32> to vector<2x2x2x128xf32>
    %91 = vector.shape_cast %90 : vector<2x2x2x128xf32> to vector<8x128xf32>
    %92 = vector.extract_strided_slice %83 {offsets = [0, 1, 1, 0], sizes = [2, 2, 2, 128], strides = [1, 1, 1, 1]} : vector<2x4x4x128xf32> to vector<2x2x2x128xf32>
    %93 = vector.shape_cast %92 : vector<2x2x2x128xf32> to vector<8x128xf32>
    %94 = vector.extract_strided_slice %83 {offsets = [0, 1, 2, 0], sizes = [2, 2, 2, 128], strides = [1, 1, 1, 1]} : vector<2x4x4x128xf32> to vector<2x2x2x128xf32>
    %95 = vector.shape_cast %94 : vector<2x2x2x128xf32> to vector<8x128xf32>
    %96 = vector.extract_strided_slice %83 {offsets = [0, 2, 0, 0], sizes = [2, 2, 2, 128], strides = [1, 1, 1, 1]} : vector<2x4x4x128xf32> to vector<2x2x2x128xf32>
    %97 = vector.shape_cast %96 : vector<2x2x2x128xf32> to vector<8x128xf32>
    %98 = vector.extract_strided_slice %83 {offsets = [0, 2, 1, 0], sizes = [2, 2, 2, 128], strides = [1, 1, 1, 1]} : vector<2x4x4x128xf32> to vector<2x2x2x128xf32>
    %99 = vector.shape_cast %98 : vector<2x2x2x128xf32> to vector<8x128xf32>
    %100 = vector.extract_strided_slice %83 {offsets = [0, 2, 2, 0], sizes = [2, 2, 2, 128], strides = [1, 1, 1, 1]} : vector<2x4x4x128xf32> to vector<2x2x2x128xf32>
    %101 = vector.shape_cast %100 : vector<2x2x2x128xf32> to vector<8x128xf32>
    %102 = tpu.concatenate %85, %87, %89, %91, %93, %95, %97, %99, %101 in 1 : vector<8x128xf32>, vector<8x128xf32>, vector<8x128xf32>, vector<8x128xf32>, vector<8x128xf32>, vector<8x128xf32>, vector<8x128xf32>, vector<8x128xf32>, vector<8x128xf32> -> vector<8x1152xf32>
    %103 = arith.truncf %102 : vector<8x1152xf32> to vector<8x1152xbf16>
    %c0_66 = arith.constant 0 : index
    %c0_67 = arith.constant 0 : index
    %104 = vector.load %arg6[%c0_66, %c0_67] : memref<1152x512xbf16, #tpu.memory_space<vmem>>, vector<1152x512xbf16>
    %cst_68 = arith.constant dense<0.000000e+00> : vector<8x512xf32>
    %105 = tpu.matmul %103, %104, %cst_68 {dimension_numbers = #tpu.dot_dimension_numbers<[1], [0], [0], [1], [0, 0, 1, 1], [], []>} : vector<8x1152xbf16>, vector<1152x512xbf16>, vector<8x512xf32> -> vector<8x512xf32>
    %c0_69 = arith.constant 0 : index
    %c0_70 = arith.constant 0 : index
    %106 = vector.load %arg7[%c0_69, %c0_70] : memref<1x512xf32, #tpu.memory_space<vmem>>, vector<1x512xf32>
    %107 = vector.broadcast %106 : vector<1x512xf32> to vector<8x512xf32>
    %108 = arith.addf %105, %107 : vector<8x512xf32>
    %cst_71 = arith.constant 0.000000e+00 : f32
    %109 = vector.broadcast %cst_71 : f32 to vector<8x512xf32>
    %110 = arith.maximumf %108, %109 : vector<8x512xf32>
    %111 = vector.shape_cast %110 : vector<8x512xf32> to vector<4x2x512xf32>
    %112 = vector.extract_strided_slice %111 {offsets = [0, 0, 0], sizes = [4, 1, 512], strides = [1, 1, 1]} : vector<4x2x512xf32> to vector<4x1x512xf32>
    %113 = vector.shape_cast %112 : vector<4x1x512xf32> to vector<4x512xf32>
    %114 = vector.extract_strided_slice %111 {offsets = [0, 1, 0], sizes = [4, 1, 512], strides = [1, 1, 1]} : vector<4x2x512xf32> to vector<4x1x512xf32>
    %115 = vector.shape_cast %114 : vector<4x1x512xf32> to vector<4x512xf32>
    %116 = arith.maximumf %113, %115 : vector<4x512xf32>
    %117 = vector.shape_cast %116 : vector<4x512xf32> to vector<2x2x1x512xf32>
    %118 = vector.extract_strided_slice %117 {offsets = [0, 0, 0, 0], sizes = [2, 1, 1, 512], strides = [1, 1, 1, 1]} : vector<2x2x1x512xf32> to vector<2x1x1x512xf32>
    %119 = vector.shape_cast %118 : vector<2x1x1x512xf32> to vector<2x1x512xf32>
    %120 = vector.extract_strided_slice %117 {offsets = [0, 1, 0, 0], sizes = [2, 1, 1, 512], strides = [1, 1, 1, 1]} : vector<2x2x1x512xf32> to vector<2x1x1x512xf32>
    %121 = vector.shape_cast %120 : vector<2x1x1x512xf32> to vector<2x1x512xf32>
    %122 = arith.maximumf %119, %121 : vector<2x1x512xf32>
    %123 = vector.shape_cast %122 : vector<2x1x512xf32> to vector<2x512xf32>
    %124 = arith.truncf %123 : vector<2x512xf32> to vector<2x512xbf16>
    %c0_72 = arith.constant 0 : index
    %c0_73 = arith.constant 0 : index
    %125 = vector.load %arg8[%c0_72, %c0_73] : memref<512x512xbf16, #tpu.memory_space<vmem>>, vector<512x512xbf16>
    %cst_74 = arith.constant dense<0.000000e+00> : vector<2x512xf32>
    %126 = tpu.matmul %124, %125, %cst_74 {dimension_numbers = #tpu.dot_dimension_numbers<[1], [0], [0], [1], [0, 0, 1, 1], [], []>} : vector<2x512xbf16>, vector<512x512xbf16>, vector<2x512xf32> -> vector<2x512xf32>
    %c0_75 = arith.constant 0 : index
    %c0_76 = arith.constant 0 : index
    %127 = vector.load %arg9[%c0_75, %c0_76] : memref<1x512xf32, #tpu.memory_space<vmem>>, vector<1x512xf32>
    %128 = vector.broadcast %127 : vector<1x512xf32> to vector<2x512xf32>
    %129 = arith.addf %126, %128 : vector<2x512xf32>
    %cst_77 = arith.constant 0.000000e+00 : f32
    %130 = vector.broadcast %cst_77 : f32 to vector<2x512xf32>
    %131 = arith.maximumf %129, %130 : vector<2x512xf32>
    %132 = arith.truncf %131 : vector<2x512xf32> to vector<2x512xbf16>
    %c0_78 = arith.constant 0 : index
    %c0_79 = arith.constant 0 : index
    %133 = vector.load %arg10[%c0_78, %c0_79] : memref<512x512xbf16, #tpu.memory_space<vmem>>, vector<512x512xbf16>
    %cst_80 = arith.constant dense<0.000000e+00> : vector<2x512xf32>
    %134 = tpu.matmul %132, %133, %cst_80 {dimension_numbers = #tpu.dot_dimension_numbers<[1], [0], [0], [1], [0, 0, 1, 1], [], []>} : vector<2x512xbf16>, vector<512x512xbf16>, vector<2x512xf32> -> vector<2x512xf32>
    %c0_81 = arith.constant 0 : index
    %c0_82 = arith.constant 0 : index
    %135 = vector.load %arg11[%c0_81, %c0_82] : memref<1x512xf32, #tpu.memory_space<vmem>>, vector<1x512xf32>
    %136 = vector.broadcast %135 : vector<1x512xf32> to vector<2x512xf32>
    %137 = arith.addf %134, %136 : vector<2x512xf32>
    %cst_83 = arith.constant 0.000000e+00 : f32
    %138 = vector.broadcast %cst_83 : f32 to vector<2x512xf32>
    %139 = arith.maximumf %137, %138 : vector<2x512xf32>
    %c0_84 = arith.constant 0 : index
    %c0_85 = arith.constant 0 : index
    %140 = vector.load %arg15[%c0_84, %c0_85] : memref<2x512xf32, #tpu.memory_space<vmem>>, vector<2x512xf32>
    tpu.vector_store %arg15[%c0_84, %c0_85], %139 {strides = array<i32>} : memref<2x512xf32, #tpu.memory_space<vmem>>, vector<2x512xf32>,
    %141 = arith.truncf %139 : vector<2x512xf32> to vector<2x512xbf16>
    %c0_86 = arith.constant 0 : index
    %c0_87 = arith.constant 0 : index
    %142 = vector.load %arg12[%c0_86, %c0_87] : memref<512x128xbf16, #tpu.memory_space<vmem>>, vector<512x128xbf16>
    %cst_88 = arith.constant dense<0.000000e+00> : vector<2x128xf32>
    %143 = tpu.matmul %141, %142, %cst_88 {dimension_numbers = #tpu.dot_dimension_numbers<[1], [0], [0], [1], [0, 0, 1, 1], [], []>} : vector<2x512xbf16>, vector<512x128xbf16>, vector<2x128xf32> -> vector<2x128xf32>
    %c0_89 = arith.constant 0 : index
    %c0_90 = arith.constant 0 : index
    %144 = vector.load %arg13[%c0_89, %c0_90] : memref<1x128xf32, #tpu.memory_space<vmem>>, vector<1x128xf32>
    %145 = vector.broadcast %144 : vector<1x128xf32> to vector<2x128xf32>
    %146 = arith.addf %143, %145 : vector<2x128xf32>
    %147 = tpu.iota {dimensions = array<i32: 1>} : vector<2x128xi32>
    %c64_i32 = arith.constant 64 : i32
    %148 = vector.broadcast %c64_i32 : i32 to vector<2x128xi32>
    %149 = arith.cmpi slt, %147, %148 : vector<2x128xi32>
    %150 = arith.mulf %146, %146 : vector<2x128xf32>
    %cst_91 = arith.constant 0.000000e+00 : f32
    %151 = vector.broadcast %cst_91 : f32 to vector<2x128xf32>
    %152 = arith.select %149, %150, %151 : vector<2x128xi1>, vector<2x128xf32>
    %cst_92 = arith.constant dense<0.000000e+00> : vector<2xf32>
    %153 = vector.multi_reduction <add>, %152, %cst_92 [1] : vector<2x128xf32> to vector<2xf32>
    %154 = vector.shape_cast %153 : vector<2xf32> to vector<2x1xf32>
    %155 = math.sqrt %154 : vector<2x1xf32>
    %cst_93 = arith.constant 9.99999996E-13 : f32
    %156 = vector.broadcast %cst_93 : f32 to vector<2x1xf32>
    %157 = arith.maximumf %155, %156 : vector<2x1xf32>
    %158 = tpu.reciprocal %157 {approx = true} : vector<2x1xf32> -> vector<2x1xf32>
    %159 = vector.broadcast %158 : vector<2x1xf32> to vector<2x128xf32>
    %160 = arith.mulf %146, %159 : vector<2x128xf32>
    %161 = arith.select %149, %160, %146 : vector<2x128xi1>, vector<2x128xf32>
    %c0_94 = arith.constant 0 : index
    %c0_95 = arith.constant 0 : index
    %162 = vector.load %arg14[%c0_94, %c0_95] : memref<2x128xf32, #tpu.memory_space<vmem>>, vector<2x128xf32>
    tpu.vector_store %arg14[%c0_94, %c0_95], %161 {strides = array<i32>} : memref<2x128xf32, #tpu.memory_space<vmem>>, vector<2x128xf32>,
    return
  }
  func.func @transform_0(%arg0: i32) -> (i32, i32, i32) {
    %c0_i32 = arith.constant 0 : i32
    %c0_i32_0 = arith.constant 0 : i32
    %c0_i32_1 = arith.constant 0 : i32
    return %arg0, %c0_i32, %c0_i32_0 : i32, i32, i32
  }
  func.func @transform_1(%arg0: i32) -> (i32, i32) {
    %c0_i32 = arith.constant 0 : i32
    %c0_i32_0 = arith.constant 0 : i32
    %c0_i32_1 = arith.constant 0 : i32
    return %c0_i32, %c0_i32_0 : i32, i32
  }
  func.func @transform_2(%arg0: i32) -> (i32, i32) {
    %c0_i32 = arith.constant 0 : i32
    %c0_i32_0 = arith.constant 0 : i32
    %c0_i32_1 = arith.constant 0 : i32
    return %c0_i32, %c0_i32_0 : i32, i32
  }
  func.func @transform_3(%arg0: i32) -> (i32, i32) {
    %c0_i32 = arith.constant 0 : i32
    %c0_i32_0 = arith.constant 0 : i32
    %c0_i32_1 = arith.constant 0 : i32
    return %c0_i32, %c0_i32_0 : i32, i32
  }
  func.func @transform_4(%arg0: i32) -> (i32, i32) {
    %c0_i32 = arith.constant 0 : i32
    %c0_i32_0 = arith.constant 0 : i32
    %c0_i32_1 = arith.constant 0 : i32
    return %c0_i32, %c0_i32_0 : i32, i32
  }
  func.func @transform_5(%arg0: i32) -> (i32, i32) {
    %c0_i32 = arith.constant 0 : i32
    %c0_i32_0 = arith.constant 0 : i32
    %c0_i32_1 = arith.constant 0 : i32
    return %c0_i32, %c0_i32_0 : i32, i32
  }
  func.func @transform_6(%arg0: i32) -> (i32, i32) {
    %c0_i32 = arith.constant 0 : i32
    %c0_i32_0 = arith.constant 0 : i32
    %c0_i32_1 = arith.constant 0 : i32
    return %c0_i32, %c0_i32_0 : i32, i32
  }
  func.func @transform_7(%arg0: i32) -> (i32, i32) {
    %c0_i32 = arith.constant 0 : i32
    %c0_i32_0 = arith.constant 0 : i32
    %c0_i32_1 = arith.constant 0 : i32
    return %c0_i32, %c0_i32_0 : i32, i32
  }
  func.func @transform_8(%arg0: i32) -> (i32, i32) {
    %c0_i32 = arith.constant 0 : i32
    %c0_i32_0 = arith.constant 0 : i32
    %c0_i32_1 = arith.constant 0 : i32
    return %c0_i32, %c0_i32_0 : i32, i32
  }
  func.func @transform_9(%arg0: i32) -> (i32, i32) {
    %c0_i32 = arith.constant 0 : i32
    %c0_i32_0 = arith.constant 0 : i32
    %c0_i32_1 = arith.constant 0 : i32
    return %c0_i32, %c0_i32_0 : i32, i32
  }
  func.func @transform_10(%arg0: i32) -> (i32, i32) {
    %c0_i32 = arith.constant 0 : i32
    %c0_i32_0 = arith.constant 0 : i32
    %c0_i32_1 = arith.constant 0 : i32
    return %c0_i32, %c0_i32_0 : i32, i32
  }
  func.func @transform_11(%arg0: i32) -> (i32, i32) {
    %c0_i32 = arith.constant 0 : i32
    %c0_i32_0 = arith.constant 0 : i32
    %c0_i32_1 = arith.constant 0 : i32
    return %c0_i32, %c0_i32_0 : i32, i32
  }
  func.func @transform_12(%arg0: i32) -> (i32, i32) {
    %c0_i32 = arith.constant 0 : i32
    %c0_i32_0 = arith.constant 0 : i32
    %c0_i32_1 = arith.constant 0 : i32
    return %c0_i32, %c0_i32_0 : i32, i32
  }
  func.func @transform_13(%arg0: i32) -> (i32, i32) {
    %c0_i32 = arith.constant 0 : i32
    %c0_i32_0 = arith.constant 0 : i32
    return %arg0, %c0_i32 : i32, i32
  }
  func.func @transform_14(%arg0: i32) -> (i32, i32) {
    %c0_i32 = arith.constant 0 : i32
    %c0_i32_0 = arith.constant 0 : i32
    return %arg0, %c0_i32 : i32, i32
  }
}

</mosaic_0001>

<llo_original>
// kernel: vgg_forward.1
$region0: #{vgg_forward.1}
  #allocation0 [shape = 'u32[]', space=smem, size = 0x4, offset = 0x4, fixed_abs, tag = 'smem constant byte address 0x4 - core index']
  #allocation1 [shape = 'u32[144,128]{1,0:T(1,128)}', space=vmem, size = 0x12000, scoped, tag = 'internal scratch']
  #allocation2 [shape = 'f32[2,6,6,64]{3,2,1,0:T(8,128)}', space=vmem, size = 0xc000, scoped, tag = 'scratch operand']
  #allocation3 [shape = 'f32[2,4,4,128]{3,2,1,0:T(4,128)}', space=vmem, size = 0x4000, scoped, tag = 'scratch operand']
  %s0 = inlined_call_operand.vmem [shape: bf16[2,64,27], index: 0, kind: input, shape index: {}]
  %s1 = inlined_call_operand.hbm [shape: bf16[27,64], index: 1, kind: input, shape index: {}]
  %s2 = inlined_call_operand.hbm [shape: f32[1,64], index: 2, kind: input, shape index: {}]
  %s3 = inlined_call_operand.hbm [shape: bf16[576,128], index: 3, kind: input, shape index: {}]
  %s4 = inlined_call_operand.hbm [shape: f32[1,128], index: 4, kind: input, shape index: {}]
  %s5 = inlined_call_operand.hbm [shape: bf16[1152,512], index: 5, kind: input, shape index: {}]
  %s6 = inlined_call_operand.hbm [shape: f32[1,512], index: 6, kind: input, shape index: {}]
  %s7 = inlined_call_operand.vmem [shape: bf16[512,512], index: 7, kind: input, shape index: {}]
  %s8 = inlined_call_operand.hbm [shape: f32[1,512], index: 8, kind: input, shape index: {}]
  %s9 = inlined_call_operand.vmem [shape: bf16[512,512], index: 9, kind: input, shape index: {}]
  %s10 = inlined_call_operand.hbm [shape: f32[1,512], index: 10, kind: input, shape index: {}]
  %s11 = inlined_call_operand.hbm [shape: bf16[512,128], index: 11, kind: input, shape index: {}]
  %s12 = inlined_call_operand.hbm [shape: f32[1,128], index: 12, kind: input, shape index: {}]
  %s13 = inlined_call_operand.vmem [shape: f32[2,128], index: 13, kind: output, shape index: {0}]
  %s14 = inlined_call_operand.hbm [shape: f32[2,512], index: 14, kind: output, shape index: {1}]
  %15 = xla_tuple %s13, %s14
  %s16 = sld [smem:[#allocation0]]
  $region110: #{vgg_forward.1} parent=0
    _
  %s18 = ssub.s32 1, %s16
  %s19 = scalar_select 0, %s18, %s16
  $region1: #{vgg_forward.1} parent=0
    #allocation4 [shape = 'u8[8192]{0}', space=vmem, size = 0x2000, scoped, tag = 'input window, operand 1, single buffered']
    #allocation5 [shape = 's32[1]{0}', space=sflag, size = 0x4, scoped, tag = 'scoped memory for vgg_forward.1']
    #allocation6 [shape = 's32[1]{0}', space=sflag, size = 0x4, scoped, tag = 'scoped memory for vgg_forward.1']
    #allocation7 [shape = 'u8[512]{0}', space=vmem, size = 0x400, scoped, tag = 'input window, operand 2, single buffered']
    #allocation8 [shape = 's32[1]{0}', space=sflag, size = 0x4, scoped, tag = 'scoped memory for vgg_forward.1']
    #allocation9 [shape = 'u8[147456]{0}', space=vmem, size = 0x24000, scoped, tag = 'input window, operand 3, single buffered']
    #allocation10 [shape = 'u8[512]{0}', space=vmem, size = 0x400, scoped, tag = 'input window, operand 4, single buffered']
    #allocation11 [shape = 's32[1]{0}', space=sflag, size = 0x4, scoped, tag = 'scoped memory for vgg_forward.1']
    #allocation12 [shape = 'u8[1179648]{0}', space=vmem, size = 0x120000, scoped, tag = 'input window, operand 5, single buffered']
    #allocation13 [shape = 'u8[2048]{0}', space=vmem, size = 0x800, scoped, tag = 'input window, operand 6, single buffered']
    #allocation14 [shape = 's32[1]{0}', space=sflag, size = 0x4, scoped, tag = 'scoped memory for vgg_forward.1']
    #allocation15 [shape = 'u8[2048]{0}', space=vmem, size = 0x800, scoped, tag = 'input window, operand 8, single buffered']
    #allocation16 [shape = 'u8[2048]{0}', space=vmem, size = 0x800, scoped, tag = 'input window, operand 10, single buffered']
    #allocation17 [shape = 's32[1]{0}', space=sflag, size = 0x4, scoped, tag = 'scoped memory for vgg_forward.1']
    #allocation18 [shape = 'u8[131072]{0}', space=vmem, size = 0x20000, scoped, tag = 'input window, operand 11, single buffered']
    #allocation19 [shape = 'u8[512]{0}', space=vmem, size = 0x400, scoped, tag = 'input window, operand 12, single buffered']
    #allocation20 [shape = 's32[1]{0}', space=sflag, size = 0x4, scoped, tag = 'scoped memory for vgg_forward.1']
    #allocation21 [shape = 'u8[4096]{0}', space=vmem, size = 0x1000, scoped, tag = 'output window, operand 1, single buffered']
    %20 = vsyncpa [#allocation5], 0
    %21 = vsyncpa [#allocation8], 0
    %22 = vsyncpa [#allocation11], 0
    %23 = vsyncpa [#allocation14], 0
    %24 = vsyncpa [#allocation17], 0
    %25 = vsyncpa [#allocation20], 0
    %26 = vsyncpa [#allocation6], 0
    // Predicated region
    $region2: #{vgg_forward.1} parent=1 // pred_check
      _
    $region3: #{vgg_forward.1} parent=1 // pred_check_branch
      %28 = sbr.rel (0) target = $region5
    $region4: #{vgg_forward.1} parent=1 // pred_region
      _
    $region5: #{vgg_forward.1} parent=1 // pred_fallthru
      _
    // Predicated region
    $region6: #{vgg_forward.1} parent=1 // pred_check
      _
    $region7: #{vgg_forward.1} parent=1 // pred_check_branch
      %30 = sbr.rel (0) target = $region9
    $region8: #{vgg_forward.1} parent=1 // pred_region
      %s32 = ssub.s32 256, 256
      %33 = vsyncadd [#allocation5], %s32
      %s34 = sshll.u32 [#allocation4], 4
      %s35 = int_to_ptr.vmem [resolvable:$true] %s34
      %40 = dma.hbm_to_vmem [thread:$0]  %s1, 256, %s35, [#allocation5], 64, 64, 4
    $region9: #{vgg_forward.1} parent=1 // pred_fallthru
      _
    // Predicated region
    $region10: #{vgg_forward.1} parent=1 // pred_check
      _
    $region11: #{vgg_forward.1} parent=1 // pred_check_branch
      %42 = sbr.rel (0) target = $region13
    $region12: #{vgg_forward.1} parent=1 // pred_region
      %s44 = ssub.s32 16, 16
      %45 = vsyncadd [#allocation8], %s44
      %s47 = sshll.u32 [#allocation7], 4
      %s48 = int_to_ptr.vmem [resolvable:$true] %s47
      %50 = dma.hbm_to_vmem [thread:$0]  %s2, 16, %s48, [#allocation8]
    $region13: #{vgg_forward.1} parent=1 // pred_fallthru
      _
    // Predicated region
    $region14: #{vgg_forward.1} parent=1 // pred_check
      _
    $region15: #{vgg_forward.1} parent=1 // pred_check_branch
      %52 = sbr.rel (0) target = $region17
    $region16: #{vgg_forward.1} parent=1 // pred_region
      %s54 = ssub.s32 4608, 4608
      %55 = vsyncadd [#allocation8], %s54
      %s56 = sshll.u32 [#allocation9], 4
      %s57 = int_to_ptr.vmem [resolvable:$true] %s56
      %62 = dma.hbm_to_vmem [thread:$0]  %s3, 4608, %s57, [#allocation8], 64, 64, 4
    $region17: #{vgg_forward.1} parent=1 // pred_fallthru
      _
    // Predicated region
    $region18: #{vgg_forward.1} parent=1 // pred_check
      _
    $region19: #{vgg_forward.1} parent=1 // pred_check_branch
      %64 = sbr.rel (0) target = $region21
    $region20: #{vgg_forward.1} parent=1 // pred_region
      %s66 = ssub.s32 16, 16
      %67 = vsyncadd [#allocation11], %s66
      %s69 = sshll.u32 [#allocation10], 4
      %s70 = int_to_ptr.vmem [resolvable:$true] %s69
      %72 = dma.hbm_to_vmem [thread:$0]  %s4, 16, %s70, [#allocation11]
    $region21: #{vgg_forward.1} parent=1 // pred_fallthru
      _
    // Predicated region
    $region22: #{vgg_forward.1} parent=1 // pred_check
      _
    $region23: #{vgg_forward.1} parent=1 // pred_check_branch
      %74 = sbr.rel (0) target = $region25
    $region24: #{vgg_forward.1} parent=1 // pred_region
      %s76 = ssub.s32 36864, 36864
      %77 = vsyncadd [#allocation11], %s76
      %s78 = sshll.u32 [#allocation12], 4
      %s79 = int_to_ptr.vmem [resolvable:$true] %s78
      %84 = dma.hbm_to_vmem [thread:$0]  %s5, 36864, %s79, [#allocation11], 256, 256, 16
    $region25: #{vgg_forward.1} parent=1 // pred_fallthru
      _
    // Predicated region
    $region26: #{vgg_forward.1} parent=1 // pred_check
      _
    $region27: #{vgg_forward.1} parent=1 // pred_check_branch
      %86 = sbr.rel (0) target = $region29
    $region28: #{vgg_forward.1} parent=1 // pred_region
      %s88 = ssub.s32 64, 64
      %89 = vsyncadd [#allocation14], %s88
      %s91 = sshll.u32 [#allocation13], 4
      %s92 = int_to_ptr.vmem [resolvable:$true] %s91
      %94 = dma.hbm_to_vmem [thread:$0]  %s6, 64, %s92, [#allocation14]
    $region29: #{vgg_forward.1} parent=1 // pred_fallthru
      _
    // Predicated region
    $region30: #{vgg_forward.1} parent=1 // pred_check
      _
    $region31: #{vgg_forward.1} parent=1 // pred_check_branch
      %96 = sbr.rel (0) target = $region33
    $region32: #{vgg_forward.1} parent=1 // pred_region
      _
    $region33: #{vgg_forward.1} parent=1 // pred_fallthru
      _
    // Predicated region
    $region34: #{vgg_forward.1} parent=1 // pred_check
      _
    $region35: #{vgg_forward.1} parent=1 // pred_check_branch
      %98 = sbr.rel (0) target = $region37
    $region36: #{vgg_forward.1} parent=1 // pred_region
      %s100 = ssub.s32 64, 64
      %101 = vsyncadd [#allocation14], %s100
      %s103 = sshll.u32 [#allocation15], 4
      %s104 = int_to_ptr.vmem [resolvable:$true] %s103
      %106 = dma.hbm_to_vmem [thread:$0]  %s8, 64, %s104, [#allocation14]
    $region37: #{vgg_forward.1} parent=1 // pred_fallthru
      _
    // Predicated region
    $region38: #{vgg_forward.1} parent=1 // pred_check
      _
    $region39: #{vgg_forward.1} parent=1 // pred_check_branch
      %108 = sbr.rel (0) target = $region41
    $region40: #{vgg_forward.1} parent=1 // pred_region
      _
    $region41: #{vgg_forward.1} parent=1 // pred_fallthru
      _
    // Predicated region
    $region42: #{vgg_forward.1} parent=1 // pred_check
      _
    $region43: #{vgg_forward.1} parent=1 // pred_check_branch
      %110 = sbr.rel (0) target = $region45
    $region44: #{vgg_forward.1} parent=1 // pred_region
      %s112 = ssub.s32 64, 64
      %113 = vsyncadd [#allocation17], %s112
      %s115 = sshll.u32 [#allocation16], 4
      %s116 = int_to_ptr.vmem [resolvable:$true] %s115
      %118 = dma.hbm_to_vmem [thread:$0]  %s10, 64, %s116, [#allocation17]
    $region45: #{vgg_forward.1} parent=1 // pred_fallthru
      _
    // Predicated region
    $region46: #{vgg_forward.1} parent=1 // pred_check
      _
    $region47: #{vgg_forward.1} parent=1 // pred_check_branch
      %120 = sbr.rel (0) target = $region49
    $region48: #{vgg_forward.1} parent=1 // pred_region
      %s122 = ssub.s32 4096, 4096
      %123 = vsyncadd [#allocation17], %s122
      %s124 = sshll.u32 [#allocation18], 4
      %s125 = int_to_ptr.vmem [resolvable:$true] %s124
      %130 = dma.hbm_to_vmem [thread:$0]  %s11, 4096, %s125, [#allocation17], 64, 64, 4
    $region49: #{vgg_forward.1} parent=1 // pred_fallthru
      _
    // Predicated region
    $region50: #{vgg_forward.1} parent=1 // pred_check
      _
    $region51: #{vgg_forward.1} parent=1 // pred_check_branch
      %132 = sbr.rel (0) target = $region53
    $region52: #{vgg_forward.1} parent=1 // pred_region
      %s134 = ssub.s32 16, 16
      %135 = vsyncadd [#allocation20], %s134
      %s137 = sshll.u32 [#allocation19], 4
      %s138 = int_to_ptr.vmem [resolvable:$true] %s137
      %140 = dma.hbm_to_vmem [thread:$0]  %s12, 16, %s138, [#allocation20]
    $region53: #{vgg_forward.1} parent=1 // pred_fallthru
      _
    // Predicated region
    $region54: #{vgg_forward.1} parent=1 // pred_check
      _
    $region55: #{vgg_forward.1} parent=1 // pred_check_branch
      %142 = sbr.rel (0) target = $region57
    $region56: #{vgg_forward.1} parent=1 // pred_region
      %143 = dma.done [#allocation5], 256
    $region57: #{vgg_forward.1} parent=1 // pred_fallthru
      _
    // Predicated region
    $region58: #{vgg_forward.1} parent=1 // pred_check
      _
    $region59: #{vgg_forward.1} parent=1 // pred_check_branch
      %145 = sbr.rel (0) target = $region61
    $region60: #{vgg_forward.1} parent=1 // pred_region
      %146 = dma.done [#allocation8], 16
    $region61: #{vgg_forward.1} parent=1 // pred_fallthru
      _
    // Predicated region
    $region62: #{vgg_forward.1} parent=1 // pred_check
      _
    $region63: #{vgg_forward.1} parent=1 // pred_check_branch
      %148 = sbr.rel (0) target = $region65
    $region64: #{vgg_forward.1} parent=1 // pred_region
      %149 = dma.done [#allocation8], 4608
    $region65: #{vgg_forward.1} parent=1 // pred_fallthru
      _
    // Predicated region
    $region66: #{vgg_forward.1} parent=1 // pred_check
      _
    $region67: #{vgg_forward.1} parent=1 // pred_check_branch
      %151 = sbr.rel (0) target = $region69
    $region68: #{vgg_forward.1} parent=1 // pred_region
      %152 = dma.done [#allocation11], 16
    $region69: #{vgg_forward.1} parent=1 // pred_fallthru
      _
    // Predicated region
    $region70: #{vgg_forward.1} parent=1 // pred_check
      _
    $region71: #{vgg_forward.1} parent=1 // pred_check_branch
      %154 = sbr.rel (0) target = $region73
    $region72: #{vgg_forward.1} parent=1 // pred_region
      %155 = dma.done [#allocation11], 36864
    $region73: #{vgg_forward.1} parent=1 // pred_fallthru
      _
    // Predicated region
    $region74: #{vgg_forward.1} parent=1 // pred_check
      _
    $region75: #{vgg_forward.1} parent=1 // pred_check_branch
      %157 = sbr.rel (0) target = $region77
    $region76: #{vgg_forward.1} parent=1 // pred_region
      %158 = dma.done [#allocation14], 64
    $region77: #{vgg_forward.1} parent=1 // pred_fallthru
      _
    // Predicated region
    $region78: #{vgg_forward.1} parent=1 // pred_check
      _
    $region79: #{vgg_forward.1} parent=1 // pred_check_branch
      %160 = sbr.rel (0) target = $region81
    $region80: #{vgg_forward.1} parent=1 // pred_region
      %161 = dma.done [#allocation14], 64
    $region81: #{vgg_forward.1} parent=1 // pred_fallthru
      _
    // Predicated region
    $region82: #{vgg_forward.1} parent=1 // pred_check
      _
    $region83: #{vgg_forward.1} parent=1 // pred_check_branch
      %163 = sbr.rel (0) target = $region85
    $region84: #{vgg_forward.1} parent=1 // pred_region
      %164 = dma.done [#allocation17], 64
    $region85: #{vgg_forward.1} parent=1 // pred_fallthru
      _
    // Predicated region
    $region86: #{vgg_forward.1} parent=1 // pred_check
      _
    $region87: #{vgg_forward.1} parent=1 // pred_check_branch
      %166 = sbr.rel (0) target = $region89
    $region88: #{vgg_forward.1} parent=1 // pred_region
      %167 = dma.done [#allocation17], 4096
    $region89: #{vgg_forward.1} parent=1 // pred_fallthru
      _
    // Predicated region
    $region90: #{vgg_forward.1} parent=1 // pred_check
      _
    $region91: #{vgg_forward.1} parent=1 // pred_check_branch
      %169 = sbr.rel (0) target = $region93
    $region92: #{vgg_forward.1} parent=1 // pred_region
      %170 = dma.done [#allocation20], 16
    $region93: #{vgg_forward.1} parent=1 // pred_fallthru
      _
    %v172 = vld [vmem:[%s0] sm:$0xf]
    %v173 = vld [vmem:[%s0 + $0x4] sm:$0xf]
    %v174 = vld [vmem:[%s0 + $0x8] sm:$0xf]
    %v175 = vld [vmem:[%s0 + $0xc] sm:$0xf]
    %v176 = vld [vmem:[%s0 + $0x10] sm:$0xf]
    %v177 = vld [vmem:[%s0 + $0x14] sm:$0xf]
    %v178 = vld [vmem:[%s0 + $0x18] sm:$0xf]
    %v179 = vld [vmem:[%s0 + $0x1c] sm:$0xf]
    %v180 = vld [vmem:[%s0 + $0x20] sm:$0xf]
    %v181 = vld [vmem:[%s0 + $0x24] sm:$0xf]
    %v182 = vld [vmem:[%s0 + $0x28] sm:$0xf]
    %v183 = vld [vmem:[%s0 + $0x2c] sm:$0xf]
    %v184 = vld [vmem:[%s0 + $0x30] sm:$0xf]
    %v185 = vld [vmem:[%s0 + $0x34] sm:$0xf]
    %v186 = vld [vmem:[%s0 + $0x38] sm:$0xf]
    %v187 = vld [vmem:[%s0 + $0x3c] sm:$0xf]
    %v188 = vld [vmem:[#allocation4] sm:$0xf]
    %v189 = vld [vmem:[#allocation4 + $0x4] sm:$0xf]
    %v190 = vld [vmem:[#allocation4 + $0x8] sm:$0xf]
    %v191 = vld [vmem:[#allocation4 + $0xc] sm:$0x3]
    %v192 = vld [vmem:[#allocation7] sm:$0x1]
    %v194 = vlaneseq
    %v195 = vshrl.u32 %v194, 7
    %v196 = vsub.s32 0, %v195
    %v197 = vrot.slane %v192, %v196
    %v215 = vunpack.c.l.b16 %v172
    %v216 = vunpack.c.l.b16 %v173
    %v217 = vunpack.c.l.b16 %v174
    %v218 = vunpack.c.l.b16 %v175
    %v219 = vunpack.c.l.b16 %v176
    %v220 = vunpack.c.l.b16 %v177
    %v221 = vunpack.c.l.b16 %v178
    %v222 = vunpack.c.l.b16 %v179
    %v223 = vunpack.c.l.b16 %v180
    %v224 = vunpack.c.l.b16 %v181
    %v225 = vunpack.c.l.b16 %v182
    %v226 = vunpack.c.l.b16 %v183
    %v227 = vunpack.c.l.b16 %v184
    %v228 = vunpack.c.l.b16 %v185
    %v229 = vunpack.c.l.b16 %v186
    %v230 = vunpack.c.l.b16 %v187
    %v231 = vpack.c.b16 %v216, %v215
    %v232 = vpack.c.b16 %v218, %v217
    %v233 = vpack.c.b16 %v220, %v219
    %v234 = vpack.c.b16 %v222, %v221
    %v235 = vpack.c.b16 %v224, %v223
    %v236 = vpack.c.b16 %v226, %v225
    %v237 = vpack.c.b16 %v228, %v227
    %v238 = vpack.c.b16 %v230, %v229
    %v243 = vunpack.c.l.b16 %v188
    %v244 = vunpack.c.l.b16 %v189
    %v245 = vunpack.c.l.b16 %v190
    %v246 = vunpack.c.l.b16 %v191
    %v247 = vpack.c.b16 %v244, %v243
    %v248 = vpack.c.b16 %v246, %v245
    %vm250 = vcmask 220160
    %v252 = vsel %vm250, %v231, 0
    %v255 = vsel %vm250, %v232, 0
    %v258 = vsel %vm250, %v233, 0
    %v261 = vsel %vm250, %v234, 0
    %v264 = vsel %vm250, %v235, 0
    %v267 = vsel %vm250, %v236, 0
    %v270 = vsel %vm250, %v237, 0
    %v273 = vsel %vm250, %v238, 0
    %vm275 = vcmask 1044480
    %vm276 = vcmask 1045504
    %v277 = vsel %vm275, 4294967295, 65535
    %v278 = vsel %vm276, %v277, 0
    %v280 = vand.u32 %v248, %v278
    %282 = vmatprep.subr.bf16.mxu0 0
    %283 = vmatpush1.bf16.msra.mxu0 %v247
    %284 = vmatprep.subr.bf16.mxu0 0
    %285 = vmatpush1.bf16.msra.mxu0 %v280
    %286 = vmatprep.subr.bf16.mxu0 0
    %287 = vmatpush1.bf16.msra.mxu0 0
    %288 = vmatprep.subr.bf16.mxu0 0
    %289 = vmatpush1.bf16.msra.mxu0 0
    %290 = vmatprep.subr.bf16.mxu0 0
    %291 = vmatpush1.bf16.msra.mxu0 0
    %292 = vmatprep.subr.bf16.mxu0 0
    %293 = vmatpush1.bf16.msra.mxu0 0
    %294 = vmatprep.subr.bf16.mxu0 0
    %295 = vmatpush1.bf16.msra.mxu0 0
    %296 = vmatprep.subr.bf16.mxu0 0
    %297 = vmatpush1.bf16.msra.mxu0 0
    %298 = vmatprep.subr.bf16.mxu0 0
    %299 = vmatpush1.bf16.msra.mxu0 0
    %300 = vmatprep.subr.bf16.mxu0 0
    %301 = vmatpush1.bf16.msra.mxu0 0
    %302 = vmatprep.subr.bf16.mxu0 0
    %303 = vmatpush1.bf16.msra.mxu0 0
    %304 = vmatprep.subr.bf16.mxu0 0
    %305 = vmatpush1.bf16.msra.mxu0 0
    %306 = vmatprep.subr.bf16.mxu0 0
    %307 = vmatpush1.bf16.msra.mxu0 0
    %308 = vmatprep.subr.bf16.mxu0 0
    %309 = vmatpush1.bf16.msra.mxu0 0
    %310 = vmatprep.subr.bf16.mxu0 0
    %311 = vmatpush1.bf16.msra.mxu0 0
    %312 = vmatprep.subr.bf16.mxu0 0
    %313 = vmatpush1.bf16.msra.mxu0 0
    %314 = vmatprep.mubr.bf16.mxu0 0
    %315 = vmatmul.mubr.bf16.gmra.mrb[0].mxu0 %v252
    %v316 = vpop.f32.mrb[0].mxu0
    %v317 = vadd.f32 %v197, %v316
    %v318 = vpop.f32.mrb[0].mxu0
    %v319 = vpop.f32.mrb[0].mxu0
    %v320 = vadd.f32 %v197, %v319
    %v321 = vpop.f32.mrb[0].mxu0
    %322 = vmatprep.mubr.bf16.mxu0 0
    %323 = vmatmul.mubr.bf16.gmra.mrb[0].mxu0 %v255
    %v324 = vpop.f32.mrb[0].mxu0
    %v325 = vadd.f32 %v197, %v324
    %v326 = vpop.f32.mrb[0].mxu0
    %v327 = vpop.f32.mrb[0].mxu0
    %v328 = vadd.f32 %v197, %v327
    %v329 = vpop.f32.mrb[0].mxu0
    %330 = vmatprep.mubr.bf16.mxu0 0
    %331 = vmatmul.mubr.bf16.gmra.mrb[0].mxu0 %v258
    %v332 = vpop.f32.mrb[0].mxu0
    %v333 = vadd.f32 %v197, %v332
    %v334 = vpop.f32.mrb[0].mxu0
    %v335 = vpop.f32.mrb[0].mxu0
    %v336 = vadd.f32 %v197, %v335
    %v337 = vpop.f32.mrb[0].mxu0
    %338 = vmatprep.mubr.bf16.mxu0 0
    %339 = vmatmul.mubr.bf16.gmra.mrb[0].mxu0 %v261
    %v340 = vpop.f32.mrb[0].mxu0
    %v341 = vadd.f32 %v197, %v340
    %v342 = vpop.f32.mrb[0].mxu0
    %v343 = vpop.f32.mrb[0].mxu0
    %v344 = vadd.f32 %v197, %v343
    %v345 = vpop.f32.mrb[0].mxu0
    %346 = vmatprep.mubr.bf16.mxu0 0
    %347 = vmatmul.mubr.bf16.gmra.mrb[0].mxu0 %v264
    %v348 = vpop.f32.mrb[0].mxu0
    %v349 = vadd.f32 %v197, %v348
    %v350 = vpop.f32.mrb[0].mxu0
    %v351 = vpop.f32.mrb[0].mxu0
    %v352 = vadd.f32 %v197, %v351
    %v353 = vpop.f32.mrb[0].mxu0
    %354 = vmatprep.mubr.bf16.mxu0 0
    %355 = vmatmul.mubr.bf16.gmra.mrb[0].mxu0 %v267
    %v356 = vpop.f32.mrb[0].mxu0
    %v357 = vadd.f32 %v197, %v356
    %v358 = vpop.f32.mrb[0].mxu0
    %v359 = vpop.f32.mrb[0].mxu0
    %v360 = vadd.f32 %v197, %v359
    %v361 = vpop.f32.mrb[0].mxu0
    %362 = vmatprep.mubr.bf16.mxu0 0
    %363 = vmatmul.mubr.bf16.gmra.mrb[0].mxu0 %v270
    %v364 = vpop.f32.mrb[0].mxu0
    %v365 = vadd.f32 %v197, %v364
    %v366 = vpop.f32.mrb[0].mxu0
    %v367 = vpop.f32.mrb[0].mxu0
    %v368 = vadd.f32 %v197, %v367
    %v369 = vpop.f32.mrb[0].mxu0
    %370 = vmatprep.mubr.bf16.mxu0 0
    %371 = vmatmul.mubr.bf16.gmra.mrb[0].mxu0 %v273
    %v372 = vpop.f32.mrb[0].mxu0
    %v373 = vadd.f32 %v197, %v372
    %v374 = vpop.f32.mrb[0].mxu0
    %v375 = vpop.f32.mrb[0].mxu0
    %v376 = vadd.f32 %v197, %v375
    %v377 = vpop.f32.mrb[0].mxu0
    %378 = vdwg.mxu0
    %v379 = vmax.f32 %v317, 0.0
    %v380 = vmax.f32 %v320, 0.0
    %v381 = vmax.f32 %v325, 0.0
    %v382 = vmax.f32 %v328, 0.0
    %v383 = vmax.f32 %v333, 0.0
    %v384 = vmax.f32 %v336, 0.0
    %v385 = vmax.f32 %v341, 0.0
    %v386 = vmax.f32 %v344, 0.0
    %v387 = vmax.f32 %v349, 0.0
    %v388 = vmax.f32 %v352, 0.0
    %v389 = vmax.f32 %v357, 0.0
    %v390 = vmax.f32 %v360, 0.0
    %v391 = vmax.f32 %v365, 0.0
    %v392 = vmax.f32 %v368, 0.0
    %v393 = vmax.f32 %v373, 0.0
    %v394 = vmax.f32 %v376, 0.0
    %v411 = vcombine.high %v379, %v379
    %v413 = vunpack.c.l.s4 1983009808
    %v414 = vunpack.c.0.s8 %v413
    %v415 = vlaneseq
    %v416 = vshrl.u32 %v415, 7
    %v417 = vsub.s32 %v414, %v416
    %v418 = vrot.slane %v379, %v417
    %v420 = vunpack.c.l.s4 1983009808
    %v421 = vunpack.c.0.s8 %v420
    %v422 = vlaneseq
    %v423 = vshrl.u32 %v422, 7
    %v424 = vsub.s32 %v421, %v423
    %v425 = vrot.slane %v411, %v424
    %v426 = vcombine.high %v418, %v418
    %v427 = vcombine.high %v425, %v425
    %v428 = vcombine.high %v380, %v380
    %v430 = vunpack.c.l.s4 1983009808
    %v431 = vunpack.c.0.s8 %v430
    %v432 = vlaneseq
    %v433 = vshrl.u32 %v432, 7
    %v434 = vsub.s32 %v431, %v433
    %v435 = vrot.slane %v380, %v434
    %v437 = vunpack.c.l.s4 1983009808
    %v438 = vunpack.c.0.s8 %v437
    %v439 = vlaneseq
    %v440 = vshrl.u32 %v439, 7
    %v441 = vsub.s32 %v438, %v440
    %v442 = vrot.slane %v428, %v441
    %v443 = vcombine.high %v435, %v435
    %v444 = vcombine.high %v442, %v442
    %v445 = vcombine.high %v381, %v381
    %v447 = vunpack.c.l.s4 1983009808
    %v448 = vunpack.c.0.s8 %v447
    %v449 = vlaneseq
    %v450 = vshrl.u32 %v449, 7
    %v451 = vsub.s32 %v448, %v450
    %v452 = vrot.slane %v381, %v451
    %v454 = vunpack.c.l.s4 1983009808
    %v455 = vunpack.c.0.s8 %v454
    %v456 = vlaneseq
    %v457 = vshrl.u32 %v456, 7
    %v458 = vsub.s32 %v455, %v457
    %v459 = vrot.slane %v445, %v458
    %v460 = vcombine.high %v452, %v452
    %v461 = vcombine.high %v459, %v459
    %v462 = vcombine.high %v382, %v382
    %v464 = vunpack.c.l.s4 1983009808
    %v465 = vunpack.c.0.s8 %v464
    %v466 = vlaneseq
    %v467 = vshrl.u32 %v466, 7
    %v468 = vsub.s32 %v465, %v467
    %v469 = vrot.slane %v382, %v468
    %v471 = vunpack.c.l.s4 1983009808
    %v472 = vunpack.c.0.s8 %v471
    %v473 = vlaneseq
    %v474 = vshrl.u32 %v473, 7
    %v475 = vsub.s32 %v472, %v474
    %v476 = vrot.slane %v462, %v475
    %v477 = vcombine.high %v469, %v469
    %v478 = vcombine.high %v476, %v476
    %v479 = vcombine.high %v383, %v383
    %v481 = vunpack.c.l.s4 1983009808
    %v482 = vunpack.c.0.s8 %v481
    %v483 = vlaneseq
    %v484 = vshrl.u32 %v483, 7
    %v485 = vsub.s32 %v482, %v484
    %v486 = vrot.slane %v383, %v485
    %v488 = vunpack.c.l.s4 1983009808
    %v489 = vunpack.c.0.s8 %v488
    %v490 = vlaneseq
    %v491 = vshrl.u32 %v490, 7
    %v492 = vsub.s32 %v489, %v491
    %v493 = vrot.slane %v479, %v492
    %v494 = vcombine.high %v486, %v486
    %v495 = vcombine.high %v493, %v493
    %v496 = vcombine.high %v384, %v384
    %v498 = vunpack.c.l.s4 1983009808
    %v499 = vunpack.c.0.s8 %v498
    %v500 = vlaneseq
    %v501 = vshrl.u32 %v500, 7
    %v502 = vsub.s32 %v499, %v501
    %v503 = vrot.slane %v384, %v502
    %v505 = vunpack.c.l.s4 1983009808
    %v506 = vunpack.c.0.s8 %v505
    %v507 = vlaneseq
    %v508 = vshrl.u32 %v507, 7
    %v509 = vsub.s32 %v506, %v508
    %v510 = vrot.slane %v496, %v509
    %v511 = vcombine.high %v503, %v503
    %v512 = vcombine.high %v510, %v510
    %v513 = vcombine.high %v385, %v385
    %v515 = vunpack.c.l.s4 1983009808
    %v516 = vunpack.c.0.s8 %v515
    %v517 = vlaneseq
    %v518 = vshrl.u32 %v517, 7
    %v519 = vsub.s32 %v516, %v518
    %v520 = vrot.slane %v385, %v519
    %v522 = vunpack.c.l.s4 1983009808
    %v523 = vunpack.c.0.s8 %v522
    %v524 = vlaneseq
    %v525 = vshrl.u32 %v524, 7
    %v526 = vsub.s32 %v523, %v525
    %v527 = vrot.slane %v513, %v526
    %v528 = vcombine.high %v520, %v520
    %v529 = vcombine.high %v527, %v527
    %v530 = vcombine.high %v386, %v386
    %v532 = vunpack.c.l.s4 1983009808
    %v533 = vunpack.c.0.s8 %v532
    %v534 = vlaneseq
    %v535 = vshrl.u32 %v534, 7
    %v536 = vsub.s32 %v533, %v535
    %v537 = vrot.slane %v386, %v536
    %v539 = vunpack.c.l.s4 1983009808
    %v540 = vunpack.c.0.s8 %v539
    %v541 = vlaneseq
    %v542 = vshrl.u32 %v541, 7
    %v543 = vsub.s32 %v540, %v542
    %v544 = vrot.slane %v530, %v543
    %v545 = vcombine.high %v537, %v537
    %v546 = vcombine.high %v544, %v544
    %v547 = vcombine.high %v387, %v387
    %v549 = vunpack.c.l.s4 1983009808
    %v550 = vunpack.c.0.s8 %v549
    %v551 = vlaneseq
    %v552 = vshrl.u32 %v551, 7
    %v553 = vsub.s32 %v550, %v552
    %v554 = vrot.slane %v387, %v553
    %v556 = vunpack.c.l.s4 1983009808
    %v557 = vunpack.c.0.s8 %v556
    %v558 = vlaneseq
    %v559 = vshrl.u32 %v558, 7
    %v560 = vsub.s32 %v557, %v559
    %v561 = vrot.slane %v547, %v560
    %v562 = vcombine.high %v554, %v554
    %v563 = vcombine.high %v561, %v561
    %v564 = vcombine.high %v388, %v388
    %v566 = vunpack.c.l.s4 1983009808
    %v567 = vunpack.c.0.s8 %v566
    %v568 = vlaneseq
    %v569 = vshrl.u32 %v568, 7
    %v570 = vsub.s32 %v567, %v569
    %v571 = vrot.slane %v388, %v570
    %v573 = vunpack.c.l.s4 1983009808
    %v574 = vunpack.c.0.s8 %v573
    %v575 = vlaneseq
    %v576 = vshrl.u32 %v575, 7
    %v577 = vsub.s32 %v574, %v576
    %v578 = vrot.slane %v564, %v577
    %v579 = vcombine.high %v571, %v571
    %v580 = vcombine.high %v578, %v578
    %v581 = vcombine.high %v389, %v389
    %v583 = vunpack.c.l.s4 1983009808
    %v584 = vunpack.c.0.s8 %v583
    %v585 = vlaneseq
    %v586 = vshrl.u32 %v585, 7
    %v587 = vsub.s32 %v584, %v586
    %v588 = vrot.slane %v389, %v587
    %v590 = vunpack.c.l.s4 1983009808
    %v591 = vunpack.c.0.s8 %v590
    %v592 = vlaneseq
    %v593 = vshrl.u32 %v592, 7
    %v594 = vsub.s32 %v591, %v593
    %v595 = vrot.slane %v581, %v594
    %v596 = vcombine.high %v588, %v588
    %v597 = vcombine.high %v595, %v595
    %v598 = vcombine.high %v390, %v390
    %v600 = vunpack.c.l.s4 1983009808
    %v601 = vunpack.c.0.s8 %v600
    %v602 = vlaneseq
    %v603 = vshrl.u32 %v602, 7
    %v604 = vsub.s32 %v601, %v603
    %v605 = vrot.slane %v390, %v604
    %v607 = vunpack.c.l.s4 1983009808
    %v608 = vunpack.c.0.s8 %v607
    %v609 = vlaneseq
    %v610 = vshrl.u32 %v609, 7
    %v611 = vsub.s32 %v608, %v610
    %v612 = vrot.slane %v598, %v611
    %v613 = vcombine.high %v605, %v605
    %v614 = vcombine.high %v612, %v612
    %v615 = vcombine.high %v391, %v391
    %v617 = vunpack.c.l.s4 1983009808
    %v618 = vunpack.c.0.s8 %v617
    %v619 = vlaneseq
    %v620 = vshrl.u32 %v619, 7
    %v621 = vsub.s32 %v618, %v620
    %v622 = vrot.slane %v391, %v621
    %v624 = vunpack.c.l.s4 1983009808
    %v625 = vunpack.c.0.s8 %v624
    %v626 = vlaneseq
    %v627 = vshrl.u32 %v626, 7
    %v628 = vsub.s32 %v625, %v627
    %v629 = vrot.slane %v615, %v628
    %v630 = vcombine.high %v622, %v622
    %v631 = vcombine.high %v629, %v629
    %v632 = vcombine.high %v392, %v392
    %v634 = vunpack.c.l.s4 1983009808
    %v635 = vunpack.c.0.s8 %v634
    %v636 = vlaneseq
    %v637 = vshrl.u32 %v636, 7
    %v638 = vsub.s32 %v635, %v637
    %v639 = vrot.slane %v392, %v638
    %v641 = vunpack.c.l.s4 1983009808
    %v642 = vunpack.c.0.s8 %v641
    %v643 = vlaneseq
    %v644 = vshrl.u32 %v643, 7
    %v645 = vsub.s32 %v642, %v644
    %v646 = vrot.slane %v632, %v645
    %v647 = vcombine.high %v639, %v639
    %v648 = vcombine.high %v646, %v646
    %v649 = vcombine.high %v393, %v393
    %v651 = vunpack.c.l.s4 1983009808
    %v652 = vunpack.c.0.s8 %v651
    %v653 = vlaneseq
    %v654 = vshrl.u32 %v653, 7
    %v655 = vsub.s32 %v652, %v654
    %v656 = vrot.slane %v393, %v655
    %v658 = vunpack.c.l.s4 1983009808
    %v659 = vunpack.c.0.s8 %v658
    %v660 = vlaneseq
    %v661 = vshrl.u32 %v660, 7
    %v662 = vsub.s32 %v659, %v661
    %v663 = vrot.slane %v649, %v662
    %v664 = vcombine.high %v656, %v656
    %v665 = vcombine.high %v663, %v663
    %v666 = vcombine.high %v394, %v394
    %v668 = vunpack.c.l.s4 1983009808
    %v669 = vunpack.c.0.s8 %v668
    %v670 = vlaneseq
    %v671 = vshrl.u32 %v670, 7
    %v672 = vsub.s32 %v669, %v671
    %v673 = vrot.slane %v394, %v672
    %v675 = vunpack.c.l.s4 1983009808
    %v676 = vunpack.c.0.s8 %v675
    %v677 = vlaneseq
    %v678 = vshrl.u32 %v677, 7
    %v679 = vsub.s32 %v676, %v678
    %v680 = vrot.slane %v666, %v679
    %v681 = vcombine.high %v673, %v673
    %v682 = vcombine.high %v680, %v680
    %v747 = vrot.slane %v418, 7
    %v748 = vrot.slane %v747, 2
    %v749 = vrot.slane %v426, 7
    %v750 = vrot.slane %v749, 2
    %v751 = vrot.slane %v425, 7
    %v752 = vrot.slane %v751, 2
    %v753 = vrot.slane %v427, 7
    %v754 = vrot.slane %v753, 2
    %v755 = vrot.slane %v435, 7
    %v756 = vrot.slane %v755, 2
    %v757 = vrot.slane %v443, 7
    %v758 = vrot.slane %v757, 2
    %v759 = vrot.slane %v442, 7
    %v760 = vrot.slane %v759, 2
    %v761 = vrot.slane %v444, 7
    %v762 = vrot.slane %v761, 2
    %v763 = vrot.slane %v452, 7
    %v764 = vrot.slane %v763, 2
    %v765 = vrot.slane %v460, 7
    %v766 = vrot.slane %v765, 2
    %v767 = vrot.slane %v459, 7
    %v768 = vrot.slane %v767, 2
    %v769 = vrot.slane %v461, 7
    %v770 = vrot.slane %v769, 2
    %v771 = vrot.slane %v469, 7
    %v772 = vrot.slane %v771, 2
    %v773 = vrot.slane %v477, 7
    %v774 = vrot.slane %v773, 2
    %v775 = vrot.slane %v476, 7
    %v776 = vrot.slane %v775, 2
    %v777 = vrot.slane %v478, 7
    %v778 = vrot.slane %v777, 2
    %v779 = vrot.slane %v486, 7
    %v780 = vrot.slane %v779, 2
    %v781 = vrot.slane %v494, 7
    %v782 = vrot.slane %v781, 2
    %v783 = vrot.slane %v493, 7
    %v784 = vrot.slane %v783, 2
    %v785 = vrot.slane %v495, 7
    %v786 = vrot.slane %v785, 2
    %v787 = vrot.slane %v503, 7
    %v788 = vrot.slane %v787, 2
    %v789 = vrot.slane %v511, 7
    %v790 = vrot.slane %v789, 2
    %v791 = vrot.slane %v510, 7
    %v792 = vrot.slane %v791, 2
    %v793 = vrot.slane %v512, 7
    %v794 = vrot.slane %v793, 2
    %v795 = vrot.slane %v520, 7
    %v796 = vrot.slane %v795, 2
    %v797 = vrot.slane %v528, 7
    %v798 = vrot.slane %v797, 2
    %v799 = vrot.slane %v527, 7
    %v800 = vrot.slane %v799, 2
    %v801 = vrot.slane %v529, 7
    %v802 = vrot.slane %v801, 2
    %v803 = vrot.slane %v537, 7
    %v804 = vrot.slane %v803, 2
    %v805 = vrot.slane %v545, 7
    %v806 = vrot.slane %v805, 2
    %v807 = vrot.slane %v544, 7
    %v808 = vrot.slane %v807, 2
    %v809 = vrot.slane %v546, 7
    %v810 = vrot.slane %v809, 2
    %v811 = vrot.slane %v554, 7
    %v812 = vrot.slane %v811, 2
    %v813 = vrot.slane %v562, 7
    %v814 = vrot.slane %v813, 2
    %v815 = vrot.slane %v561, 7
    %v816 = vrot.slane %v815, 2
    %v817 = vrot.slane %v563, 7
    %v818 = vrot.slane %v817, 2
    %v819 = vrot.slane %v571, 7
    %v820 = vrot.slane %v819, 2
    %v821 = vrot.slane %v579, 7
    %v822 = vrot.slane %v821, 2
    %v823 = vrot.slane %v578, 7
    %v824 = vrot.slane %v823, 2
    %v825 = vrot.slane %v580, 7
    %v826 = vrot.slane %v825, 2
    %v827 = vrot.slane %v588, 7
    %v828 = vrot.slane %v827, 2
    %v829 = vrot.slane %v596, 7
    %v830 = vrot.slane %v829, 2
    %v831 = vrot.slane %v595, 7
    %v832 = vrot.slane %v831, 2
    %v833 = vrot.slane %v597, 7
    %v834 = vrot.slane %v833, 2
    %v835 = vrot.slane %v605, 7
    %v836 = vrot.slane %v835, 2
    %v837 = vrot.slane %v613, 7
    %v838 = vrot.slane %v837, 2
    %v839 = vrot.slane %v612, 7
    %v840 = vrot.slane %v839, 2
    %v841 = vrot.slane %v614, 7
    %v842 = vrot.slane %v841, 2
    %v843 = vrot.slane %v622, 7
    %v844 = vrot.slane %v843, 2
    %v845 = vrot.slane %v630, 7
    %v846 = vrot.slane %v845, 2
    %v847 = vrot.slane %v629, 7
    %v848 = vrot.slane %v847, 2
    %v849 = vrot.slane %v631, 7
    %v850 = vrot.slane %v849, 2
    %v851 = vrot.slane %v639, 7
    %v852 = vrot.slane %v851, 2
    %v853 = vrot.slane %v647, 7
    %v854 = vrot.slane %v853, 2
    %v855 = vrot.slane %v646, 7
    %v856 = vrot.slane %v855, 2
    %v857 = vrot.slane %v648, 7
    %v858 = vrot.slane %v857, 2
    %v859 = vrot.slane %v656, 7
    %v860 = vrot.slane %v859, 2
    %v861 = vrot.slane %v664, 7
    %v862 = vrot.slane %v861, 2
    %v863 = vrot.slane %v663, 7
    %v864 = vrot.slane %v863, 2
    %v865 = vrot.slane %v665, 7
    %v866 = vrot.slane %v865, 2
    %v867 = vrot.slane %v673, 7
    %v868 = vrot.slane %v867, 2
    %v869 = vrot.slane %v681, 7
    %v870 = vrot.slane %v869, 2
    %v871 = vrot.slane %v680, 7
    %v872 = vrot.slane %v871, 2
    %v873 = vrot.slane %v682, 7
    %v874 = vrot.slane %v873, 2
    %v939 = vmax.f32 %v418, %v748
    %v940 = vmax.f32 %v426, %v750
    %v941 = vmax.f32 %v425, %v752
    %v942 = vmax.f32 %v427, %v754
    %v943 = vmax.f32 %v435, %v756
    %v944 = vmax.f32 %v443, %v758
    %v945 = vmax.f32 %v442, %v760
    %v946 = vmax.f32 %v444, %v762
    %v947 = vmax.f32 %v452, %v764
    %v948 = vmax.f32 %v460, %v766
    %v949 = vmax.f32 %v459, %v768
    %v950 = vmax.f32 %v461, %v770
    %v951 = vmax.f32 %v469, %v772
    %v952 = vmax.f32 %v477, %v774
    %v953 = vmax.f32 %v476, %v776
    %v954 = vmax.f32 %v478, %v778
    %v955 = vmax.f32 %v486, %v780
    %v956 = vmax.f32 %v494, %v782
    %v957 = vmax.f32 %v493, %v784
    %v958 = vmax.f32 %v495, %v786
    %v959 = vmax.f32 %v503, %v788
    %v960 = vmax.f32 %v511, %v790
    %v961 = vmax.f32 %v510, %v792
    %v962 = vmax.f32 %v512, %v794
    %v963 = vmax.f32 %v520, %v796
    %v964 = vmax.f32 %v528, %v798
    %v965 = vmax.f32 %v527, %v800
    %v966 = vmax.f32 %v529, %v802
    %v967 = vmax.f32 %v537, %v804
    %v968 = vmax.f32 %v545, %v806
    %v969 = vmax.f32 %v544, %v808
    %v970 = vmax.f32 %v546, %v810
    %v971 = vmax.f32 %v554, %v812
    %v972 = vmax.f32 %v562, %v814
    %v973 = vmax.f32 %v561, %v816
    %v974 = vmax.f32 %v563, %v818
    %v975 = vmax.f32 %v571, %v820
    %v976 = vmax.f32 %v579, %v822
    %v977 = vmax.f32 %v578, %v824
    %v978 = vmax.f32 %v580, %v826
    %v979 = vmax.f32 %v588, %v828
    %v980 = vmax.f32 %v596, %v830
    %v981 = vmax.f32 %v595, %v832
    %v982 = vmax.f32 %v597, %v834
    %v983 = vmax.f32 %v605, %v836
    %v984 = vmax.f32 %v613, %v838
    %v985 = vmax.f32 %v612, %v840
    %v986 = vmax.f32 %v614, %v842
    %v987 = vmax.f32 %v622, %v844
    %v988 = vmax.f32 %v630, %v846
    %v989 = vmax.f32 %v629, %v848
    %v990 = vmax.f32 %v631, %v850
    %v991 = vmax.f32 %v639, %v852
    %v992 = vmax.f32 %v647, %v854
    %v993 = vmax.f32 %v646, %v856
    %v994 = vmax.f32 %v648, %v858
    %v995 = vmax.f32 %v656, %v860
    %v996 = vmax.f32 %v664, %v862
    %v997 = vmax.f32 %v663, %v864
    %v998 = vmax.f32 %v665, %v866
    %v999 = vmax.f32 %v673, %v868
    %v1000 = vmax.f32 %v681, %v870
    %v1001 = vmax.f32 %v680, %v872
    %v1002 = vmax.f32 %v682, %v874
    %v1003 = vmax.f32 %v939, %v943
    %v1004 = vmax.f32 %v940, %v944
    %v1005 = vmax.f32 %v941, %v945
    %v1006 = vmax.f32 %v942, %v946
    %v1007 = vmax.f32 %v947, %v951
    %v1008 = vmax.f32 %v948, %v952
    %v1009 = vmax.f32 %v949, %v953
    %v1010 = vmax.f32 %v950, %v954
    %v1011 = vmax.f32 %v955, %v959
    %v1012 = vmax.f32 %v956, %v960
    %v1013 = vmax.f32 %v957, %v961
    %v1014 = vmax.f32 %v958, %v962
    %v1015 = vmax.f32 %v963, %v967
    %v1016 = vmax.f32 %v964, %v968
    %v1017 = vmax.f32 %v965, %v969
    %v1018 = vmax.f32 %v966, %v970
    %v1019 = vmax.f32 %v971, %v975
    %v1020 = vmax.f32 %v972, %v976
    %v1021 = vmax.f32 %v973, %v977
    %v1022 = vmax.f32 %v974, %v978
    %v1023 = vmax.f32 %v979, %v983
    %v1024 = vmax.f32 %v980, %v984
    %v1025 = vmax.f32 %v981, %v985
    %v1026 = vmax.f32 %v982, %v986
    %v1027 = vmax.f32 %v987, %v991
    %v1028 = vmax.f32 %v988, %v992
    %v1029 = vmax.f32 %v989, %v993
    %v1030 = vmax.f32 %v990, %v994
    %v1031 = vmax.f32 %v995, %v999
    %v1032 = vmax.f32 %v996, %v1000
    %v1033 = vmax.f32 %v997, %v1001
    %v1034 = vmax.f32 %v998, %v1002
    %vm1035 = vcmask 521216
    %1036 = vst.msk [vmem:[#allocation2] sm:$0x3f] %vm1035, 0.0
    %1037 = vst.msk [vmem:[#allocation2 + $0x30] sm:$0x3f] %vm1035, 0.0
    %s1038 = scalar_lea.vmem [#allocation2], 40
    %1039 = vst.msk [vmem:[%s1038] sm:$0x3f] %vm1035, 0.0
    %1040 = vst.msk [vmem:[%s1038 + $0x30] sm:$0x3f] %vm1035, 0.0
    %s1041 = scalar_lea.vmem [#allocation2], 8
    %vm1042 = vcmask 516096
    %1043 = vst.msk [vmem:[%s1041] sm:$0x1] %vm1042, 0.0
    %1044 = vst.msk [vmem:[%s1041 + $0x8] sm:$0x1] %vm1042, 0.0
    %1045 = vst.msk [vmem:[%s1041 + $0x10] sm:$0x1] %vm1042, 0.0
    %1046 = vst.msk [vmem:[%s1041 + $0x18] sm:$0x1] %vm1042, 0.0
    %1047 = vst.msk [vmem:[%s1041 + $0x30] sm:$0x1] %vm1042, 0.0
    %1048 = vst.msk [vmem:[%s1041 + $0x38] sm:$0x1] %vm1042, 0.0
    %1049 = vst.msk [vmem:[%s1041 + $0x40] sm:$0x1] %vm1042, 0.0
    %1050 = vst.msk [vmem:[%s1041 + $0x48] sm:$0x1] %vm1042, 0.0
    %1051 = vst.msk [vmem:[%s1041 + $0x5] sm:$0x1] %vm1042, 0.0
    %1052 = vst.msk [vmem:[%s1041 + $0xd] sm:$0x1] %vm1042, 0.0
    %1053 = vst.msk [vmem:[%s1041 + $0x15] sm:$0x1] %vm1042, 0.0
    %1054 = vst.msk [vmem:[%s1041 + $0x1d] sm:$0x1] %vm1042, 0.0
    %1055 = vst.msk [vmem:[%s1041 + $0x35] sm:$0x1] %vm1042, 0.0
    %1056 = vst.msk [vmem:[%s1041 + $0x3d] sm:$0x1] %vm1042, 0.0
    %1057 = vst.msk [vmem:[%s1041 + $0x45] sm:$0x1] %vm1042, 0.0
    %1058 = vst.msk [vmem:[%s1041 + $0x4d] sm:$0x1] %vm1042, 0.0
    %v1091 = vlaneseq
    %v1092 = vshrl.u32 %v1091, 7
    %v1093 = vsub.s32 0, %v1092
    %v1094 = vrot.slane %v1003, %v1093
    %v1095 = vlaneseq
    %v1096 = vshrl.u32 %v1095, 7
    %v1097 = vsub.s32 0, %v1096
    %v1098 = vrot.slane %v1004, %v1097
    %v1099 = vlaneseq
    %v1100 = vshrl.u32 %v1099, 7
    %v1101 = vsub.s32 0, %v1100
    %v1102 = vrot.slane %v1005, %v1101
    %v1103 = vlaneseq
    %v1104 = vshrl.u32 %v1103, 7
    %v1105 = vsub.s32 0, %v1104
    %v1106 = vrot.slane %v1006, %v1105
    %v1107 = vlaneseq
    %v1108 = vshrl.u32 %v1107, 7
    %v1109 = vsub.s32 0, %v1108
    %v1110 = vrot.slane %v1007, %v1109
    %v1111 = vlaneseq
    %v1112 = vshrl.u32 %v1111, 7
    %v1113 = vsub.s32 0, %v1112
    %v1114 = vrot.slane %v1008, %v1113
    %v1115 = vlaneseq
    %v1116 = vshrl.u32 %v1115, 7
    %v1117 = vsub.s32 0, %v1116
    %v1118 = vrot.slane %v1009, %v1117
    %v1119 = vlaneseq
    %v1120 = vshrl.u32 %v1119, 7
    %v1121 = vsub.s32 0, %v1120
    %v1122 = vrot.slane %v1010, %v1121
    %v1123 = vlaneseq
    %v1124 = vshrl.u32 %v1123, 7
    %v1125 = vsub.s32 0, %v1124
    %v1126 = vrot.slane %v1011, %v1125
    %v1127 = vlaneseq
    %v1128 = vshrl.u32 %v1127, 7
    %v1129 = vsub.s32 0, %v1128
    %v1130 = vrot.slane %v1012, %v1129
    %v1131 = vlaneseq
    %v1132 = vshrl.u32 %v1131, 7
    %v1133 = vsub.s32 0, %v1132
    %v1134 = vrot.slane %v1013, %v1133
    %v1135 = vlaneseq
    %v1136 = vshrl.u32 %v1135, 7
    %v1137 = vsub.s32 0, %v1136
    %v1138 = vrot.slane %v1014, %v1137
    %v1139 = vlaneseq
    %v1140 = vshrl.u32 %v1139, 7
    %v1141 = vsub.s32 0, %v1140
    %v1142 = vrot.slane %v1015, %v1141
    %v1143 = vlaneseq
    %v1144 = vshrl.u32 %v1143, 7
    %v1145 = vsub.s32 0, %v1144
    %v1146 = vrot.slane %v1016, %v1145
    %v1147 = vlaneseq
    %v1148 = vshrl.u32 %v1147, 7
    %v1149 = vsub.s32 0, %v1148
    %v1150 = vrot.slane %v1017, %v1149
    %v1151 = vlaneseq
    %v1152 = vshrl.u32 %v1151, 7
    %v1153 = vsub.s32 0, %v1152
    %v1154 = vrot.slane %v1018, %v1153
    %v1155 = vlaneseq
    %v1156 = vshrl.u32 %v1155, 7
    %v1157 = vsub.s32 0, %v1156
    %v1158 = vrot.slane %v1019, %v1157
    %v1159 = vlaneseq
    %v1160 = vshrl.u32 %v1159, 7
    %v1161 = vsub.s32 0, %v1160
    %v1162 = vrot.slane %v1020, %v1161
    %v1163 = vlaneseq
    %v1164 = vshrl.u32 %v1163, 7
    %v1165 = vsub.s32 0, %v1164
    %v1166 = vrot.slane %v1021, %v1165
    %v1167 = vlaneseq
    %v1168 = vshrl.u32 %v1167, 7
    %v1169 = vsub.s32 0, %v1168
    %v1170 = vrot.slane %v1022, %v1169
    %v1171 = vlaneseq
    %v1172 = vshrl.u32 %v1171, 7
    %v1173 = vsub.s32 0, %v1172
    %v1174 = vrot.slane %v1023, %v1173
    %v1175 = vlaneseq
    %v1176 = vshrl.u32 %v1175, 7
    %v1177 = vsub.s32 0, %v1176
    %v1178 = vrot.slane %v1024, %v1177
    %v1179 = vlaneseq
    %v1180 = vshrl.u32 %v1179, 7
    %v1181 = vsub.s32 0, %v1180
    %v1182 = vrot.slane %v1025, %v1181
    %v1183 = vlaneseq
    %v1184 = vshrl.u32 %v1183, 7
    %v1185 = vsub.s32 0, %v1184
    %v1186 = vrot.slane %v1026, %v1185
    %v1187 = vlaneseq
    %v1188 = vshrl.u32 %v1187, 7
    %v1189 = vsub.s32 0, %v1188
    %v1190 = vrot.slane %v1027, %v1189
    %v1191 = vlaneseq
    %v1192 = vshrl.u32 %v1191, 7
    %v1193 = vsub.s32 0, %v1192
    %v1194 = vrot.slane %v1028, %v1193
    %v1195 = vlaneseq
    %v1196 = vshrl.u32 %v1195, 7
    %v1197 = vsub.s32 0, %v1196
    %v1198 = vrot.slane %v1029, %v1197
    %v1199 = vlaneseq
    %v1200 = vshrl.u32 %v1199, 7
    %v1201 = vsub.s32 0, %v1200
    %v1202 = vrot.slane %v1030, %v1201
    %v1203 = vlaneseq
    %v1204 = vshrl.u32 %v1203, 7
    %v1205 = vsub.s32 0, %v1204
    %v1206 = vrot.slane %v1031, %v1205
    %v1207 = vlaneseq
    %v1208 = vshrl.u32 %v1207, 7
    %v1209 = vsub.s32 0, %v1208
    %v1210 = vrot.slane %v1032, %v1209
    %v1211 = vlaneseq
    %v1212 = vshrl.u32 %v1211, 7
    %v1213 = vsub.s32 0, %v1212
    %v1214 = vrot.slane %v1033, %v1213
    %v1215 = vlaneseq
    %v1216 = vshrl.u32 %v1215, 7
    %v1217 = vsub.s32 0, %v1216
    %v1218 = vrot.slane %v1034, %v1217
    %vm1219 = vcmask 1041409
    %v1220 = vsel %vm1219, %v1098, %v1094
    %vm1221 = vcmask 1042434
    %v1222 = vsel %vm1221, %v1102, %v1220
    %vm1223 = vcmask 1043459
    %v1224 = vsel %vm1223, %v1106, %v1222
    %v1225 = vsel %vm1219, %v1114, %v1110
    %v1226 = vsel %vm1221, %v1118, %v1225
    %v1227 = vsel %vm1223, %v1122, %v1226
    %v1228 = vsel %vm1219, %v1130, %v1126
    %v1229 = vsel %vm1221, %v1134, %v1228
    %v1230 = vsel %vm1223, %v1138, %v1229
    %v1231 = vsel %vm1219, %v1146, %v1142
    %v1232 = vsel %vm1221, %v1150, %v1231
    %v1233 = vsel %vm1223, %v1154, %v1232
    %v1234 = vsel %vm1219, %v1162, %v1158
    %v1235 = vsel %vm1221, %v1166, %v1234
    %v1236 = vsel %vm1223, %v1170, %v1235
    %v1237 = vsel %vm1219, %v1178, %v1174
    %v1238 = vsel %vm1221, %v1182, %v1237
    %v1239 = vsel %vm1223, %v1186, %v1238
    %v1240 = vsel %vm1219, %v1194, %v1190
    %v1241 = vsel %vm1221, %v1198, %v1240
    %v1242 = vsel %vm1223, %v1202, %v1241
    %v1243 = vsel %vm1219, %v1210, %v1206
    %v1244 = vsel %vm1221, %v1214, %v1243
    %v1245 = vsel %vm1223, %v1218, %v1244
    %vm1254 = vcmask 519168
    %1255 = vst.msk [vmem:[%s1041 + $0x1] sm:$0xf] %vm1254, %v1224
    %1256 = vst.msk [vmem:[%s1041 + $0x9] sm:$0xf] %vm1254, %v1227
    %1257 = vst.msk [vmem:[%s1041 + $0x11] sm:$0xf] %vm1254, %v1230
    %1258 = vst.msk [vmem:[%s1041 + $0x19] sm:$0xf] %vm1254, %v1233
    %1259 = vst.msk [vmem:[%s1041 + $0x31] sm:$0xf] %vm1254, %v1236
    %1260 = vst.msk [vmem:[%s1041 + $0x39] sm:$0xf] %vm1254, %v1239
    %1261 = vst.msk [vmem:[%s1041 + $0x41] sm:$0xf] %vm1254, %v1242
    %1262 = vst.msk [vmem:[%s1041 + $0x49] sm:$0xf] %vm1254, %v1245
    %v1263 = vld [vmem:[#allocation2] sm:$0x3f]
    %v1264 = vld [vmem:[#allocation2 + $0x8] sm:$0x3f]
    %v1265 = vld [vmem:[#allocation2 + $0x10] sm:$0x3f]
    %v1266 = vld [vmem:[#allocation2 + $0x18] sm:$0x3f]
    %v1267 = vld [vmem:[#allocation2 + $0x20] sm:$0x3f]
    %v1268 = vld [vmem:[#allocation2 + $0x28] sm:$0x3f]
    %v1269 = vld [vmem:[#allocation2 + $0x30] sm:$0x3f]
    %v1270 = vld [vmem:[#allocation2 + $0x38] sm:$0x3f]
    %v1271 = vld [vmem:[#allocation2 + $0x40] sm:$0x3f]
    %v1272 = vld [vmem:[#allocation2 + $0x48] sm:$0x3f]
    %v1273 = vld [vmem:[#allocation2 + $0x50] sm:$0x3f]
    %v1274 = vld [vmem:[#allocation2 + $0x58] sm:$0x3f]
    %v1283 = vcombine.high %v1263, %v1263
    %v1284 = vcombine.high %v1264, %v1264
    %v1285 = vcombine.high %v1265, %v1265
    %v1286 = vcombine.high %v1266, %v1266
    %v1287 = vcombine.high %v1269, %v1269
    %v1288 = vcombine.high %v1270, %v1270
    %v1289 = vcombine.high %v1271, %v1271
    %v1290 = vcombine.high %v1272, %v1272
    %vm1291 = vcmask 1042432
    %vm1292 = vcmask 1046532
    %vm1293 = vmor %vm1291, %vm1292
    %v1294 = vrot.slane %v1263, 5
    %v1295 = vrot.slane %v1294, 4
    %v1296 = vrot.slane %v1283, 5
    %v1297 = vsel %vm1293, %v1295, %v1296
    %v1298 = vrot.slane %v1264, 5
    %v1299 = vrot.slane %v1298, 4
    %v1300 = vrot.slane %v1284, 5
    %v1301 = vsel %vm1293, %v1299, %v1300
    %v1302 = vrot.slane %v1265, 5
    %v1303 = vrot.slane %v1302, 4
    %v1304 = vrot.slane %v1285, 5
    %v1305 = vsel %vm1293, %v1303, %v1304
    %v1306 = vrot.slane %v1266, 5
    %v1307 = vrot.slane %v1306, 4
    %v1308 = vrot.slane %v1286, 5
    %v1309 = vsel %vm1293, %v1307, %v1308
    %v1310 = vrot.slane %v1269, 5
    %v1311 = vrot.slane %v1310, 4
    %v1312 = vrot.slane %v1287, 5
    %v1313 = vsel %vm1293, %v1311, %v1312
    %v1314 = vrot.slane %v1270, 5
    %v1315 = vrot.slane %v1314, 4
    %v1316 = vrot.slane %v1288, 5
    %v1317 = vsel %vm1293, %v1315, %v1316
    %v1318 = vrot.slane %v1271, 5
    %v1319 = vrot.slane %v1318, 4
    %v1320 = vrot.slane %v1289, 5
    %v1321 = vsel %vm1293, %v1319, %v1320
    %v1322 = vrot.slane %v1272, 5
    %v1323 = vrot.slane %v1322, 4
    %v1324 = vrot.slane %v1290, 5
    %v1325 = vsel %vm1293, %v1323, %v1324
    %vm1326 = vcmask 1041408
    %vm1327 = vcmask 1045508
    %vm1328 = vmor %vm1326, %vm1327
    %v1329 = vrot.slane %v1263, 6
    %v1330 = vrot.slane %v1329, 4
    %v1331 = vrot.slane %v1283, 6
    %v1332 = vsel %vm1328, %v1330, %v1331
    %v1333 = vrot.slane %v1264, 6
    %v1334 = vrot.slane %v1333, 4
    %v1335 = vrot.slane %v1284, 6
    %v1336 = vsel %vm1328, %v1334, %v1335
    %v1337 = vrot.slane %v1265, 6
    %v1338 = vrot.slane %v1337, 4
    %v1339 = vrot.slane %v1285, 6
    %v1340 = vsel %vm1328, %v1338, %v1339
    %v1341 = vrot.slane %v1266, 6
    %v1342 = vrot.slane %v1341, 4
    %v1343 = vrot.slane %v1286, 6
    %v1344 = vsel %vm1328, %v1342, %v1343
    %v1345 = vrot.slane %v1269, 6
    %v1346 = vrot.slane %v1345, 4
    %v1347 = vrot.slane %v1287, 6
    %v1348 = vsel %vm1328, %v1346, %v1347
    %v1349 = vrot.slane %v1270, 6
    %v1350 = vrot.slane %v1349, 4
    %v1351 = vrot.slane %v1288, 6
    %v1352 = vsel %vm1328, %v1350, %v1351
    %v1353 = vrot.slane %v1271, 6
    %v1354 = vrot.slane %v1353, 4
    %v1355 = vrot.slane %v1289, 6
    %v1356 = vsel %vm1328, %v1354, %v1355
    %v1357 = vrot.slane %v1272, 6
    %v1358 = vrot.slane %v1357, 4
    %v1359 = vrot.slane %v1290, 6
    %v1360 = vsel %vm1328, %v1358, %v1359
    %v1363 = vcombine.high %v1267, %v1267
    %v1364 = vcombine.high %v1273, %v1273
    %v1365 = vrot.slane %v1267, 5
    %v1366 = vrot.slane %v1365, 4
    %v1367 = vrot.slane %v1363, 5
    %v1368 = vsel %vm1293, %v1366, %v1367
    %v1369 = vrot.slane %v1273, 5
    %v1370 = vrot.slane %v1369, 4
    %v1371 = vrot.slane %v1364, 5
    %v1372 = vsel %vm1293, %v1370, %v1371
    %v1373 = vrot.slane %v1267, 6
    %v1374 = vrot.slane %v1373, 4
    %v1375 = vrot.slane %v1363, 6
    %v1376 = vsel %vm1328, %v1374, %v1375
    %v1377 = vrot.slane %v1273, 6
    %v1378 = vrot.slane %v1377, 4
    %v1379 = vrot.slane %v1364, 6
    %v1380 = vsel %vm1328, %v1378, %v1379
    %v1383 = vcombine.high %v1268, %v1268
    %v1384 = vcombine.high %v1274, %v1274
    %v1385 = vrot.slane %v1268, 5
    %v1386 = vrot.slane %v1385, 4
    %v1387 = vrot.slane %v1383, 5
    %v1388 = vsel %vm1293, %v1386, %v1387
    %v1389 = vrot.slane %v1274, 5
    %v1390 = vrot.slane %v1389, 4
    %v1391 = vrot.slane %v1384, 5
    %v1392 = vsel %vm1293, %v1390, %v1391
    %v1393 = vrot.slane %v1268, 6
    %v1394 = vrot.slane %v1393, 4
    %v1395 = vrot.slane %v1383, 6
    %v1396 = vsel %vm1328, %v1394, %v1395
    %v1397 = vrot.slane %v1274, 6
    %v1398 = vrot.slane %v1397, 4
    %v1399 = vrot.slane %v1384, 6
    %v1400 = vsel %vm1328, %v1398, %v1399
    %v1401 = vcombine.low %v1263, %v1264
    %v1402 = vcombine.low %v1265, %v1266
    %v1403 = vcombine.low %v1269, %v1270
    %v1404 = vcombine.low %v1271, %v1272
    %v1409 = vcombine.low %v1297, %v1301
    %v1410 = vcombine.low %v1305, %v1309
    %v1411 = vcombine.low %v1313, %v1317
    %v1412 = vcombine.low %v1321, %v1325
    %1413 = vrot.lane.b32.xlu0 %v1409, 64
    %v1414 = vpop.permute.xlu0 %1413
    %1415 = vrot.lane.b32.xlu0 %v1410, 64
    %v1416 = vpop.permute.xlu0 %1415
    %1417 = vrot.lane.b32.xlu0 %v1411, 64
    %v1418 = vpop.permute.xlu0 %1417
    %1419 = vrot.lane.b32.xlu0 %v1412, 64
    %v1420 = vpop.permute.xlu0 %1419
    %v1425 = vcombine.low %v1332, %v1336
    %v1426 = vcombine.low %v1340, %v1344
    %v1427 = vcombine.low %v1348, %v1352
    %v1428 = vcombine.low %v1356, %v1360
    %v1433 = vcombine.low %v1264, %v1265
    %v1434 = vcombine.low %v1266, %v1267
    %v1435 = vcombine.low %v1270, %v1271
    %v1436 = vcombine.low %v1272, %v1273
    %1437 = vrot.lane.b32.xlu0 %v1433, 64
    %v1438 = vpop.permute.xlu0 %1437
    %1439 = vrot.lane.b32.xlu0 %v1434, 64
    %v1440 = vpop.permute.xlu0 %1439
    %1441 = vrot.lane.b32.xlu0 %v1435, 64
    %v1442 = vpop.permute.xlu0 %1441
    %1443 = vrot.lane.b32.xlu0 %v1436, 64
    %v1444 = vpop.permute.xlu0 %1443
    %v1449 = vcombine.low %v1301, %v1305
    %v1450 = vcombine.low %v1309, %v1368
    %v1451 = vcombine.low %v1317, %v1321
    %v1452 = vcombine.low %v1325, %v1372
    %v1457 = vcombine.low %v1336, %v1340
    %v1458 = vcombine.low %v1344, %v1376
    %v1459 = vcombine.low %v1352, %v1356
    %v1460 = vcombine.low %v1360, %v1380
    %1461 = vrot.lane.b32.xlu0 %v1457, 64
    %v1462 = vpop.permute.xlu0 %1461
    %1463 = vrot.lane.b32.xlu0 %v1458, 64
    %v1464 = vpop.permute.xlu0 %1463
    %1465 = vrot.lane.b32.xlu0 %v1459, 64
    %v1466 = vpop.permute.xlu0 %1465
    %1467 = vrot.lane.b32.xlu0 %v1460, 64
    %v1468 = vpop.permute.xlu0 %1467
    %v1473 = vcombine.low %v1267, %v1268
    %v1474 = vcombine.low %v1273, %v1274
    %v1477 = vcombine.low %v1368, %v1388
    %v1478 = vcombine.low %v1372, %v1392
    %1479 = vrot.lane.b32.xlu0 %v1477, 64
    %v1480 = vpop.permute.xlu0 %1479
    %1481 = vrot.lane.b32.xlu0 %v1478, 64
    %v1482 = vpop.permute.xlu0 %1481
    %v1485 = vcombine.low %v1376, %v1396
    %v1486 = vcombine.low %v1380, %v1400
    %vm1489 = vcmask 523264
    %v1490 = vsel %vm1489, %v1401, %v1414
    %v1491 = vsel %vm1489, %v1402, %v1416
    %v1492 = vsel %vm1489, %v1403, %v1418
    %v1493 = vsel %vm1489, %v1404, %v1420
    %v1494 = vsel %vm1489, %v1425, %v1438
    %v1495 = vsel %vm1489, %v1426, %v1440
    %v1496 = vsel %vm1489, %v1427, %v1442
    %v1497 = vsel %vm1489, %v1428, %v1444
    %v1498 = vsel %vm1489, %v1449, %v1462
    %v1499 = vsel %vm1489, %v1450, %v1464
    %v1500 = vsel %vm1489, %v1451, %v1466
    %v1501 = vsel %vm1489, %v1452, %v1468
    %v1502 = vsel %vm1489, %v1473, %v1480
    %v1503 = vsel %vm1489, %v1474, %v1482
    %v1504 = vpack.c.bf16 %v1491, %v1490
    %v1505 = vpack.c.bf16 %v1495, %v1494
    %v1506 = vpack.c.bf16 %v1499, %v1498
    %v1507 = vpack.c.bf16 %v1502, %v1491
    %v1508 = vpack.c.bf16 %v1485, %v1426
    %v1509 = vpack.c.bf16 %v1493, %v1492
    %v1510 = vpack.c.bf16 %v1497, %v1496
    %v1511 = vpack.c.bf16 %v1501, %v1500
    %v1512 = vpack.c.bf16 %v1503, %v1493
    %v1513 = vpack.c.bf16 %v1486, %v1428
    %v1514 = vld [vmem:[#allocation9] sm:$0xf]
    %v1515 = vld [vmem:[#allocation9 + $0x4] sm:$0xf]
    %v1516 = vld [vmem:[#allocation9 + $0x8] sm:$0xf]
    %v1517 = vld [vmem:[#allocation9 + $0xc] sm:$0xf]
    %v1518 = vld [vmem:[#allocation9 + $0x10] sm:$0xf]
    %v1519 = vld [vmem:[#allocation9 + $0x14] sm:$0xf]
    %v1520 = vld [vmem:[#allocation9 + $0x18] sm:$0xf]
    %v1521 = vld [vmem:[#allocation9 + $0x1c] sm:$0xf]
    %v1522 = vld [vmem:[#allocation9 + $0x20] sm:$0xf]
    %v1523 = vld [vmem:[#allocation9 + $0x24] sm:$0xf]
    %v1524 = vld [vmem:[#allocation9 + $0x28] sm:$0xf]
    %v1525 = vld [vmem:[#allocation9 + $0x2c] sm:$0xf]
    %v1526 = vld [vmem:[#allocation9 + $0x30] sm:$0xf]
    %v1527 = vld [vmem:[#allocation9 + $0x34] sm:$0xf]
    %v1528 = vld [vmem:[#allocation9 + $0x38] sm:$0xf]
    %v1529 = vld [vmem:[#allocation9 + $0x3c] sm:$0xf]
    %v1530 = vld [vmem:[#allocation9 + $0x40] sm:$0xf]
    %v1531 = vld [vmem:[#allocation9 + $0x44] sm:$0xf]
    %v1532 = vld [vmem:[#allocation9 + $0x48] sm:$0xf]
    %v1533 = vld [vmem:[#allocation9 + $0x4c] sm:$0xf]
    %v1534 = vld [vmem:[#allocation9 + $0x50] sm:$0xf]
    %v1535 = vld [vmem:[#allocation9 + $0x54] sm:$0xf]
    %v1536 = vld [vmem:[#allocation9 + $0x58] sm:$0xf]
    %v1537 = vld [vmem:[#allocation9 + $0x5c] sm:$0xf]
    %v1538 = vld [vmem:[#allocation9 + $0x60] sm:$0xf]
    %v1539 = vld [vmem:[#allocation9 + $0x64] sm:$0xf]
    %v1540 = vld [vmem:[#allocation9 + $0x68] sm:$0xf]
    %v1541 = vld [vmem:[#allocation9 + $0x6c] sm:$0xf]
    %v1542 = vld [vmem:[#allocation9 + $0x70] sm:$0xf]
    %v1543 = vld [vmem:[#allocation9 + $0x74] sm:$0xf]
    %v1544 = vld [vmem:[#allocation9 + $0x78] sm:$0xf]
    %v1545 = vld [vmem:[#allocation9 + $0x7c] sm:$0xf]
    %v1546 = vld [vmem:[#allocation9 + $0x80] sm:$0xf]
    %v1547 = vld [vmem:[#allocation9 + $0x84] sm:$0xf]
    %v1548 = vld [vmem:[#allocation9 + $0x88] sm:$0xf]
    %v1549 = vld [vmem:[#allocation9 + $0x8c] sm:$0xf]
    %v1550 = vld [vmem:[#allocation9 + $0x90] sm:$0xf]
    %v1551 = vld [vmem:[#allocation9 + $0x94] sm:$0xf]
    %v1552 = vld [vmem:[#allocation9 + $0x98] sm:$0xf]
    %v1553 = vld [vmem:[#allocation9 + $0x9c] sm:$0xf]
    %v1554 = vld [vmem:[#allocation9 + $0xa0] sm:$0xf]
    %v1555 = vld [vmem:[#allocation9 + $0xa4] sm:$0xf]
    %v1556 = vld [vmem:[#allocation9 + $0xa8] sm:$0xf]
    %v1557 = vld [vmem:[#allocation9 + $0xac] sm:$0xf]
    %v1558 = vld [vmem:[#allocation9 + $0xb0] sm:$0xf]
    %v1559 = vld [vmem:[#allocation9 + $0xb4] sm:$0xf]
    %v1560 = vld [vmem:[#allocation9 + $0xb8] sm:$0xf]
    %v1561 = vld [vmem:[#allocation9 + $0xbc] sm:$0xf]
    %v1562 = vld [vmem:[#allocation9 + $0xc0] sm:$0xf]
    %v1563 = vld [vmem:[#allocation9 + $0xc4] sm:$0xf]
    %v1564 = vld [vmem:[#allocation9 + $0xc8] sm:$0xf]
    %v1565 = vld [vmem:[#allocation9 + $0xcc] sm:$0xf]
    %v1566 = vld [vmem:[#allocation9 + $0xd0] sm:$0xf]
    %v1567 = vld [vmem:[#allocation9 + $0xd4] sm:$0xf]
    %v1568 = vld [vmem:[#allocation9 + $0xd8] sm:$0xf]
    %v1569 = vld [vmem:[#allocation9 + $0xdc] sm:$0xf]
    %v1570 = vld [vmem:[#allocation9 + $0xe0] sm:$0xf]
    %v1571 = vld [vmem:[#allocation9 + $0xe4] sm:$0xf]
    %v1572 = vld [vmem:[#allocation9 + $0xe8] sm:$0xf]
    %v1573 = vld [vmem:[#allocation9 + $0xec] sm:$0xf]
    %v1574 = vld [vmem:[#allocation9 + $0xf0] sm:$0xf]
    %v1575 = vld [vmem:[#allocation9 + $0xf4] sm:$0xf]
    %v1576 = vld [vmem:[#allocation9 + $0xf8] sm:$0xf]
    %v1577 = vld [vmem:[#allocation9 + $0xfc] sm:$0xf]
    %v1578 = vld [vmem:[#allocation9 + $0x100] sm:$0xf]
    %v1579 = vld [vmem:[#allocation9 + $0x104] sm:$0xf]
    %v1580 = vld [vmem:[#allocation9 + $0x108] sm:$0xf]
    %v1581 = vld [vmem:[#allocation9 + $0x10c] sm:$0xf]
    %v1582 = vld [vmem:[#allocation9 + $0x110] sm:$0xf]
    %v1583 = vld [vmem:[#allocation9 + $0x114] sm:$0xf]
    %v1584 = vld [vmem:[#allocation9 + $0x118] sm:$0xf]
    %v1585 = vld [vmem:[#allocation9 + $0x11c] sm:$0xf]
    %v1586 = vld [vmem:[#allocation10] sm:$0x1]
    %v1588 = vlaneseq
    %v1589 = vshrl.u32 %v1588, 7
    %v1590 = vsub.s32 0, %v1589
    %v1591 = vrot.slane %v1586, %v1590
    %v1665 = vunpack.c.l.b16 %v1514
    %v1666 = vunpack.c.l.b16 %v1515
    %v1667 = vunpack.c.l.b16 %v1516
    %v1668 = vunpack.c.l.b16 %v1517
    %v1669 = vunpack.c.l.b16 %v1518
    %v1670 = vunpack.c.l.b16 %v1519
    %v1671 = vunpack.c.l.b16 %v1520
    %v1672 = vunpack.c.l.b16 %v1521
    %v1673 = vunpack.c.l.b16 %v1522
    %v1674 = vunpack.c.l.b16 %v1523
    %v1675 = vunpack.c.l.b16 %v1524
    %v1676 = vunpack.c.l.b16 %v1525
    %v1677 = vunpack.c.l.b16 %v1526
    %v1678 = vunpack.c.l.b16 %v1527
    %v1679 = vunpack.c.l.b16 %v1528
    %v1680 = vunpack.c.l.b16 %v1529
    %v1681 = vunpack.c.l.b16 %v1530
    %v1682 = vunpack.c.l.b16 %v1531
    %v1683 = vunpack.c.l.b16 %v1532
    %v1684 = vunpack.c.l.b16 %v1533
    %v1685 = vunpack.c.l.b16 %v1534
    %v1686 = vunpack.c.l.b16 %v1535
    %v1687 = vunpack.c.l.b16 %v1536
    %v1688 = vunpack.c.l.b16 %v1537
    %v1689 = vunpack.c.l.b16 %v1538
    %v1690 = vunpack.c.l.b16 %v1539
    %v1691 = vunpack.c.l.b16 %v1540
    %v1692 = vunpack.c.l.b16 %v1541
    %v1693 = vunpack.c.l.b16 %v1542
    %v1694 = vunpack.c.l.b16 %v1543
    %v1695 = vunpack.c.l.b16 %v1544
    %v1696 = vunpack.c.l.b16 %v1545
    %v1697 = vunpack.c.l.b16 %v1546
    %v1698 = vunpack.c.l.b16 %v1547
    %v1699 = vunpack.c.l.b16 %v1548
    %v1700 = vunpack.c.l.b16 %v1549
    %v1701 = vunpack.c.l.b16 %v1550
    %v1702 = vunpack.c.l.b16 %v1551
    %v1703 = vunpack.c.l.b16 %v1552
    %v1704 = vunpack.c.l.b16 %v1553
    %v1705 = vunpack.c.l.b16 %v1554
    %v1706 = vunpack.c.l.b16 %v1555
    %v1707 = vunpack.c.l.b16 %v1556
    %v1708 = vunpack.c.l.b16 %v1557
    %v1709 = vunpack.c.l.b16 %v1558
    %v1710 = vunpack.c.l.b16 %v1559
    %v1711 = vunpack.c.l.b16 %v1560
    %v1712 = vunpack.c.l.b16 %v1561
    %v1713 = vunpack.c.l.b16 %v1562
    %v1714 = vunpack.c.l.b16 %v1563
    %v1715 = vunpack.c.l.b16 %v1564
    %v1716 = vunpack.c.l.b16 %v1565
    %v1717 = vunpack.c.l.b16 %v1566
    %v1718 = vunpack.c.l.b16 %v1567
    %v1719 = vunpack.c.l.b16 %v1568
    %v1720 = vunpack.c.l.b16 %v1569
    %v1721 = vunpack.c.l.b16 %v1570
    %v1722 = vunpack.c.l.b16 %v1571
    %v1723 = vunpack.c.l.b16 %v1572
    %v1724 = vunpack.c.l.b16 %v1573
    %v1725 = vunpack.c.l.b16 %v1574
    %v1726 = vunpack.c.l.b16 %v1575
    %v1727 = vunpack.c.l.b16 %v1576
    %v1728 = vunpack.c.l.b16 %v1577
    %v1729 = vunpack.c.l.b16 %v1578
    %v1730 = vunpack.c.l.b16 %v1579
    %v1731 = vunpack.c.l.b16 %v1580
    %v1732 = vunpack.c.l.b16 %v1581
    %v1733 = vunpack.c.l.b16 %v1582
    %v1734 = vunpack.c.l.b16 %v1583
    %v1735 = vunpack.c.l.b16 %v1584
    %v1736 = vunpack.c.l.b16 %v1585
    %v1737 = vpack.c.b16 %v1666, %v1665
    %v1738 = vpack.c.b16 %v1668, %v1667
    %v1739 = vpack.c.b16 %v1670, %v1669
    %v1740 = vpack.c.b16 %v1672, %v1671
    %v1741 = vpack.c.b16 %v1674, %v1673
    %v1742 = vpack.c.b16 %v1676, %v1675
    %v1743 = vpack.c.b16 %v1678, %v1677
    %v1744 = vpack.c.b16 %v1680, %v1679
    %v1745 = vpack.c.b16 %v1682, %v1681
    %v1746 = vpack.c.b16 %v1684, %v1683
    %v1747 = vpack.c.b16 %v1686, %v1685
    %v1748 = vpack.c.b16 %v1688, %v1687
    %v1749 = vpack.c.b16 %v1690, %v1689
    %v1750 = vpack.c.b16 %v1692, %v1691
    %v1751 = vpack.c.b16 %v1694, %v1693
    %v1752 = vpack.c.b16 %v1696, %v1695
    %v1753 = vpack.c.b16 %v1698, %v1697
    %v1754 = vpack.c.b16 %v1700, %v1699
    %v1755 = vpack.c.b16 %v1702, %v1701
    %v1756 = vpack.c.b16 %v1704, %v1703
    %v1757 = vpack.c.b16 %v1706, %v1705
    %v1758 = vpack.c.b16 %v1708, %v1707
    %v1759 = vpack.c.b16 %v1710, %v1709
    %v1760 = vpack.c.b16 %v1712, %v1711
    %v1761 = vpack.c.b16 %v1714, %v1713
    %v1762 = vpack.c.b16 %v1716, %v1715
    %v1763 = vpack.c.b16 %v1718, %v1717
    %v1764 = vpack.c.b16 %v1720, %v1719
    %v1765 = vpack.c.b16 %v1722, %v1721
    %v1766 = vpack.c.b16 %v1724, %v1723
    %v1767 = vpack.c.b16 %v1726, %v1725
    %v1768 = vpack.c.b16 %v1728, %v1727
    %v1769 = vpack.c.b16 %v1730, %v1729
    %v1770 = vpack.c.b16 %v1732, %v1731
    %v1771 = vpack.c.b16 %v1734, %v1733
    %v1772 = vpack.c.b16 %v1736, %v1735
    %v1810 = vsel %vm1489, %v1508, 0
    %v1813 = vsel %vm1489, %v1513, 0
    %1815 = vmatprep.subr.bf16.mxu0 0
    %1816 = vmatpush1.bf16.msra.mxu0 %v1737
    %1817 = vmatprep.subr.bf16.mxu0 0
    %1818 = vmatpush1.bf16.msra.mxu0 %v1738
    %1819 = vmatprep.subr.bf16.mxu0 0
    %1820 = vmatpush1.bf16.msra.mxu0 %v1739
    %1821 = vmatprep.subr.bf16.mxu0 0
    %1822 = vmatpush1.bf16.msra.mxu0 %v1740
    %1823 = vmatprep.subr.bf16.mxu0 0
    %1824 = vmatpush1.bf16.msra.mxu0 %v1741
    %1825 = vmatprep.subr.bf16.mxu0 0
    %1826 = vmatpush1.bf16.msra.mxu0 %v1742
    %1827 = vmatprep.subr.bf16.mxu0 0
    %1828 = vmatpush1.bf16.msra.mxu0 %v1743
    %1829 = vmatprep.subr.bf16.mxu0 0
    %1830 = vmatpush1.bf16.msra.mxu0 %v1744
    %1831 = vmatprep.subr.bf16.mxu0 0
    %1832 = vmatpush1.bf16.msra.mxu0 %v1745
    %1833 = vmatprep.subr.bf16.mxu0 0
    %1834 = vmatpush1.bf16.msra.mxu0 %v1746
    %1835 = vmatprep.subr.bf16.mxu0 0
    %1836 = vmatpush1.bf16.msra.mxu0 %v1747
    %1837 = vmatprep.subr.bf16.mxu0 0
    %1838 = vmatpush1.bf16.msra.mxu0 %v1748
    %1839 = vmatprep.subr.bf16.mxu0 0
    %1840 = vmatpush1.bf16.msra.mxu0 %v1749
    %1841 = vmatprep.subr.bf16.mxu0 0
    %1842 = vmatpush1.bf16.msra.mxu0 %v1750
    %1843 = vmatprep.subr.bf16.mxu0 0
    %1844 = vmatpush1.bf16.msra.mxu0 %v1751
    %1845 = vmatprep.subr.bf16.mxu0 0
    %1846 = vmatpush1.bf16.msra.mxu0 %v1752
    %1847 = vmatprep.mubr.bf16.mxu0 %v1505
    %1848 = vmatmul.mubr.bf16.gmra.mrb[0].mxu0 %v1504
    %v1849 = vpop.f32.mrb[0].mxu0
    %v1850 = vadd.f32 %v1591, %v1849
    %v1851 = vpop.f32.mrb[0].mxu0
    %v1852 = vpop.f32.mrb[0].mxu0
    %v1853 = vadd.f32 %v1591, %v1852
    %v1854 = vpop.f32.mrb[0].mxu0
    %1855 = vmatprep.mubr.bf16.mxu0 %v1510
    %1856 = vmatmul.mubr.bf16.gmra.mrb[0].mxu0 %v1509
    %v1857 = vpop.f32.mrb[0].mxu0
    %v1858 = vadd.f32 %v1591, %v1857
    %v1859 = vpop.f32.mrb[0].mxu0
    %v1860 = vpop.f32.mrb[0].mxu0
    %v1861 = vadd.f32 %v1591, %v1860
    %v1862 = vpop.f32.mrb[0].mxu0
    %1863 = vdwg.mxu0
    %1864 = vmatprep.subr.bf16.mxu0 0
    %1865 = vmatpush1.bf16.msra.mxu0 %v1753
    %1866 = vmatprep.subr.bf16.mxu0 0
    %1867 = vmatpush1.bf16.msra.mxu0 %v1754
    %1868 = vmatprep.subr.bf16.mxu0 0
    %1869 = vmatpush1.bf16.msra.mxu0 %v1755
    %1870 = vmatprep.subr.bf16.mxu0 0
    %1871 = vmatpush1.bf16.msra.mxu0 %v1756
    %1872 = vmatprep.subr.bf16.mxu0 0
    %1873 = vmatpush1.bf16.msra.mxu0 %v1757
    %1874 = vmatprep.subr.bf16.mxu0 0
    %1875 = vmatpush1.bf16.msra.mxu0 %v1758
    %1876 = vmatprep.subr.bf16.mxu0 0
    %1877 = vmatpush1.bf16.msra.mxu0 %v1759
    %1878 = vmatprep.subr.bf16.mxu0 0
    %1879 = vmatpush1.bf16.msra.mxu0 %v1760
    %1880 = vmatprep.subr.bf16.mxu0 0
    %1881 = vmatpush1.bf16.msra.mxu0 %v1761
    %1882 = vmatprep.subr.bf16.mxu0 0
    %1883 = vmatpush1.bf16.msra.mxu0 %v1762
    %1884 = vmatprep.subr.bf16.mxu0 0
    %1885 = vmatpush1.bf16.msra.mxu0 %v1763
    %1886 = vmatprep.subr.bf16.mxu0 0
    %1887 = vmatpush1.bf16.msra.mxu0 %v1764
    %1888 = vmatprep.subr.bf16.mxu0 0
    %1889 = vmatpush1.bf16.msra.mxu0 %v1765
    %1890 = vmatprep.subr.bf16.mxu0 0
    %1891 = vmatpush1.bf16.msra.mxu0 %v1766
    %1892 = vmatprep.subr.bf16.mxu0 0
    %1893 = vmatpush1.bf16.msra.mxu0 %v1767
    %1894 = vmatprep.subr.bf16.mxu0 0
    %1895 = vmatpush1.bf16.msra.mxu0 %v1768
    %1896 = vmatprep.mubr.bf16.mxu0 %v1507
    %1897 = vmatmul.mubr.bf16.gmra.mrb[0].mxu0 %v1506
    %v1898 = vpop.f32.mrb[0].mxu0
    %v1899 = vadd.f32 %v1850, %v1898
    %v1900 = vpop.f32.mrb[0].mxu0
    %v1901 = vpop.f32.mrb[0].mxu0
    %v1902 = vadd.f32 %v1853, %v1901
    %v1903 = vpop.f32.mrb[0].mxu0
    %1904 = vmatprep.mubr.bf16.mxu0 %v1512
    %1905 = vmatmul.mubr.bf16.gmra.mrb[0].mxu0 %v1511
    %v1906 = vpop.f32.mrb[0].mxu0
    %v1907 = vadd.f32 %v1858, %v1906
    %v1908 = vpop.f32.mrb[0].mxu0
    %v1909 = vpop.f32.mrb[0].mxu0
    %v1910 = vadd.f32 %v1861, %v1909
    %v1911 = vpop.f32.mrb[0].mxu0
    %1912 = vdwg.mxu0
    %1913 = vmatprep.subr.bf16.mxu0 0
    %1914 = vmatpush1.bf16.msra.mxu0 %v1769
    %1915 = vmatprep.subr.bf16.mxu0 0
    %1916 = vmatpush1.bf16.msra.mxu0 %v1770
    %1917 = vmatprep.subr.bf16.mxu0 0
    %1918 = vmatpush1.bf16.msra.mxu0 %v1771
    %1919 = vmatprep.subr.bf16.mxu0 0
    %1920 = vmatpush1.bf16.msra.mxu0 %v1772
    %1921 = vmatprep.subr.bf16.mxu0 0
    %1922 = vmatpush1.bf16.msra.mxu0 0
    %1923 = vmatprep.subr.bf16.mxu0 0
    %1924 = vmatpush1.bf16.msra.mxu0 0
    %1925 = vmatprep.subr.bf16.mxu0 0
    %1926 = vmatpush1.bf16.msra.mxu0 0
    %1927 = vmatprep.subr.bf16.mxu0 0
    %1928 = vmatpush1.bf16.msra.mxu0 0
    %1929 = vmatprep.subr.bf16.mxu0 0
    %1930 = vmatpush1.bf16.msra.mxu0 0
    %1931 = vmatprep.subr.bf16.mxu0 0
    %1932 = vmatpush1.bf16.msra.mxu0 0
    %1933 = vmatprep.subr.bf16.mxu0 0
    %1934 = vmatpush1.bf16.msra.mxu0 0
    %1935 = vmatprep.subr.bf16.mxu0 0
    %1936 = vmatpush1.bf16.msra.mxu0 0
    %1937 = vmatprep.subr.bf16.mxu0 0
    %1938 = vmatpush1.bf16.msra.mxu0 0
    %1939 = vmatprep.subr.bf16.mxu0 0
    %1940 = vmatpush1.bf16.msra.mxu0 0
    %1941 = vmatprep.subr.bf16.mxu0 0
    %1942 = vmatpush1.bf16.msra.mxu0 0
    %1943 = vmatprep.subr.bf16.mxu0 0
    %1944 = vmatpush1.bf16.msra.mxu0 0
    %1945 = vmatprep.mubr.bf16.mxu0 0
    %1946 = vmatmul.mubr.bf16.gmra.mrb[0].mxu0 %v1810
    %v1947 = vpop.f32.mrb[0].mxu0
    %v1948 = vadd.f32 %v1899, %v1947
    %v1949 = vpop.f32.mrb[0].mxu0
    %v1950 = vpop.f32.mrb[0].mxu0
    %v1951 = vadd.f32 %v1902, %v1950
    %v1952 = vpop.f32.mrb[0].mxu0
    %1953 = vmatprep.mubr.bf16.mxu0 0
    %1954 = vmatmul.mubr.bf16.gmra.mrb[0].mxu0 %v1813
    %v1955 = vpop.f32.mrb[0].mxu0
    %v1956 = vadd.f32 %v1907, %v1955
    %v1957 = vpop.f32.mrb[0].mxu0
    %v1958 = vpop.f32.mrb[0].mxu0
    %v1959 = vadd.f32 %v1910, %v1958
    %v1960 = vpop.f32.mrb[0].mxu0
    %1961 = vdwg.mxu0
    %v1962 = vmax.f32 %v1948, 0.0
    %v1963 = vmax.f32 %v1951, 0.0
    %v1964 = vmax.f32 %v1956, 0.0
    %v1965 = vmax.f32 %v1959, 0.0
    %v1970 = vcombine.high %v1962, %v1962
    %v1972 = vunpack.c.l.s4 1983009808
    %v1973 = vunpack.c.0.s8 %v1972
    %v1974 = vlaneseq
    %v1975 = vshrl.u32 %v1974, 7
    %v1976 = vsub.s32 %v1973, %v1975
    %v1977 = vrot.slane %v1962, %v1976
    %v1979 = vunpack.c.l.s4 1983009808
    %v1980 = vunpack.c.0.s8 %v1979
    %v1981 = vlaneseq
    %v1982 = vshrl.u32 %v1981, 7
    %v1983 = vsub.s32 %v1980, %v1982
    %v1984 = vrot.slane %v1970, %v1983
    %v1985 = vcombine.high %v1977, %v1977
    %v1986 = vcombine.high %v1984, %v1984
    %v1987 = vcombine.high %v1963, %v1963
    %v1989 = vunpack.c.l.s4 1983009808
    %v1990 = vunpack.c.0.s8 %v1989
    %v1991 = vlaneseq
    %v1992 = vshrl.u32 %v1991, 7
    %v1993 = vsub.s32 %v1990, %v1992
    %v1994 = vrot.slane %v1963, %v1993
    %v1996 = vunpack.c.l.s4 1983009808
    %v1997 = vunpack.c.0.s8 %v1996
    %v1998 = vlaneseq
    %v1999 = vshrl.u32 %v1998, 7
    %v2000 = vsub.s32 %v1997, %v1999
    %v2001 = vrot.slane %v1987, %v2000
    %v2002 = vcombine.high %v1994, %v1994
    %v2003 = vcombine.high %v2001, %v2001
    %v2004 = vcombine.high %v1964, %v1964
    %v2006 = vunpack.c.l.s4 1983009808
    %v2007 = vunpack.c.0.s8 %v2006
    %v2008 = vlaneseq
    %v2009 = vshrl.u32 %v2008, 7
    %v2010 = vsub.s32 %v2007, %v2009
    %v2011 = vrot.slane %v1964, %v2010
    %v2013 = vunpack.c.l.s4 1983009808
    %v2014 = vunpack.c.0.s8 %v2013
    %v2015 = vlaneseq
    %v2016 = vshrl.u32 %v2015, 7
    %v2017 = vsub.s32 %v2014, %v2016
    %v2018 = vrot.slane %v2004, %v2017
    %v2019 = vcombine.high %v2011, %v2011
    %v2020 = vcombine.high %v2018, %v2018
    %v2021 = vcombine.high %v1965, %v1965
    %v2023 = vunpack.c.l.s4 1983009808
    %v2024 = vunpack.c.0.s8 %v2023
    %v2025 = vlaneseq
    %v2026 = vshrl.u32 %v2025, 7
    %v2027 = vsub.s32 %v2024, %v2026
    %v2028 = vrot.slane %v1965, %v2027
    %v2030 = vunpack.c.l.s4 1983009808
    %v2031 = vunpack.c.0.s8 %v2030
    %v2032 = vlaneseq
    %v2033 = vshrl.u32 %v2032, 7
    %v2034 = vsub.s32 %v2031, %v2033
    %v2035 = vrot.slane %v2021, %v2034
    %v2036 = vcombine.high %v2028, %v2028
    %v2037 = vcombine.high %v2035, %v2035
    %v2054 = vrot.slane %v1977, 7
    %v2055 = vrot.slane %v2054, 2
    %v2056 = vrot.slane %v1985, 7
    %v2057 = vrot.slane %v2056, 2
    %v2058 = vrot.slane %v1984, 7
    %v2059 = vrot.slane %v2058, 2
    %v2060 = vrot.slane %v1986, 7
    %v2061 = vrot.slane %v2060, 2
    %v2062 = vrot.slane %v1994, 7
    %v2063 = vrot.slane %v2062, 2
    %v2064 = vrot.slane %v2002, 7
    %v2065 = vrot.slane %v2064, 2
    %v2066 = vrot.slane %v2001, 7
    %v2067 = vrot.slane %v2066, 2
    %v2068 = vrot.slane %v2003, 7
    %v2069 = vrot.slane %v2068, 2
    %v2070 = vrot.slane %v2011, 7
    %v2071 = vrot.slane %v2070, 2
    %v2072 = vrot.slane %v2019, 7
    %v2073 = vrot.slane %v2072, 2
    %v2074 = vrot.slane %v2018, 7
    %v2075 = vrot.slane %v2074, 2
    %v2076 = vrot.slane %v2020, 7
    %v2077 = vrot.slane %v2076, 2
    %v2078 = vrot.slane %v2028, 7
    %v2079 = vrot.slane %v2078, 2
    %v2080 = vrot.slane %v2036, 7
    %v2081 = vrot.slane %v2080, 2
    %v2082 = vrot.slane %v2035, 7
    %v2083 = vrot.slane %v2082, 2
    %v2084 = vrot.slane %v2037, 7
    %v2085 = vrot.slane %v2084, 2
    %v2102 = vmax.f32 %v1977, %v2055
    %v2103 = vmax.f32 %v1985, %v2057
    %v2104 = vmax.f32 %v1984, %v2059
    %v2105 = vmax.f32 %v1986, %v2061
    %v2106 = vmax.f32 %v1994, %v2063
    %v2107 = vmax.f32 %v2002, %v2065
    %v2108 = vmax.f32 %v2001, %v2067
    %v2109 = vmax.f32 %v2003, %v2069
    %v2110 = vmax.f32 %v2011, %v2071
    %v2111 = vmax.f32 %v2019, %v2073
    %v2112 = vmax.f32 %v2018, %v2075
    %v2113 = vmax.f32 %v2020, %v2077
    %v2114 = vmax.f32 %v2028, %v2079
    %v2115 = vmax.f32 %v2036, %v2081
    %v2116 = vmax.f32 %v2035, %v2083
    %v2117 = vmax.f32 %v2037, %v2085
    %v2118 = vmax.f32 %v2102, %v2104
    %v2119 = vmax.f32 %v2103, %v2105
    %v2120 = vmax.f32 %v2106, %v2108
    %v2121 = vmax.f32 %v2107, %v2109
    %v2122 = vmax.f32 %v2110, %v2112
    %v2123 = vmax.f32 %v2111, %v2113
    %v2124 = vmax.f32 %v2114, %v2116
    %v2125 = vmax.f32 %v2115, %v2117
    %2126 = vst [vmem:[#allocation3] sm:$0xf] 0.0
    %2127 = vst [vmem:[#allocation3 + $0x10] sm:$0xf] 0.0
    %s2128 = scalar_lea.vmem [#allocation3], 12
    %2129 = vst [vmem:[%s2128] sm:$0xf] 0.0
    %2130 = vst [vmem:[%s2128 + $0x10] sm:$0xf] 0.0
    %s2131 = scalar_lea.vmem [#allocation3], 4
    %2132 = vst [vmem:[%s2131] sm:$0x1] 0.0
    %2133 = vst [vmem:[%s2131 + $0x4] sm:$0x1] 0.0
    %2134 = vst [vmem:[%s2131 + $0x10] sm:$0x1] 0.0
    %2135 = vst [vmem:[%s2131 + $0x14] sm:$0x1] 0.0
    %2136 = vst [vmem:[%s2131 + $0x3] sm:$0x1] 0.0
    %2137 = vst [vmem:[%s2131 + $0x7] sm:$0x1] 0.0
    %2138 = vst [vmem:[%s2131 + $0x13] sm:$0x1] 0.0
    %2139 = vst [vmem:[%s2131 + $0x17] sm:$0x1] 0.0
    %v2148 = vlaneseq
    %v2149 = vshrl.u32 %v2148, 7
    %v2150 = vsub.s32 0, %v2149
    %v2151 = vrot.slane %v2118, %v2150
    %v2152 = vlaneseq
    %v2153 = vshrl.u32 %v2152, 7
    %v2154 = vsub.s32 0, %v2153
    %v2155 = vrot.slane %v2119, %v2154
    %v2156 = vlaneseq
    %v2157 = vshrl.u32 %v2156, 7
    %v2158 = vsub.s32 0, %v2157
    %v2159 = vrot.slane %v2120, %v2158
    %v2160 = vlaneseq
    %v2161 = vshrl.u32 %v2160, 7
    %v2162 = vsub.s32 0, %v2161
    %v2163 = vrot.slane %v2121, %v2162
    %v2164 = vlaneseq
    %v2165 = vshrl.u32 %v2164, 7
    %v2166 = vsub.s32 0, %v2165
    %v2167 = vrot.slane %v2122, %v2166
    %v2168 = vlaneseq
    %v2169 = vshrl.u32 %v2168, 7
    %v2170 = vsub.s32 0, %v2169
    %v2171 = vrot.slane %v2123, %v2170
    %v2172 = vlaneseq
    %v2173 = vshrl.u32 %v2172, 7
    %v2174 = vsub.s32 0, %v2173
    %v2175 = vrot.slane %v2124, %v2174
    %v2176 = vlaneseq
    %v2177 = vshrl.u32 %v2176, 7
    %v2178 = vsub.s32 0, %v2177
    %v2179 = vrot.slane %v2125, %v2178
    %v2180 = vsel %vm1219, %v2155, %v2151
    %v2181 = vsel %vm1219, %v2163, %v2159
    %v2182 = vsel %vm1219, %v2171, %v2167
    %v2183 = vsel %vm1219, %v2179, %v2175
    %2188 = vst [vmem:[%s2131 + $0x1] sm:$0x3] %v2180
    %2189 = vst [vmem:[%s2131 + $0x5] sm:$0x3] %v2181
    %2190 = vst [vmem:[%s2131 + $0x11] sm:$0x3] %v2182
    %2191 = vst [vmem:[%s2131 + $0x15] sm:$0x3] %v2183
    %v2192 = vld [vmem:[#allocation3] sm:$0xf]
    %v2193 = vld [vmem:[#allocation3 + $0x4] sm:$0xf]
    %v2194 = vld [vmem:[#allocation3 + $0x8] sm:$0xf]
    %v2195 = vld [vmem:[#allocation3 + $0xc] sm:$0xf]
    %v2196 = vld [vmem:[#allocation3 + $0x10] sm:$0xf]
    %v2197 = vld [vmem:[#allocation3 + $0x14] sm:$0xf]
    %v2198 = vld [vmem:[#allocation3 + $0x18] sm:$0xf]
    %v2199 = vld [vmem:[#allocation3 + $0x1c] sm:$0xf]
    %v2205 = vunpack.c.l.s4 1983009808
    %v2206 = vunpack.c.0.s8 %v2205
    %v2207 = vlaneseq
    %v2208 = vshrl.u32 %v2207, 7
    %v2209 = vsub.s32 %v2206, %v2208
    %v2210 = vrot.slane %v2192, %v2209
    %v2211 = vcombine.high %v2210, %v2210
    %v2213 = vunpack.c.l.s4 1983009808
    %v2214 = vunpack.c.0.s8 %v2213
    %v2215 = vlaneseq
    %v2216 = vshrl.u32 %v2215, 7
    %v2217 = vsub.s32 %v2214, %v2216
    %v2218 = vrot.slane %v2193, %v2217
    %v2219 = vcombine.high %v2218, %v2218
    %v2221 = vunpack.c.l.s4 1983009808
    %v2222 = vunpack.c.0.s8 %v2221
    %v2223 = vlaneseq
    %v2224 = vshrl.u32 %v2223, 7
    %v2225 = vsub.s32 %v2222, %v2224
    %v2226 = vrot.slane %v2196, %v2225
    %v2227 = vcombine.high %v2226, %v2226
    %v2229 = vunpack.c.l.s4 1983009808
    %v2230 = vunpack.c.0.s8 %v2229
    %v2231 = vlaneseq
    %v2232 = vshrl.u32 %v2231, 7
    %v2233 = vsub.s32 %v2230, %v2232
    %v2234 = vrot.slane %v2197, %v2233
    %v2235 = vcombine.high %v2234, %v2234
    %vm2236 = vcmask 1040384
    %vm2237 = vmor %vm2236, %vm1221
    %vm2238 = vcmask 1044484
    %vm2239 = vmor %vm2237, %vm2238
    %vm2240 = vcmask 1046534
    %vm2241 = vmor %vm2239, %vm2240
    %v2242 = vrot.slane %v2210, 7
    %v2243 = vrot.slane %v2242, 2
    %v2244 = vrot.slane %v2211, 7
    %v2245 = vsel %vm2241, %v2243, %v2244
    %v2246 = vrot.slane %v2218, 7
    %v2247 = vrot.slane %v2246, 2
    %v2248 = vrot.slane %v2219, 7
    %v2249 = vsel %vm2241, %v2247, %v2248
    %v2250 = vrot.slane %v2226, 7
    %v2251 = vrot.slane %v2250, 2
    %v2252 = vrot.slane %v2227, 7
    %v2253 = vsel %vm2241, %v2251, %v2252
    %v2254 = vrot.slane %v2234, 7
    %v2255 = vrot.slane %v2254, 2
    %v2256 = vrot.slane %v2235, 7
    %v2257 = vsel %vm2241, %v2255, %v2256
    %v2261 = vunpack.c.l.s4 1983009808
    %v2262 = vunpack.c.0.s8 %v2261
    %v2263 = vlaneseq
    %v2264 = vshrl.u32 %v2263, 7
    %v2265 = vsub.s32 %v2262, %v2264
    %v2266 = vrot.slane %v2194, %v2265
    %v2267 = vcombine.high %v2266, %v2266
    %v2269 = vunpack.c.l.s4 1983009808
    %v2270 = vunpack.c.0.s8 %v2269
    %v2271 = vlaneseq
    %v2272 = vshrl.u32 %v2271, 7
    %v2273 = vsub.s32 %v2270, %v2272
    %v2274 = vrot.slane %v2198, %v2273
    %v2275 = vcombine.high %v2274, %v2274
    %v2276 = vrot.slane %v2266, 7
    %v2277 = vrot.slane %v2276, 2
    %v2278 = vrot.slane %v2267, 7
    %v2279 = vsel %vm2241, %v2277, %v2278
    %v2280 = vrot.slane %v2274, 7
    %v2281 = vrot.slane %v2280, 2
    %v2282 = vrot.slane %v2275, 7
    %v2283 = vsel %vm2241, %v2281, %v2282
    %v2287 = vunpack.c.l.s4 1983009808
    %v2288 = vunpack.c.0.s8 %v2287
    %v2289 = vlaneseq
    %v2290 = vshrl.u32 %v2289, 7
    %v2291 = vsub.s32 %v2288, %v2290
    %v2292 = vrot.slane %v2195, %v2291
    %v2293 = vcombine.high %v2292, %v2292
    %v2295 = vunpack.c.l.s4 1983009808
    %v2296 = vunpack.c.0.s8 %v2295
    %v2297 = vlaneseq
    %v2298 = vshrl.u32 %v2297, 7
    %v2299 = vsub.s32 %v2296, %v2298
    %v2300 = vrot.slane %v2199, %v2299
    %v2301 = vcombine.high %v2300, %v2300
    %v2302 = vrot.slane %v2292, 7
    %v2303 = vrot.slane %v2302, 2
    %v2304 = vrot.slane %v2293, 7
    %v2305 = vsel %vm2241, %v2303, %v2304
    %v2306 = vrot.slane %v2300, 7
    %v2307 = vrot.slane %v2306, 2
    %v2308 = vrot.slane %v2301, 7
    %v2309 = vsel %vm2241, %v2307, %v2308
    %v2310 = vcombine.low %v2192, %v2193
    %v2311 = vcombine.low %v2196, %v2197
    %v2313 = vunpack.c.l.s4 1983009808
    %v2314 = vunpack.c.0.s8 %v2313
    %v2315 = vlaneseq
    %v2316 = vshrl.u32 %v2315, 7
    %v2317 = vsub.s32 %v2314, %v2316
    %v2318 = vrot.slane %v2310, %v2317
    %v2320 = vunpack.c.l.s4 1983009808
    %v2321 = vunpack.c.0.s8 %v2320
    %v2322 = vlaneseq
    %v2323 = vshrl.u32 %v2322, 7
    %v2324 = vsub.s32 %v2321, %v2323
    %v2325 = vrot.slane %v2311, %v2324
    %v2326 = vcombine.low %v2318, %v2325
    %v2328 = vcombine.low %v2245, %v2249
    %v2329 = vcombine.low %v2253, %v2257
    %v2331 = vunpack.c.l.s4 1983009808
    %v2332 = vunpack.c.0.s8 %v2331
    %v2333 = vlaneseq
    %v2334 = vshrl.u32 %v2333, 7
    %v2335 = vsub.s32 %v2332, %v2334
    %v2336 = vrot.slane %v2328, %v2335
    %v2338 = vunpack.c.l.s4 1983009808
    %v2339 = vunpack.c.0.s8 %v2338
    %v2340 = vlaneseq
    %v2341 = vshrl.u32 %v2340, 7
    %v2342 = vsub.s32 %v2339, %v2341
    %v2343 = vrot.slane %v2329, %v2342
    %v2344 = vcombine.low %v2336, %v2343
    %v2346 = vcombine.low %v2211, %v2219
    %v2347 = vcombine.low %v2227, %v2235
    %v2349 = vunpack.c.l.s4 1983009808
    %v2350 = vunpack.c.0.s8 %v2349
    %v2351 = vlaneseq
    %v2352 = vshrl.u32 %v2351, 7
    %v2353 = vsub.s32 %v2350, %v2352
    %v2354 = vrot.slane %v2346, %v2353
    %v2356 = vunpack.c.l.s4 1983009808
    %v2357 = vunpack.c.0.s8 %v2356
    %v2358 = vlaneseq
    %v2359 = vshrl.u32 %v2358, 7
    %v2360 = vsub.s32 %v2357, %v2359
    %v2361 = vrot.slane %v2347, %v2360
    %v2362 = vcombine.low %v2354, %v2361
    %v2364 = vcombine.low %v2193, %v2194
    %v2365 = vcombine.low %v2197, %v2198
    %v2367 = vunpack.c.l.s4 1983009808
    %v2368 = vunpack.c.0.s8 %v2367
    %v2369 = vlaneseq
    %v2370 = vshrl.u32 %v2369, 7
    %v2371 = vsub.s32 %v2368, %v2370
    %v2372 = vrot.slane %v2364, %v2371
    %v2374 = vunpack.c.l.s4 1983009808
    %v2375 = vunpack.c.0.s8 %v2374
    %v2376 = vlaneseq
    %v2377 = vshrl.u32 %v2376, 7
    %v2378 = vsub.s32 %v2375, %v2377
    %v2379 = vrot.slane %v2365, %v2378
    %v2380 = vcombine.low %v2372, %v2379
    %v2382 = vcombine.low %v2249, %v2279
    %v2383 = vcombine.low %v2257, %v2283
    %v2385 = vunpack.c.l.s4 1983009808
    %v2386 = vunpack.c.0.s8 %v2385
    %v2387 = vlaneseq
    %v2388 = vshrl.u32 %v2387, 7
    %v2389 = vsub.s32 %v2386, %v2388
    %v2390 = vrot.slane %v2382, %v2389
    %v2392 = vunpack.c.l.s4 1983009808
    %v2393 = vunpack.c.0.s8 %v2392
    %v2394 = vlaneseq
    %v2395 = vshrl.u32 %v2394, 7
    %v2396 = vsub.s32 %v2393, %v2395
    %v2397 = vrot.slane %v2383, %v2396
    %v2398 = vcombine.low %v2390, %v2397
    %v2400 = vcombine.low %v2219, %v2267
    %v2401 = vcombine.low %v2235, %v2275
    %v2403 = vunpack.c.l.s4 1983009808
    %v2404 = vunpack.c.0.s8 %v2403
    %v2405 = vlaneseq
    %v2406 = vshrl.u32 %v2405, 7
    %v2407 = vsub.s32 %v2404, %v2406
    %v2408 = vrot.slane %v2400, %v2407
    %v2410 = vunpack.c.l.s4 1983009808
    %v2411 = vunpack.c.0.s8 %v2410
    %v2412 = vlaneseq
    %v2413 = vshrl.u32 %v2412, 7
    %v2414 = vsub.s32 %v2411, %v2413
    %v2415 = vrot.slane %v2401, %v2414
    %v2416 = vcombine.low %v2408, %v2415
    %v2418 = vcombine.low %v2194, %v2195
    %v2419 = vcombine.low %v2198, %v2199
    %v2421 = vunpack.c.l.s4 1983009808
    %v2422 = vunpack.c.0.s8 %v2421
    %v2423 = vlaneseq
    %v2424 = vshrl.u32 %v2423, 7
    %v2425 = vsub.s32 %v2422, %v2424
    %v2426 = vrot.slane %v2418, %v2425
    %v2428 = vunpack.c.l.s4 1983009808
    %v2429 = vunpack.c.0.s8 %v2428
    %v2430 = vlaneseq
    %v2431 = vshrl.u32 %v2430, 7
    %v2432 = vsub.s32 %v2429, %v2431
    %v2433 = vrot.slane %v2419, %v2432
    %v2434 = vcombine.low %v2426, %v2433
    %v2436 = vcombine.low %v2279, %v2305
    %v2437 = vcombine.low %v2283, %v2309
    %v2439 = vunpack.c.l.s4 1983009808
    %v2440 = vunpack.c.0.s8 %v2439
    %v2441 = vlaneseq
    %v2442 = vshrl.u32 %v2441, 7
    %v2443 = vsub.s32 %v2440, %v2442
    %v2444 = vrot.slane %v2436, %v2443
    %v2446 = vunpack.c.l.s4 1983009808
    %v2447 = vunpack.c.0.s8 %v2446
    %v2448 = vlaneseq
    %v2449 = vshrl.u32 %v2448, 7
    %v2450 = vsub.s32 %v2447, %v2449
    %v2451 = vrot.slane %v2437, %v2450
    %v2452 = vcombine.low %v2444, %v2451
    %v2454 = vcombine.low %v2267, %v2293
    %v2455 = vcombine.low %v2275, %v2301
    %v2457 = vunpack.c.l.s4 1983009808
    %v2458 = vunpack.c.0.s8 %v2457
    %v2459 = vlaneseq
    %v2460 = vshrl.u32 %v2459, 7
    %v2461 = vsub.s32 %v2458, %v2460
    %v2462 = vrot.slane %v2454, %v2461
    %v2464 = vunpack.c.l.s4 1983009808
    %v2465 = vunpack.c.0.s8 %v2464
    %v2466 = vlaneseq
    %v2467 = vshrl.u32 %v2466, 7
    %v2468 = vsub.s32 %v2465, %v2467
    %v2469 = vrot.slane %v2455, %v2468
    %v2470 = vcombine.low %v2462, %v2469
    %v2472 = vpack.c.bf16 %v2326, %v2326
    %v2473 = vpack.c.bf16 %v2344, %v2344
    %v2474 = vpack.c.bf16 %v2362, %v2362
    %v2475 = vpack.c.bf16 %v2380, %v2380
    %v2476 = vpack.c.bf16 %v2398, %v2398
    %v2477 = vpack.c.bf16 %v2416, %v2416
    %v2478 = vpack.c.bf16 %v2434, %v2434
    %v2479 = vpack.c.bf16 %v2452, %v2452
    %v2480 = vpack.c.bf16 %v2470, %v2470
    %v2481 = vld [vmem:[#allocation12] sm:$0xff]
    %v2482 = vld [vmem:[#allocation12 + $0x8] sm:$0xff]
    %v2483 = vld [vmem:[#allocation12 + $0x10] sm:$0xff]
    %v2484 = vld [vmem:[#allocation12 + $0x18] sm:$0xff]
    %v2485 = vld [vmem:[#allocation12 + $0x20] sm:$0xff]
    %v2486 = vld [vmem:[#allocation12 + $0x28] sm:$0xff]
    %v2487 = vld [vmem:[#allocation12 + $0x30] sm:$0xff]
    %v2488 = vld [vmem:[#allocation12 + $0x38] sm:$0xff]
    %v2489 = vld [vmem:[#allocation12 + $0x40] sm:$0xff]
    %v2490 = vld [vmem:[#allocation12 + $0x48] sm:$0xff]
    %v2491 = vld [vmem:[#allocation12 + $0x50] sm:$0xff]
    %v2492 = vld [vmem:[#allocation12 + $0x58] sm:$0xff]
    %v2493 = vld [vmem:[#allocation12 + $0x60] sm:$0xff]
    %v2494 = vld [vmem:[#allocation12 + $0x68] sm:$0xff]
    %v2495 = vld [vmem:[#allocation12 + $0x70] sm:$0xff]
    %v2496 = vld [vmem:[#allocation12 + $0x78] sm:$0xff]
    %v2497 = vld [vmem:[#allocation12 + $0x80] sm:$0xff]
    %v2498 = vld [vmem:[#allocation12 + $0x88] sm:$0xff]
    %v2499 = vld [vmem:[#allocation12 + $0x90] sm:$0xff]
    %v2500 = vld [vmem:[#allocation12 + $0x98] sm:$0xff]
    %v2501 = vld [vmem:[#allocation12 + $0xa0] sm:$0xff]
    %v2502 = vld [vmem:[#allocation12 + $0xa8] sm:$0xff]
    %v2503 = vld [vmem:[#allocation12 + $0xb0] sm:$0xff]
    %v2504 = vld [vmem:[#allocation12 + $0xb8] sm:$0xff]
    %v2505 = vld [vmem:[#allocation12 + $0xc0] sm:$0xff]
    %v2506 = vld [vmem:[#allocation12 + $0xc8] sm:$0xff]
    %v2507 = vld [vmem:[#allocation12 + $0xd0] sm:$0xff]
    %v2508 = vld [vmem:[#allocation12 + $0xd8] sm:$0xff]
    %v2509 = vld [vmem:[#allocation12 + $0xe0] sm:$0xff]
    %v2510 = vld [vmem:[#allocation12 + $0xe8] sm:$0xff]
    %v2511 = vld [vmem:[#allocation12 + $0xf0] sm:$0xff]
    %v2512 = vld [vmem:[#allocation12 + $0xf8] sm:$0xff]
    %v2513 = vld [vmem:[#allocation12 + $0x100] sm:$0xff]
    %v2514 = vld [vmem:[#allocation12 + $0x108] sm:$0xff]
    %v2515 = vld [vmem:[#allocation12 + $0x110] sm:$0xff]
    %v2516 = vld [vmem:[#allocation12 + $0x118] sm:$0xff]
    %v2517 = vld [vmem:[#allocation12 + $0x120] sm:$0xff]
    %v2518 = vld [vmem:[#allocation12 + $0x128] sm:$0xff]
    %v2519 = vld [vmem:[#allocation12 + $0x130] sm:$0xff]
    %v2520 = vld [vmem:[#allocation12 + $0x138] sm:$0xff]
    %v2521 = vld [vmem:[#allocation12 + $0x140] sm:$0xff]
    %v2522 = vld [vmem:[#allocation12 + $0x148] sm:$0xff]
    %v2523 = vld [vmem:[#allocation12 + $0x150] sm:$0xff]
    %v2524 = vld [vmem:[#allocation12 + $0x158] sm:$0xff]
    %v2525 = vld [vmem:[#allocation12 + $0x160] sm:$0xff]
    %v2526 = vld [vmem:[#allocation12 + $0x168] sm:$0xff]
    %v2527 = vld [vmem:[#allocation12 + $0x170] sm:$0xff]
    %v2528 = vld [vmem:[#allocation12 + $0x178] sm:$0xff]
    %v2529 = vld [vmem:[#allocation12 + $0x180] sm:$0xff]
    %v2530 = vld [vmem:[#allocation12 + $0x188] sm:$0xff]
    %v2531 = vld [vmem:[#allocation12 + $0x190] sm:$0xff]
    %v2532 = vld [vmem:[#allocation12 + $0x198] sm:$0xff]
    %v2533 = vld [vmem:[#allocation12 + $0x1a0] sm:$0xff]
    %v2534 = vld [vmem:[#allocation12 + $0x1a8] sm:$0xff]
    %v2535 = vld [vmem:[#allocation12 + $0x1b0] sm:$0xff]
    %v2536 = vld [vmem:[#allocation12 + $0x1b8] sm:$0xff]
    %v2537 = vld [vmem:[#allocation12 + $0x1c0] sm:$0xff]
    %v2538 = vld [vmem:[#allocation12 + $0x1c8] sm:$0xff]
    %v2539 = vld [vmem:[#allocation12 + $0x1d0] sm:$0xff]
    %v2540 = vld [vmem:[#allocation12 + $0x1d8] sm:$0xff]
    %v2541 = vld [vmem:[#allocation12 + $0x1e0] sm:$0xff]
    %v2542 = vld [vmem:[#allocation12 + $0x1e8] sm:$0xff]
    %v2543 = vld [vmem:[#allocation12 + $0x1f0] sm:$0xff]
    %v2544 = vld [vmem:[#allocation12 + $0x1f8] sm:$0xff]
    %v2545 = vld [vmem:[#allocation12 + $0x200] sm:$0xff]
    %v2546 = vld [vmem:[#allocation12 + $0x208] sm:$0xff]
    %v2547 = vld [vmem:[#allocation12 + $0x210] sm:$0xff]
    %v2548 = vld [vmem:[#allocation12 + $0x218] sm:$0xff]
    %v2549 = vld [vmem:[#allocation12 + $0x220] sm:$0xff]
    %v2550 = vld [vmem:[#allocation12 + $0x228] sm:$0xff]
    %v2551 = vld [vmem:[#allocation12 + $0x230] sm:$0xff]
    %v2552 = vld [vmem:[#allocation12 + $0x238] sm:$0xff]
    %v2553 = vld [vmem:[#allocation12 + $0x240] sm:$0xff]
    %v2554 = vld [vmem:[#allocation12 + $0x248] sm:$0xff]
    %v2555 = vld [vmem:[#allocation12 + $0x250] sm:$0xff]
    %v2556 = vld [vmem:[#allocation12 + $0x258] sm:$0xff]
    %v2557 = vld [vmem:[#allocation12 + $0x260] sm:$0xff]
    %v2558 = vld [vmem:[#allocation12 + $0x268] sm:$0xff]
    %v2559 = vld [vmem:[#allocation12 + $0x270] sm:$0xff]
    %v2560 = vld [vmem:[#allocation12 + $0x278] sm:$0xff]
    %v2561 = vld [vmem:[#allocation12 + $0x280] sm:$0xff]
    %v2562 = vld [vmem:[#allocation12 + $0x288] sm:$0xff]
    %v2563 = vld [vmem:[#allocation12 + $0x290] sm:$0xff]
    %v2564 = vld [vmem:[#allocation12 + $0x298] sm:$0xff]
    %v2565 = vld [vmem:[#allocation12 + $0x2a0] sm:$0xff]
    %v2566 = vld [vmem:[#allocation12 + $0x2a8] sm:$0xff]
    %v2567 = vld [vmem:[#allocation12 + $0x2b0] sm:$0xff]
    %v2568 = vld [vmem:[#allocation12 + $0x2b8] sm:$0xff]
    %v2569 = vld [vmem:[#allocation12 + $0x2c0] sm:$0xff]
    %v2570 = vld [vmem:[#allocation12 + $0x2c8] sm:$0xff]
    %v2571 = vld [vmem:[#allocation12 + $0x2d0] sm:$0xff]
    %v2572 = vld [vmem:[#allocation12 + $0x2d8] sm:$0xff]
    %v2573 = vld [vmem:[#allocation12 + $0x2e0] sm:$0xff]
    %v2574 = vld [vmem:[#allocation12 + $0x2e8] sm:$0xff]
    %v2575 = vld [vmem:[#allocation12 + $0x2f0] sm:$0xff]
    %v2576 = vld [vmem:[#allocation12 + $0x2f8] sm:$0xff]
    %v2577 = vld [vmem:[#allocation12 + $0x300] sm:$0xff]
    %v2578 = vld [vmem:[#allocation12 + $0x308] sm:$0xff]
    %v2579 = vld [vmem:[#allocation12 + $0x310] sm:$0xff]
    %v2580 = vld [vmem:[#allocation12 + $0x318] sm:$0xff]
    %v2581 = vld [vmem:[#allocation12 + $0x320] sm:$0xff]
    %v2582 = vld [vmem:[#allocation12 + $0x328] sm:$0xff]
    %v2583 = vld [vmem:[#allocation12 + $0x330] sm:$0xff]
    %v2584 = vld [vmem:[#allocation12 + $0x338] sm:$0xff]
    %v2585 = vld [vmem:[#allocation12 + $0x340] sm:$0xff]
    %v2586 = vld [vmem:[#allocation12 + $0x348] sm:$0xff]
    %v2587 = vld [vmem:[#allocation12 + $0x350] sm:$0xff]
    %v2588 = vld [vmem:[#allocation12 + $0x358] sm:$0xff]
    %v2589 = vld [vmem:[#allocation12 + $0x360] sm:$0xff]
    %v2590 = vld [vmem:[#allocation12 + $0x368] sm:$0xff]
    %v2591 = vld [vmem:[#allocation12 + $0x370] sm:$0xff]
    %v2592 = vld [vmem:[#allocation12 + $0x378] sm:$0xff]
    %v2593 = vld [vmem:[#allocation12 + $0x380] sm:$0xff]
    %v2594 = vld [vmem:[#allocation12 + $0x388] sm:$0xff]
    %v2595 = vld [vmem:[#allocation12 + $0x390] sm:$0xff]
    %v2596 = vld [vmem:[#allocation12 + $0x398] sm:$0xff]
    %v2597 = vld [vmem:[#allocation12 + $0x3a0] sm:$0xff]
    %v2598 = vld [vmem:[#allocation12 + $0x3a8] sm:$0xff]
    %v2599 = vld [vmem:[#allocation12 + $0x3b0] sm:$0xff]
    %v2600 = vld [vmem:[#allocation12 + $0x3b8] sm:$0xff]
    %v2601 = vld [vmem:[#allocation12 + $0x3c0] sm:$0xff]
    %v2602 = vld [vmem:[#allocation12 + $0x3c8] sm:$0xff]
    %v2603 = vld [vmem:[#allocation12 + $0x3d0] sm:$0xff]
    %v2604 = vld [vmem:[#allocation12 + $0x3d8] sm:$0xff]
    %v2605 = vld [vmem:[#allocation12 + $0x3e0] sm:$0xff]
    %v2606 = vld [vmem:[#allocation12 + $0x3e8] sm:$0xff]
    %v2607 = vld [vmem:[#allocation12 + $0x3f0] sm:$0xff]
    %v2608 = vld [vmem:[#allocation12 + $0x3f8] sm:$0xff]
    %v2609 = vld [vmem:[#allocation12 + $0x400] sm:$0xff]
    %v2610 = vld [vmem:[#allocation12 + $0x408] sm:$0xff]
    %v2611 = vld [vmem:[#allocation12 + $0x410] sm:$0xff]
    %v2612 = vld [vmem:[#allocation12 + $0x418] sm:$0xff]
    %v2613 = vld [vmem:[#allocation12 + $0x420] sm:$0xff]
    %v2614 = vld [vmem:[#allocation12 + $0x428] sm:$0xff]
    %v2615 = vld [vmem:[#allocation12 + $0x430] sm:$0xff]
    %v2616 = vld [vmem:[#allocation12 + $0x438] sm:$0xff]
    %v2617 = vld [vmem:[#allocation12 + $0x440] sm:$0xff]
    %v2618 = vld [vmem:[#allocation12 + $0x448] sm:$0xff]
    %v2619 = vld [vmem:[#allocation12 + $0x450] sm:$0xff]
    %v2620 = vld [vmem:[#allocation12 + $0x458] sm:$0xff]
    %v2621 = vld [vmem:[#allocation12 + $0x460] sm:$0xff]
    %v2622 = vld [vmem:[#allocation12 + $0x468] sm:$0xff]
    %v2623 = vld [vmem:[#allocation12 + $0x470] sm:$0xff]
    %v2624 = vld [vmem:[#allocation12 + $0x478] sm:$0xff]
    %v2625 = vld [vmem:[#allocation12 + $0x480] sm:$0xff]
    %v2626 = vld [vmem:[#allocation12 + $0x488] sm:$0xff]
    %v2627 = vld [vmem:[#allocation12 + $0x490] sm:$0xff]
    %v2628 = vld [vmem:[#allocation12 + $0x498] sm:$0xff]
    %v2629 = vld [vmem:[#allocation12 + $0x4a0] sm:$0xff]
    %v2630 = vld [vmem:[#allocation12 + $0x4a8] sm:$0xff]
    %v2631 = vld [vmem:[#allocation12 + $0x4b0] sm:$0xff]
    %v2632 = vld [vmem:[#allocation12 + $0x4b8] sm:$0xff]
    %v2633 = vld [vmem:[#allocation12 + $0x4c0] sm:$0xff]
    %v2634 = vld [vmem:[#allocation12 + $0x4c8] sm:$0xff]
    %v2635 = vld [vmem:[#allocation12 + $0x4d0] sm:$0xff]
    %v2636 = vld [vmem:[#allocation12 + $0x4d8] sm:$0xff]
    %v2637 = vld [vmem:[#allocation12 + $0x4e0] sm:$0xff]
    %v2638 = vld [vmem:[#allocation12 + $0x4e8] sm:$0xff]
    %v2639 = vld [vmem:[#allocation12 + $0x4f0] sm:$0xff]
    %v2640 = vld [vmem:[#allocation12 + $0x4f8] sm:$0xff]
    %v2641 = vld [vmem:[#allocation12 + $0x500] sm:$0xff]
    %v2642 = vld [vmem:[#allocation12 + $0x508] sm:$0xff]
    %v2643 = vld [vmem:[#allocation12 + $0x510] sm:$0xff]
    %v2644 = vld [vmem:[#allocation12 + $0x518] sm:$0xff]
    %v2645 = vld [vmem:[#allocation12 + $0x520] sm:$0xff]
    %v2646 = vld [vmem:[#allocation12 + $0x528] sm:$0xff]
    %v2647 = vld [vmem:[#allocation12 + $0x530] sm:$0xff]
    %v2648 = vld [vmem:[#allocation12 + $0x538] sm:$0xff]
    %v2649 = vld [vmem:[#allocation12 + $0x540] sm:$0xff]
    %v2650 = vld [vmem:[#allocation12 + $0x548] sm:$0xff]
    %v2651 = vld [vmem:[#allocation12 + $0x550] sm:$0xff]
    %v2652 = vld [vmem:[#allocation12 + $0x558] sm:$0xff]
    %v2653 = vld [vmem:[#allocation12 + $0x560] sm:$0xff]
    %v2654 = vld [vmem:[#allocation12 + $0x568] sm:$0xff]
    %v2655 = vld [vmem:[#allocation12 + $0x570] sm:$0xff]
    %v2656 = vld [vmem:[#allocation12 + $0x578] sm:$0xff]
    %v2657 = vld [vmem:[#allocation12 + $0x580] sm:$0xff]
    %v2658 = vld [vmem:[#allocation12 + $0x588] sm:$0xff]
    %v2659 = vld [vmem:[#allocation12 + $0x590] sm:$0xff]
    %v2660 = vld [vmem:[#allocation12 + $0x598] sm:$0xff]
    %v2661 = vld [vmem:[#allocation12 + $0x5a0] sm:$0xff]
    %v2662 = vld [vmem:[#allocation12 + $0x5a8] sm:$0xff]
    %v2663 = vld [vmem:[#allocation12 + $0x5b0] sm:$0xff]
    %v2664 = vld [vmem:[#allocation12 + $0x5b8] sm:$0xff]
    %v2665 = vld [vmem:[#allocation12 + $0x5c0] sm:$0xff]
    %v2666 = vld [vmem:[#allocation12 + $0x5c8] sm:$0xff]
    %v2667 = vld [vmem:[#allocation12 + $0x5d0] sm:$0xff]
    %v2668 = vld [vmem:[#allocation12 + $0x5d8] sm:$0xff]
    %v2669 = vld [vmem:[#allocation12 + $0x5e0] sm:$0xff]
    %v2670 = vld [vmem:[#allocation12 + $0x5e8] sm:$0xff]
    %v2671 = vld [vmem:[#allocation12 + $0x5f0] sm:$0xff]
    %v2672 = vld [vmem:[#allocation12 + $0x5f8] sm:$0xff]
    %v2673 = vld [vmem:[#allocation12 + $0x600] sm:$0xff]
    %v2674 = vld [vmem:[#allocation12 + $0x608] sm:$0xff]
    %v2675 = vld [vmem:[#allocation12 + $0x610] sm:$0xff]
    %v2676 = vld [vmem:[#allocation12 + $0x618] sm:$0xff]
    %v2677 = vld [vmem:[#allocation12 + $0x620] sm:$0xff]
    %v2678 = vld [vmem:[#allocation12 + $0x628] sm:$0xff]
    %v2679 = vld [vmem:[#allocation12 + $0x630] sm:$0xff]
    %v2680 = vld [vmem:[#allocation12 + $0x638] sm:$0xff]
    %v2681 = vld [vmem:[#allocation12 + $0x640] sm:$0xff]
    %v2682 = vld [vmem:[#allocation12 + $0x648] sm:$0xff]
    %v2683 = vld [vmem:[#allocation12 + $0x650] sm:$0xff]
    %v2684 = vld [vmem:[#allocation12 + $0x658] sm:$0xff]
    %v2685 = vld [vmem:[#allocation12 + $0x660] sm:$0xff]
    %v2686 = vld [vmem:[#allocation12 + $0x668] sm:$0xff]
    %v2687 = vld [vmem:[#allocation12 + $0x670] sm:$0xff]
    %v2688 = vld [vmem:[#allocation12 + $0x678] sm:$0xff]
    %v2689 = vld [vmem:[#allocation12 + $0x680] sm:$0xff]
    %v2690 = vld [vmem:[#allocation12 + $0x688] sm:$0xff]
    %v2691 = vld [vmem:[#allocation12 + $0x690] sm:$0xff]
    %v2692 = vld [vmem:[#allocation12 + $0x698] sm:$0xff]
    %v2693 = vld [vmem:[#allocation12 + $0x6a0] sm:$0xff]
    %v2694 = vld [vmem:[#allocation12 + $0x6a8] sm:$0xff]
    %v2695 = vld [vmem:[#allocation12 + $0x6b0] sm:$0xff]
    %v2696 = vld [vmem:[#allocation12 + $0x6b8] sm:$0xff]
    %v2697 = vld [vmem:[#allocation12 + $0x6c0] sm:$0xff]
    %v2698 = vld [vmem:[#allocation12 + $0x6c8] sm:$0xff]
    %v2699 = vld [vmem:[#allocation12 + $0x6d0] sm:$0xff]
    %v2700 = vld [vmem:[#allocation12 + $0x6d8] sm:$0xff]
    %v2701 = vld [vmem:[#allocation12 + $0x6e0] sm:$0xff]
    %v2702 = vld [vmem:[#allocation12 + $0x6e8] sm:$0xff]
    %v2703 = vld [vmem:[#allocation12 + $0x6f0] sm:$0xff]
    %v2704 = vld [vmem:[#allocation12 + $0x6f8] sm:$0xff]
    %v2705 = vld [vmem:[#allocation12 + $0x700] sm:$0xff]
    %v2706 = vld [vmem:[#allocation12 + $0x708] sm:$0xff]
    %v2707 = vld [vmem:[#allocation12 + $0x710] sm:$0xff]
    %v2708 = vld [vmem:[#allocation12 + $0x718] sm:$0xff]
    %v2709 = vld [vmem:[#allocation12 + $0x720] sm:$0xff]
    %v2710 = vld [vmem:[#allocation12 + $0x728] sm:$0xff]
    %v2711 = vld [vmem:[#allocation12 + $0x730] sm:$0xff]
    %v2712 = vld [vmem:[#allocation12 + $0x738] sm:$0xff]
    %v2713 = vld [vmem:[#allocation12 + $0x740] sm:$0xff]
    %v2714 = vld [vmem:[#allocation12 + $0x748] sm:$0xff]
    %v2715 = vld [vmem:[#allocation12 + $0x750] sm:$0xff]
    %v2716 = vld [vmem:[#allocation12 + $0x758] sm:$0xff]
    %v2717 = vld [vmem:[#allocation12 + $0x760] sm:$0xff]
    %v2718 = vld [vmem:[#allocation12 + $0x768] sm:$0xff]
    %v2719 = vld [vmem:[#allocation12 + $0x770] sm:$0xff]
    %v2720 = vld [vmem:[#allocation12 + $0x778] sm:$0xff]
    %v2721 = vld [vmem:[#allocation12 + $0x780] sm:$0xff]
    %v2722 = vld [vmem:[#allocation12 + $0x788] sm:$0xff]
    %v2723 = vld [vmem:[#allocation12 + $0x790] sm:$0xff]
    %v2724 = vld [vmem:[#allocation12 + $0x798] sm:$0xff]
    %v2725 = vld [vmem:[#allocation12 + $0x7a0] sm:$0xff]
    %v2726 = vld [vmem:[#allocation12 + $0x7a8] sm:$0xff]
    %v2727 = vld [vmem:[#allocation12 + $0x7b0] sm:$0xff]
    %v2728 = vld [vmem:[#allocation12 + $0x7b8] sm:$0xff]
    %v2729 = vld [vmem:[#allocation12 + $0x7c0] sm:$0xff]
    %v2730 = vld [vmem:[#allocation12 + $0x7c8] sm:$0xff]
    %v2731 = vld [vmem:[#allocation12 + $0x7d0] sm:$0xff]
    %v2732 = vld [vmem:[#allocation12 + $0x7d8] sm:$0xff]
    %v2733 = vld [vmem:[#allocation12 + $0x7e0] sm:$0xff]
    %v2734 = vld [vmem:[#allocation12 + $0x7e8] sm:$0xff]
    %v2735 = vld [vmem:[#allocation12 + $0x7f0] sm:$0xff]
    %v2736 = vld [vmem:[#allocation12 + $0x7f8] sm:$0xff]
    %v2737 = vld [vmem:[#allocation12 + $0x800] sm:$0xff]
    %v2738 = vld [vmem:[#allocation12 + $0x808] sm:$0xff]
    %v2739 = vld [vmem:[#allocation12 + $0x810] sm:$0xff]
    %v2740 = vld [vmem:[#allocation12 + $0x818] sm:$0xff]
    %v2741 = vld [vmem:[#allocation12 + $0x820] sm:$0xff]
    %v2742 = vld [vmem:[#allocation12 + $0x828] sm:$0xff]
    %v2743 = vld [vmem:[#allocation12 + $0x830] sm:$0xff]
    %v2744 = vld [vmem:[#allocation12 + $0x838] sm:$0xff]
    %v2745 = vld [vmem:[#allocation12 + $0x840] sm:$0xff]
    %v2746 = vld [vmem:[#allocation12 + $0x848] sm:$0xff]
    %v2747 = vld [vmem:[#allocation12 + $0x850] sm:$0xff]
    %v2748 = vld [vmem:[#allocation12 + $0x858] sm:$0xff]
    %v2749 = vld [vmem:[#allocation12 + $0x860] sm:$0xff]
    %v2750 = vld [vmem:[#allocation12 + $0x868] sm:$0xff]
    %v2751 = vld [vmem:[#allocation12 + $0x870] sm:$0xff]
    %v2752 = vld [vmem:[#allocation12 + $0x878] sm:$0xff]
    %v2753 = vld [vmem:[#allocation12 + $0x880] sm:$0xff]
    %v2754 = vld [vmem:[#allocation12 + $0x888] sm:$0xff]
    %v2755 = vld [vmem:[#allocation12 + $0x890] sm:$0xff]
    %v2756 = vld [vmem:[#allocation12 + $0x898] sm:$0xff]
    %v2757 = vld [vmem:[#allocation12 + $0x8a0] sm:$0xff]
    %v2758 = vld [vmem:[#allocation12 + $0x8a8] sm:$0xff]
    %v2759 = vld [vmem:[#allocation12 + $0x8b0] sm:$0xff]
    %v2760 = vld [vmem:[#allocation12 + $0x8b8] sm:$0xff]
    %v2761 = vld [vmem:[#allocation12 + $0x8c0] sm:$0xff]
    %v2762 = vld [vmem:[#allocation12 + $0x8c8] sm:$0xff]
    %v2763 = vld [vmem:[#allocation12 + $0x8d0] sm:$0xff]
    %v2764 = vld [vmem:[#allocation12 + $0x8d8] sm:$0xff]
    %v2765 = vld [vmem:[#allocation12 + $0x8e0] sm:$0xff]
    %v2766 = vld [vmem:[#allocation12 + $0x8e8] sm:$0xff]
    %v2767 = vld [vmem:[#allocation12 + $0x8f0] sm:$0xff]
    %v2768 = vld [vmem:[#allocation12 + $0x8f8] sm:$0xff]
    %v2769 = vld [vmem:[#allocation13] sm:$0xf]
    %v2771 = vlaneseq
    %v2772 = vshrl.u32 %v2771, 7
    %v2773 = vsub.s32 0, %v2772
    %v2774 = vrot.slane %v2769, %v2773
    %v2775 = vlaneseq
    %v2776 = vshrl.u32 %v2775, 7
    %v2777 = vsub.s32 1, %v2776
    %v2778 = vrot.slane %v2769, %v2777
    %v2779 = vlaneseq
    %v2780 = vshrl.u32 %v2779, 7
    %v2781 = vsub.s32 2, %v2780
    %v2782 = vrot.slane %v2769, %v2781
    %v2783 = vlaneseq
    %v2784 = vshrl.u32 %v2783, 7
    %v2785 = vsub.s32 3, %v2784
    %v2786 = vrot.slane %v2769, %v2785
    %v3079 = vunpack.c.l.b16 %v2481
    %v3080 = vunpack.c.h.b16 %v2481
    %v3081 = vunpack.c.l.b16 %v2482
    %v3082 = vunpack.c.h.b16 %v2482
    %v3083 = vunpack.c.l.b16 %v2483
    %v3084 = vunpack.c.h.b16 %v2483
    %v3085 = vunpack.c.l.b16 %v2484
    %v3086 = vunpack.c.h.b16 %v2484
    %v3087 = vunpack.c.l.b16 %v2485
    %v3088 = vunpack.c.h.b16 %v2485
    %v3089 = vunpack.c.l.b16 %v2486
    %v3090 = vunpack.c.h.b16 %v2486
    %v3091 = vunpack.c.l.b16 %v2487
    %v3092 = vunpack.c.h.b16 %v2487
    %v3093 = vunpack.c.l.b16 %v2488
    %v3094 = vunpack.c.h.b16 %v2488
    %v3095 = vunpack.c.l.b16 %v2489
    %v3096 = vunpack.c.h.b16 %v2489
    %v3097 = vunpack.c.l.b16 %v2490
    %v3098 = vunpack.c.h.b16 %v2490
    %v3099 = vunpack.c.l.b16 %v2491
    %v3100 = vunpack.c.h.b16 %v2491
    %v3101 = vunpack.c.l.b16 %v2492
    %v3102 = vunpack.c.h.b16 %v2492
    %v3103 = vunpack.c.l.b16 %v2493
    %v3104 = vunpack.c.h.b16 %v2493
    %v3105 = vunpack.c.l.b16 %v2494
    %v3106 = vunpack.c.h.b16 %v2494
    %v3107 = vunpack.c.l.b16 %v2495
    %v3108 = vunpack.c.h.b16 %v2495
    %v3109 = vunpack.c.l.b16 %v2496
    %v3110 = vunpack.c.h.b16 %v2496
    %v3111 = vunpack.c.l.b16 %v2497
    %v3112 = vunpack.c.h.b16 %v2497
    %v3113 = vunpack.c.l.b16 %v2498
    %v3114 = vunpack.c.h.b16 %v2498
    %v3115 = vunpack.c.l.b16 %v2499
    %v3116 = vunpack.c.h.b16 %v2499
    %v3117 = vunpack.c.l.b16 %v2500
    %v3118 = vunpack.c.h.b16 %v2500
    %v3119 = vunpack.c.l.b16 %v2501
    %v3120 = vunpack.c.h.b16 %v2501
    %v3121 = vunpack.c.l.b16 %v2502
    %v3122 = vunpack.c.h.b16 %v2502
    %v3123 = vunpack.c.l.b16 %v2503
    %v3124 = vunpack.c.h.b16 %v2503
    %v3125 = vunpack.c.l.b16 %v2504
    %v3126 = vunpack.c.h.b16 %v2504
    %v3127 = vunpack.c.l.b16 %v2505
    %v3128 = vunpack.c.h.b16 %v2505
    %v3129 = vunpack.c.l.b16 %v2506
    %v3130 = vunpack.c.h.b16 %v2506
    %v3131 = vunpack.c.l.b16 %v2507
    %v3132 = vunpack.c.h.b16 %v2507
    %v3133 = vunpack.c.l.b16 %v2508
    %v3134 = vunpack.c.h.b16 %v2508
    %v3135 = vunpack.c.l.b16 %v2509
    %v3136 = vunpack.c.h.b16 %v2509
    %v3137 = vunpack.c.l.b16 %v2510
    %v3138 = vunpack.c.h.b16 %v2510
    %v3139 = vunpack.c.l.b16 %v2511
    %v3140 = vunpack.c.h.b16 %v2511
    %v3141 = vunpack.c.l.b16 %v2512
    %v3142 = vunpack.c.h.b16 %v2512
    %v3143 = vunpack.c.l.b16 %v2513
    %v3144 = vunpack.c.h.b16 %v2513
    %v3145 = vunpack.c.l.b16 %v2514
    %v3146 = vunpack.c.h.b16 %v2514
    %v3147 = vunpack.c.l.b16 %v2515
    %v3148 = vunpack.c.h.b16 %v2515
    %v3149 = vunpack.c.l.b16 %v2516
    %v3150 = vunpack.c.h.b16 %v2516
    %v3151 = vunpack.c.l.b16 %v2517
    %v3152 = vunpack.c.h.b16 %v2517
    %v3153 = vunpack.c.l.b16 %v2518
    %v3154 = vunpack.c.h.b16 %v2518
    %v3155 = vunpack.c.l.b16 %v2519
    %v3156 = vunpack.c.h.b16 %v2519
    %v3157 = vunpack.c.l.b16 %v2520
    %v3158 = vunpack.c.h.b16 %v2520
    %v3159 = vunpack.c.l.b16 %v2521
    %v3160 = vunpack.c.h.b16 %v2521
    %v3161 = vunpack.c.l.b16 %v2522
    %v3162 = vunpack.c.h.b16 %v2522
    %v3163 = vunpack.c.l.b16 %v2523
    %v3164 = vunpack.c.h.b16 %v2523
    %v3165 = vunpack.c.l.b16 %v2524
    %v3166 = vunpack.c.h.b16 %v2524
    %v3167 = vunpack.c.l.b16 %v2525
    %v3168 = vunpack.c.h.b16 %v2525
    %v3169 = vunpack.c.l.b16 %v2526
    %v3170 = vunpack.c.h.b16 %v2526
    %v3171 = vunpack.c.l.b16 %v2527
    %v3172 = vunpack.c.h.b16 %v2527
    %v3173 = vunpack.c.l.b16 %v2528
    %v3174 = vunpack.c.h.b16 %v2528
    %v3175 = vunpack.c.l.b16 %v2529
    %v3176 = vunpack.c.h.b16 %v2529
    %v3177 = vunpack.c.l.b16 %v2530
    %v3178 = vunpack.c.h.b16 %v2530
    %v3179 = vunpack.c.l.b16 %v2531
    %v3180 = vunpack.c.h.b16 %v2531
    %v3181 = vunpack.c.l.b16 %v2532
    %v3182 = vunpack.c.h.b16 %v2532
    %v3183 = vunpack.c.l.b16 %v2533
    %v3184 = vunpack.c.h.b16 %v2533
    %v3185 = vunpack.c.l.b16 %v2534
    %v3186 = vunpack.c.h.b16 %v2534
    %v3187 = vunpack.c.l.b16 %v2535
    %v3188 = vunpack.c.h.b16 %v2535
    %v3189 = vunpack.c.l.b16 %v2536
    %v3190 = vunpack.c.h.b16 %v2536
    %v3191 = vunpack.c.l.b16 %v2537
    %v3192 = vunpack.c.h.b16 %v2537
    %v3193 = vunpack.c.l.b16 %v2538
    %v3194 = vunpack.c.h.b16 %v2538
    %v3195 = vunpack.c.l.b16 %v2539
    %v3196 = vunpack.c.h.b16 %v2539
    %v3197 = vunpack.c.l.b16 %v2540
    %v3198 = vunpack.c.h.b16 %v2540
    %v3199 = vunpack.c.l.b16 %v2541
    %v3200 = vunpack.c.h.b16 %v2541
    %v3201 = vunpack.c.l.b16 %v2542
    %v3202 = vunpack.c.h.b16 %v2542
    %v3203 = vunpack.c.l.b16 %v2543
    %v3204 = vunpack.c.h.b16 %v2543
    %v3205 = vunpack.c.l.b16 %v2544
    %v3206 = vunpack.c.h.b16 %v2544
    %v3207 = vunpack.c.l.b16 %v2545
    %v3208 = vunpack.c.h.b16 %v2545
    %v3209 = vunpack.c.l.b16 %v2546
    %v3210 = vunpack.c.h.b16 %v2546
    %v3211 = vunpack.c.l.b16 %v2547
    %v3212 = vunpack.c.h.b16 %v2547
    %v3213 = vunpack.c.l.b16 %v2548
    %v3214 = vunpack.c.h.b16 %v2548
    %v3215 = vunpack.c.l.b16 %v2549
    %v3216 = vunpack.c.h.b16 %v2549
    %v3217 = vunpack.c.l.b16 %v2550
    %v3218 = vunpack.c.h.b16 %v2550
    %v3219 = vunpack.c.l.b16 %v2551
    %v3220 = vunpack.c.h.b16 %v2551
    %v3221 = vunpack.c.l.b16 %v2552
    %v3222 = vunpack.c.h.b16 %v2552
    %v3223 = vunpack.c.l.b16 %v2553
    %v3224 = vunpack.c.h.b16 %v2553
    %v3225 = vunpack.c.l.b16 %v2554
    %v3226 = vunpack.c.h.b16 %v2554
    %v3227 = vunpack.c.l.b16 %v2555
    %v3228 = vunpack.c.h.b16 %v2555
    %v3229 = vunpack.c.l.b16 %v2556
    %v3230 = vunpack.c.h.b16 %v2556
    %v3231 = vunpack.c.l.b16 %v2557
    %v3232 = vunpack.c.h.b16 %v2557
    %v3233 = vunpack.c.l.b16 %v2558
    %v3234 = vunpack.c.h.b16 %v2558
    %v3235 = vunpack.c.l.b16 %v2559
    %v3236 = vunpack.c.h.b16 %v2559
    %v3237 = vunpack.c.l.b16 %v2560
    %v3238 = vunpack.c.h.b16 %v2560
    %v3239 = vunpack.c.l.b16 %v2561
    %v3240 = vunpack.c.h.b16 %v2561
    %v3241 = vunpack.c.l.b16 %v2562
    %v3242 = vunpack.c.h.b16 %v2562
    %v3243 = vunpack.c.l.b16 %v2563
    %v3244 = vunpack.c.h.b16 %v2563
    %v3245 = vunpack.c.l.b16 %v2564
    %v3246 = vunpack.c.h.b16 %v2564
    %v3247 = vunpack.c.l.b16 %v2565
    %v3248 = vunpack.c.h.b16 %v2565
    %v3249 = vunpack.c.l.b16 %v2566
    %v3250 = vunpack.c.h.b16 %v2566
    %v3251 = vunpack.c.l.b16 %v2567
    %v3252 = vunpack.c.h.b16 %v2567
    %v3253 = vunpack.c.l.b16 %v2568
    %v3254 = vunpack.c.h.b16 %v2568
    %v3255 = vunpack.c.l.b16 %v2569
    %v3256 = vunpack.c.h.b16 %v2569
    %v3257 = vunpack.c.l.b16 %v2570
    %v3258 = vunpack.c.h.b16 %v2570
    %v3259 = vunpack.c.l.b16 %v2571
    %v3260 = vunpack.c.h.b16 %v2571
    %v3261 = vunpack.c.l.b16 %v2572
    %v3262 = vunpack.c.h.b16 %v2572
    %v3263 = vunpack.c.l.b16 %v2573
    %v3264 = vunpack.c.h.b16 %v2573
    %v3265 = vunpack.c.l.b16 %v2574
    %v3266 = vunpack.c.h.b16 %v2574
    %v3267 = vunpack.c.l.b16 %v2575
    %v3268 = vunpack.c.h.b16 %v2575
    %v3269 = vunpack.c.l.b16 %v2576
    %v3270 = vunpack.c.h.b16 %v2576
    %v3271 = vunpack.c.l.b16 %v2577
    %v3272 = vunpack.c.h.b16 %v2577
    %v3273 = vunpack.c.l.b16 %v2578
    %v3274 = vunpack.c.h.b16 %v2578
    %v3275 = vunpack.c.l.b16 %v2579
    %v3276 = vunpack.c.h.b16 %v2579
    %v3277 = vunpack.c.l.b16 %v2580
    %v3278 = vunpack.c.h.b16 %v2580
    %v3279 = vunpack.c.l.b16 %v2581
    %v3280 = vunpack.c.h.b16 %v2581
    %v3281 = vunpack.c.l.b16 %v2582
    %v3282 = vunpack.c.h.b16 %v2582
    %v3283 = vunpack.c.l.b16 %v2583
    %v3284 = vunpack.c.h.b16 %v2583
    %v3285 = vunpack.c.l.b16 %v2584
    %v3286 = vunpack.c.h.b16 %v2584
    %v3287 = vunpack.c.l.b16 %v2585
    %v3288 = vunpack.c.h.b16 %v2585
    %v3289 = vunpack.c.l.b16 %v2586
    %v3290 = vunpack.c.h.b16 %v2586
    %v3291 = vunpack.c.l.b16 %v2587
    %v3292 = vunpack.c.h.b16 %v2587
    %v3293 = vunpack.c.l.b16 %v2588
    %v3294 = vunpack.c.h.b16 %v2588
    %v3295 = vunpack.c.l.b16 %v2589
    %v3296 = vunpack.c.h.b16 %v2589
    %v3297 = vunpack.c.l.b16 %v2590
    %v3298 = vunpack.c.h.b16 %v2590
    %v3299 = vunpack.c.l.b16 %v2591
    %v3300 = vunpack.c.h.b16 %v2591
    %v3301 = vunpack.c.l.b16 %v2592
    %v3302 = vunpack.c.h.b16 %v2592
    %v3303 = vunpack.c.l.b16 %v2593
    %v3304 = vunpack.c.h.b16 %v2593
    %v3305 = vunpack.c.l.b16 %v2594
    %v3306 = vunpack.c.h.b16 %v2594
    %v3307 = vunpack.c.l.b16 %v2595
    %v3308 = vunpack.c.h.b16 %v2595
    %v3309 = vunpack.c.l.b16 %v2596
    %v3310 = vunpack.c.h.b16 %v2596
    %v3311 = vunpack.c.l.b16 %v2597
    %v3312 = vunpack.c.h.b16 %v2597
    %v3313 = vunpack.c.l.b16 %v2598
    %v3314 = vunpack.c.h.b16 %v2598
    %v3315 = vunpack.c.l.b16 %v2599
    %v3316 = vunpack.c.h.b16 %v2599
    %v3317 = vunpack.c.l.b16 %v2600
    %v3318 = vunpack.c.h.b16 %v2600
    %v3319 = vunpack.c.l.b16 %v2601
    %v3320 = vunpack.c.h.b16 %v2601
    %v3321 = vunpack.c.l.b16 %v2602
    %v3322 = vunpack.c.h.b16 %v2602
    %v3323 = vunpack.c.l.b16 %v2603
    %v3324 = vunpack.c.h.b16 %v2603
    %v3325 = vunpack.c.l.b16 %v2604
    %v3326 = vunpack.c.h.b16 %v2604
    %v3327 = vunpack.c.l.b16 %v2605
    %v3328 = vunpack.c.h.b16 %v2605
    %v3329 = vunpack.c.l.b16 %v2606
    %v3330 = vunpack.c.h.b16 %v2606
    %v3331 = vunpack.c.l.b16 %v2607
    %v3332 = vunpack.c.h.b16 %v2607
    %v3333 = vunpack.c.l.b16 %v2608
    %v3334 = vunpack.c.h.b16 %v2608
    %v3335 = vunpack.c.l.b16 %v2609
    %v3336 = vunpack.c.h.b16 %v2609
    %v3337 = vunpack.c.l.b16 %v2610
    %v3338 = vunpack.c.h.b16 %v2610
    %v3339 = vunpack.c.l.b16 %v2611
    %v3340 = vunpack.c.h.b16 %v2611
    %v3341 = vunpack.c.l.b16 %v2612
    %v3342 = vunpack.c.h.b16 %v2612
    %v3343 = vunpack.c.l.b16 %v2613
    %v3344 = vunpack.c.h.b16 %v2613
    %v3345 = vunpack.c.l.b16 %v2614
    %v3346 = vunpack.c.h.b16 %v2614
    %v3347 = vunpack.c.l.b16 %v2615
    %v3348 = vunpack.c.h.b16 %v2615
    %v3349 = vunpack.c.l.b16 %v2616
    %v3350 = vunpack.c.h.b16 %v2616
    %v3351 = vunpack.c.l.b16 %v2617
    %v3352 = vunpack.c.h.b16 %v2617
    %v3353 = vunpack.c.l.b16 %v2618
    %v3354 = vunpack.c.h.b16 %v2618
    %v3355 = vunpack.c.l.b16 %v2619
    %v3356 = vunpack.c.h.b16 %v2619
    %v3357 = vunpack.c.l.b16 %v2620
    %v3358 = vunpack.c.h.b16 %v2620
    %v3359 = vunpack.c.l.b16 %v2621
    %v3360 = vunpack.c.h.b16 %v2621
    %v3361 = vunpack.c.l.b16 %v2622
    %v3362 = vunpack.c.h.b16 %v2622
    %v3363 = vunpack.c.l.b16 %v2623
    %v3364 = vunpack.c.h.b16 %v2623
    %v3365 = vunpack.c.l.b16 %v2624
    %v3366 = vunpack.c.h.b16 %v2624
    %v3367 = vunpack.c.l.b16 %v2625
    %v3368 = vunpack.c.h.b16 %v2625
    %v3369 = vunpack.c.l.b16 %v2626
    %v3370 = vunpack.c.h.b16 %v2626
    %v3371 = vunpack.c.l.b16 %v2627
    %v3372 = vunpack.c.h.b16 %v2627
    %v3373 = vunpack.c.l.b16 %v2628
    %v3374 = vunpack.c.h.b16 %v2628
    %v3375 = vunpack.c.l.b16 %v2629
    %v3376 = vunpack.c.h.b16 %v2629
    %v3377 = vunpack.c.l.b16 %v2630
    %v3378 = vunpack.c.h.b16 %v2630
    %v3379 = vunpack.c.l.b16 %v2631
    %v3380 = vunpack.c.h.b16 %v2631
    %v3381 = vunpack.c.l.b16 %v2632
    %v3382 = vunpack.c.h.b16 %v2632
    %v3383 = vunpack.c.l.b16 %v2633
    %v3384 = vunpack.c.h.b16 %v2633
    %v3385 = vunpack.c.l.b16 %v2634
    %v3386 = vunpack.c.h.b16 %v2634
    %v3387 = vunpack.c.l.b16 %v2635
    %v3388 = vunpack.c.h.b16 %v2635
    %v3389 = vunpack.c.l.b16 %v2636
    %v3390 = vunpack.c.h.b16 %v2636
    %v3391 = vunpack.c.l.b16 %v2637
    %v3392 = vunpack.c.h.b16 %v2637
    %v3393 = vunpack.c.l.b16 %v2638
    %v3394 = vunpack.c.h.b16 %v2638
    %v3395 = vunpack.c.l.b16 %v2639
    %v3396 = vunpack.c.h.b16 %v2639
    %v3397 = vunpack.c.l.b16 %v2640
    %v3398 = vunpack.c.h.b16 %v2640
    %v3399 = vunpack.c.l.b16 %v2641
    %v3400 = vunpack.c.h.b16 %v2641
    %v3401 = vunpack.c.l.b16 %v2642
    %v3402 = vunpack.c.h.b16 %v2642
    %v3403 = vunpack.c.l.b16 %v2643
    %v3404 = vunpack.c.h.b16 %v2643
    %v3405 = vunpack.c.l.b16 %v2644
    %v3406 = vunpack.c.h.b16 %v2644
    %v3407 = vunpack.c.l.b16 %v2645
    %v3408 = vunpack.c.h.b16 %v2645
    %v3409 = vunpack.c.l.b16 %v2646
    %v3410 = vunpack.c.h.b16 %v2646
    %v3411 = vunpack.c.l.b16 %v2647
    %v3412 = vunpack.c.h.b16 %v2647
    %v3413 = vunpack.c.l.b16 %v2648
    %v3414 = vunpack.c.h.b16 %v2648
    %v3415 = vunpack.c.l.b16 %v2649
    %v3416 = vunpack.c.h.b16 %v2649
    %v3417 = vunpack.c.l.b16 %v2650
    %v3418 = vunpack.c.h.b16 %v2650
    %v3419 = vunpack.c.l.b16 %v2651
    %v3420 = vunpack.c.h.b16 %v2651
    %v3421 = vunpack.c.l.b16 %v2652
    %v3422 = vunpack.c.h.b16 %v2652
    %v3423 = vunpack.c.l.b16 %v2653
    %v3424 = vunpack.c.h.b16 %v2653
    %v3425 = vunpack.c.l.b16 %v2654
    %v3426 = vunpack.c.h.b16 %v2654
    %v3427 = vunpack.c.l.b16 %v2655
    %v3428 = vunpack.c.h.b16 %v2655
    %v3429 = vunpack.c.l.b16 %v2656
    %v3430 = vunpack.c.h.b16 %v2656
    %v3431 = vunpack.c.l.b16 %v2657
    %v3432 = vunpack.c.h.b16 %v2657
    %v3433 = vunpack.c.l.b16 %v2658
    %v3434 = vunpack.c.h.b16 %v2658
    %v3435 = vunpack.c.l.b16 %v2659
    %v3436 = vunpack.c.h.b16 %v2659
    %v3437 = vunpack.c.l.b16 %v2660
    %v3438 = vunpack.c.h.b16 %v2660
    %v3439 = vunpack.c.l.b16 %v2661
    %v3440 = vunpack.c.h.b16 %v2661
    %v3441 = vunpack.c.l.b16 %v2662
    %v3442 = vunpack.c.h.b16 %v2662
    %v3443 = vunpack.c.l.b16 %v2663
    %v3444 = vunpack.c.h.b16 %v2663
    %v3445 = vunpack.c.l.b16 %v2664
    %v3446 = vunpack.c.h.b16 %v2664
    %v3447 = vunpack.c.l.b16 %v2665
    %v3448 = vunpack.c.h.b16 %v2665
    %v3449 = vunpack.c.l.b16 %v2666
    %v3450 = vunpack.c.h.b16 %v2666
    %v3451 = vunpack.c.l.b16 %v2667
    %v3452 = vunpack.c.h.b16 %v2667
    %v3453 = vunpack.c.l.b16 %v2668
    %v3454 = vunpack.c.h.b16 %v2668
    %v3455 = vunpack.c.l.b16 %v2669
    %v3456 = vunpack.c.h.b16 %v2669
    %v3457 = vunpack.c.l.b16 %v2670
    %v3458 = vunpack.c.h.b16 %v2670
    %v3459 = vunpack.c.l.b16 %v2671
    %v3460 = vunpack.c.h.b16 %v2671
    %v3461 = vunpack.c.l.b16 %v2672
    %v3462 = vunpack.c.h.b16 %v2672
    %v3463 = vunpack.c.l.b16 %v2673
    %v3464 = vunpack.c.h.b16 %v2673
    %v3465 = vunpack.c.l.b16 %v2674
    %v3466 = vunpack.c.h.b16 %v2674
    %v3467 = vunpack.c.l.b16 %v2675
    %v3468 = vunpack.c.h.b16 %v2675
    %v3469 = vunpack.c.l.b16 %v2676
    %v3470 = vunpack.c.h.b16 %v2676
    %v3471 = vunpack.c.l.b16 %v2677
    %v3472 = vunpack.c.h.b16 %v2677
    %v3473 = vunpack.c.l.b16 %v2678
    %v3474 = vunpack.c.h.b16 %v2678
    %v3475 = vunpack.c.l.b16 %v2679
    %v3476 = vunpack.c.h.b16 %v2679
    %v3477 = vunpack.c.l.b16 %v2680
    %v3478 = vunpack.c.h.b16 %v2680
    %v3479 = vunpack.c.l.b16 %v2681
    %v3480 = vunpack.c.h.b16 %v2681
    %v3481 = vunpack.c.l.b16 %v2682
    %v3482 = vunpack.c.h.b16 %v2682
    %v3483 = vunpack.c.l.b16 %v2683
    %v3484 = vunpack.c.h.b16 %v2683
    %v3485 = vunpack.c.l.b16 %v2684
    %v3486 = vunpack.c.h.b16 %v2684
    %v3487 = vunpack.c.l.b16 %v2685
    %v3488 = vunpack.c.h.b16 %v2685
    %v3489 = vunpack.c.l.b16 %v2686
    %v3490 = vunpack.c.h.b16 %v2686
    %v3491 = vunpack.c.l.b16 %v2687
    %v3492 = vunpack.c.h.b16 %v2687
    %v3493 = vunpack.c.l.b16 %v2688
    %v3494 = vunpack.c.h.b16 %v2688
    %v3495 = vunpack.c.l.b16 %v2689
    %v3496 = vunpack.c.h.b16 %v2689
    %v3497 = vunpack.c.l.b16 %v2690
    %v3498 = vunpack.c.h.b16 %v2690
    %v3499 = vunpack.c.l.b16 %v2691
    %v3500 = vunpack.c.h.b16 %v2691
    %v3501 = vunpack.c.l.b16 %v2692
    %v3502 = vunpack.c.h.b16 %v2692
    %v3503 = vunpack.c.l.b16 %v2693
    %v3504 = vunpack.c.h.b16 %v2693
    %v3505 = vunpack.c.l.b16 %v2694
    %v3506 = vunpack.c.h.b16 %v2694
    %v3507 = vunpack.c.l.b16 %v2695
    %v3508 = vunpack.c.h.b16 %v2695
    %v3509 = vunpack.c.l.b16 %v2696
    %v3510 = vunpack.c.h.b16 %v2696
    %v3511 = vunpack.c.l.b16 %v2697
    %v3512 = vunpack.c.h.b16 %v2697
    %v3513 = vunpack.c.l.b16 %v2698
    %v3514 = vunpack.c.h.b16 %v2698
    %v3515 = vunpack.c.l.b16 %v2699
    %v3516 = vunpack.c.h.b16 %v2699
    %v3517 = vunpack.c.l.b16 %v2700
    %v3518 = vunpack.c.h.b16 %v2700
    %v3519 = vunpack.c.l.b16 %v2701
    %v3520 = vunpack.c.h.b16 %v2701
    %v3521 = vunpack.c.l.b16 %v2702
    %v3522 = vunpack.c.h.b16 %v2702
    %v3523 = vunpack.c.l.b16 %v2703
    %v3524 = vunpack.c.h.b16 %v2703
    %v3525 = vunpack.c.l.b16 %v2704
    %v3526 = vunpack.c.h.b16 %v2704
    %v3527 = vunpack.c.l.b16 %v2705
    %v3528 = vunpack.c.h.b16 %v2705
    %v3529 = vunpack.c.l.b16 %v2706
    %v3530 = vunpack.c.h.b16 %v2706
    %v3531 = vunpack.c.l.b16 %v2707
    %v3532 = vunpack.c.h.b16 %v2707
    %v3533 = vunpack.c.l.b16 %v2708
    %v3534 = vunpack.c.h.b16 %v2708
    %v3535 = vunpack.c.l.b16 %v2709
    %v3536 = vunpack.c.h.b16 %v2709
    %v3537 = vunpack.c.l.b16 %v2710
    %v3538 = vunpack.c.h.b16 %v2710
    %v3539 = vunpack.c.l.b16 %v2711
    %v3540 = vunpack.c.h.b16 %v2711
    %v3541 = vunpack.c.l.b16 %v2712
    %v3542 = vunpack.c.h.b16 %v2712
    %v3543 = vunpack.c.l.b16 %v2713
    %v3544 = vunpack.c.h.b16 %v2713
    %v3545 = vunpack.c.l.b16 %v2714
    %v3546 = vunpack.c.h.b16 %v2714
    %v3547 = vunpack.c.l.b16 %v2715
    %v3548 = vunpack.c.h.b16 %v2715
    %v3549 = vunpack.c.l.b16 %v2716
    %v3550 = vunpack.c.h.b16 %v2716
    %v3551 = vunpack.c.l.b16 %v2717
    %v3552 = vunpack.c.h.b16 %v2717
    %v3553 = vunpack.c.l.b16 %v2718
    %v3554 = vunpack.c.h.b16 %v2718
    %v3555 = vunpack.c.l.b16 %v2719
    %v3556 = vunpack.c.h.b16 %v2719
    %v3557 = vunpack.c.l.b16 %v2720
    %v3558 = vunpack.c.h.b16 %v2720
    %v3559 = vunpack.c.l.b16 %v2721
    %v3560 = vunpack.c.h.b16 %v2721
    %v3561 = vunpack.c.l.b16 %v2722
    %v3562 = vunpack.c.h.b16 %v2722
    %v3563 = vunpack.c.l.b16 %v2723
    %v3564 = vunpack.c.h.b16 %v2723
    %v3565 = vunpack.c.l.b16 %v2724
    %v3566 = vunpack.c.h.b16 %v2724
    %v3567 = vunpack.c.l.b16 %v2725
    %v3568 = vunpack.c.h.b16 %v2725
    %v3569 = vunpack.c.l.b16 %v2726
    %v3570 = vunpack.c.h.b16 %v2726
    %v3571 = vunpack.c.l.b16 %v2727
    %v3572 = vunpack.c.h.b16 %v2727
    %v3573 = vunpack.c.l.b16 %v2728
    %v3574 = vunpack.c.h.b16 %v2728
    %v3575 = vunpack.c.l.b16 %v2729
    %v3576 = vunpack.c.h.b16 %v2729
    %v3577 = vunpack.c.l.b16 %v2730
    %v3578 = vunpack.c.h.b16 %v2730
    %v3579 = vunpack.c.l.b16 %v2731
    %v3580 = vunpack.c.h.b16 %v2731
    %v3581 = vunpack.c.l.b16 %v2732
    %v3582 = vunpack.c.h.b16 %v2732
    %v3583 = vunpack.c.l.b16 %v2733
    %v3584 = vunpack.c.h.b16 %v2733
    %v3585 = vunpack.c.l.b16 %v2734
    %v3586 = vunpack.c.h.b16 %v2734
    %v3587 = vunpack.c.l.b16 %v2735
    %v3588 = vunpack.c.h.b16 %v2735
    %v3589 = vunpack.c.l.b16 %v2736
    %v3590 = vunpack.c.h.b16 %v2736
    %v3591 = vunpack.c.l.b16 %v2737
    %v3592 = vunpack.c.h.b16 %v2737
    %v3593 = vunpack.c.l.b16 %v2738
    %v3594 = vunpack.c.h.b16 %v2738
    %v3595 = vunpack.c.l.b16 %v2739
    %v3596 = vunpack.c.h.b16 %v2739
    %v3597 = vunpack.c.l.b16 %v2740
    %v3598 = vunpack.c.h.b16 %v2740
    %v3599 = vunpack.c.l.b16 %v2741
    %v3600 = vunpack.c.h.b16 %v2741
    %v3601 = vunpack.c.l.b16 %v2742
    %v3602 = vunpack.c.h.b16 %v2742
    %v3603 = vunpack.c.l.b16 %v2743
    %v3604 = vunpack.c.h.b16 %v2743
    %v3605 = vunpack.c.l.b16 %v2744
    %v3606 = vunpack.c.h.b16 %v2744
    %v3607 = vunpack.c.l.b16 %v2745
    %v3608 = vunpack.c.h.b16 %v2745
    %v3609 = vunpack.c.l.b16 %v2746
    %v3610 = vunpack.c.h.b16 %v2746
    %v3611 = vunpack.c.l.b16 %v2747
    %v3612 = vunpack.c.h.b16 %v2747
    %v3613 = vunpack.c.l.b16 %v2748
    %v3614 = vunpack.c.h.b16 %v2748
    %v3615 = vunpack.c.l.b16 %v2749
    %v3616 = vunpack.c.h.b16 %v2749
    %v3617 = vunpack.c.l.b16 %v2750
    %v3618 = vunpack.c.h.b16 %v2750
    %v3619 = vunpack.c.l.b16 %v2751
    %v3620 = vunpack.c.h.b16 %v2751
    %v3621 = vunpack.c.l.b16 %v2752
    %v3622 = vunpack.c.h.b16 %v2752
    %v3623 = vunpack.c.l.b16 %v2753
    %v3624 = vunpack.c.h.b16 %v2753
    %v3625 = vunpack.c.l.b16 %v2754
    %v3626 = vunpack.c.h.b16 %v2754
    %v3627 = vunpack.c.l.b16 %v2755
    %v3628 = vunpack.c.h.b16 %v2755
    %v3629 = vunpack.c.l.b16 %v2756
    %v3630 = vunpack.c.h.b16 %v2756
    %v3631 = vunpack.c.l.b16 %v2757
    %v3632 = vunpack.c.h.b16 %v2757
    %v3633 = vunpack.c.l.b16 %v2758
    %v3634 = vunpack.c.h.b16 %v2758
    %v3635 = vunpack.c.l.b16 %v2759
    %v3636 = vunpack.c.h.b16 %v2759
    %v3637 = vunpack.c.l.b16 %v2760
    %v3638 = vunpack.c.h.b16 %v2760
    %v3639 = vunpack.c.l.b16 %v2761
    %v3640 = vunpack.c.h.b16 %v2761
    %v3641 = vunpack.c.l.b16 %v2762
    %v3642 = vunpack.c.h.b16 %v2762
    %v3643 = vunpack.c.l.b16 %v2763
    %v3644 = vunpack.c.h.b16 %v2763
    %v3645 = vunpack.c.l.b16 %v2764
    %v3646 = vunpack.c.h.b16 %v2764
    %v3647 = vunpack.c.l.b16 %v2765
    %v3648 = vunpack.c.h.b16 %v2765
    %v3649 = vunpack.c.l.b16 %v2766
    %v3650 = vunpack.c.h.b16 %v2766
    %v3651 = vunpack.c.l.b16 %v2767
    %v3652 = vunpack.c.h.b16 %v2767
    %v3653 = vunpack.c.l.b16 %v2768
    %v3654 = vunpack.c.h.b16 %v2768
    %v3655 = vpack.c.b16 %v3083, %v3079
    %v3656 = vpack.c.b16 %v3084, %v3080
    %v3657 = vpack.c.b16 %v3085, %v3081
    %v3658 = vpack.c.b16 %v3086, %v3082
    %v3659 = vpack.c.b16 %v3091, %v3087
    %v3660 = vpack.c.b16 %v3092, %v3088
    %v3661 = vpack.c.b16 %v3093, %v3089
    %v3662 = vpack.c.b16 %v3094, %v3090
    %v3663 = vpack.c.b16 %v3099, %v3095
    %v3664 = vpack.c.b16 %v3100, %v3096
    %v3665 = vpack.c.b16 %v3101, %v3097
    %v3666 = vpack.c.b16 %v3102, %v3098
    %v3667 = vpack.c.b16 %v3107, %v3103
    %v3668 = vpack.c.b16 %v3108, %v3104
    %v3669 = vpack.c.b16 %v3109, %v3105
    %v3670 = vpack.c.b16 %v3110, %v3106
    %v3671 = vpack.c.b16 %v3115, %v3111
    %v3672 = vpack.c.b16 %v3116, %v3112
    %v3673 = vpack.c.b16 %v3117, %v3113
    %v3674 = vpack.c.b16 %v3118, %v3114
    %v3675 = vpack.c.b16 %v3123, %v3119
    %v3676 = vpack.c.b16 %v3124, %v3120
    %v3677 = vpack.c.b16 %v3125, %v3121
    %v3678 = vpack.c.b16 %v3126, %v3122
    %v3679 = vpack.c.b16 %v3131, %v3127
    %v3680 = vpack.c.b16 %v3132, %v3128
    %v3681 = vpack.c.b16 %v3133, %v3129
    %v3682 = vpack.c.b16 %v3134, %v3130
    %v3683 = vpack.c.b16 %v3139, %v3135
    %v3684 = vpack.c.b16 %v3140, %v3136
    %v3685 = vpack.c.b16 %v3141, %v3137
    %v3686 = vpack.c.b16 %v3142, %v3138
    %v3687 = vpack.c.b16 %v3147, %v3143
    %v3688 = vpack.c.b16 %v3148, %v3144
    %v3689 = vpack.c.b16 %v3149, %v3145
    %v3690 = vpack.c.b16 %v3150, %v3146
    %v3691 = vpack.c.b16 %v3155, %v3151
    %v3692 = vpack.c.b16 %v3156, %v3152
    %v3693 = vpack.c.b16 %v3157, %v3153
    %v3694 = vpack.c.b16 %v3158, %v3154
    %v3695 = vpack.c.b16 %v3163, %v3159
    %v3696 = vpack.c.b16 %v3164, %v3160
    %v3697 = vpack.c.b16 %v3165, %v3161
    %v3698 = vpack.c.b16 %v3166, %v3162
    %v3699 = vpack.c.b16 %v3171, %v3167
    %v3700 = vpack.c.b16 %v3172, %v3168
    %v3701 = vpack.c.b16 %v3173, %v3169
    %v3702 = vpack.c.b16 %v3174, %v3170
    %v3703 = vpack.c.b16 %v3179, %v3175
    %v3704 = vpack.c.b16 %v3180, %v3176
    %v3705 = vpack.c.b16 %v3181, %v3177
    %v3706 = vpack.c.b16 %v3182, %v3178
    %v3707 = vpack.c.b16 %v3187, %v3183
    %v3708 = vpack.c.b16 %v3188, %v3184
    %v3709 = vpack.c.b16 %v3189, %v3185
    %v3710 = vpack.c.b16 %v3190, %v3186
    %v3711 = vpack.c.b16 %v3195, %v3191
    %v3712 = vpack.c.b16 %v3196, %v3192
    %v3713 = vpack.c.b16 %v3197, %v3193
    %v3714 = vpack.c.b16 %v3198, %v3194
    %v3715 = vpack.c.b16 %v3203, %v3199
    %v3716 = vpack.c.b16 %v3204, %v3200
    %v3717 = vpack.c.b16 %v3205, %v3201
    %v3718 = vpack.c.b16 %v3206, %v3202
    %v3719 = vpack.c.b16 %v3211, %v3207
    %v3720 = vpack.c.b16 %v3212, %v3208
    %v3721 = vpack.c.b16 %v3213, %v3209
    %v3722 = vpack.c.b16 %v3214, %v3210
    %v3723 = vpack.c.b16 %v3219, %v3215
    %v3724 = vpack.c.b16 %v3220, %v3216
    %v3725 = vpack.c.b16 %v3221, %v3217
    %v3726 = vpack.c.b16 %v3222, %v3218
    %v3727 = vpack.c.b16 %v3227, %v3223
    %v3728 = vpack.c.b16 %v3228, %v3224
    %v3729 = vpack.c.b16 %v3229, %v3225
    %v3730 = vpack.c.b16 %v3230, %v3226
    %v3731 = vpack.c.b16 %v3235, %v3231
    %v3732 = vpack.c.b16 %v3236, %v3232
    %v3733 = vpack.c.b16 %v3237, %v3233
    %v3734 = vpack.c.b16 %v3238, %v3234
    %v3735 = vpack.c.b16 %v3243, %v3239
    %v3736 = vpack.c.b16 %v3244, %v3240
    %v3737 = vpack.c.b16 %v3245, %v3241
    %v3738 = vpack.c.b16 %v3246, %v3242
    %v3739 = vpack.c.b16 %v3251, %v3247
    %v3740 = vpack.c.b16 %v3252, %v3248
    %v3741 = vpack.c.b16 %v3253, %v3249
    %v3742 = vpack.c.b16 %v3254, %v3250
    %v3743 = vpack.c.b16 %v3259, %v3255
    %v3744 = vpack.c.b16 %v3260, %v3256
    %v3745 = vpack.c.b16 %v3261, %v3257
    %v3746 = vpack.c.b16 %v3262, %v3258
    %v3747 = vpack.c.b16 %v3267, %v3263
    %v3748 = vpack.c.b16 %v3268, %v3264
    %v3749 = vpack.c.b16 %v3269, %v3265
    %v3750 = vpack.c.b16 %v3270, %v3266
    %v3751 = vpack.c.b16 %v3275, %v3271
    %v3752 = vpack.c.b16 %v3276, %v3272
    %v3753 = vpack.c.b16 %v3277, %v3273
    %v3754 = vpack.c.b16 %v3278, %v3274
    %v3755 = vpack.c.b16 %v3283, %v3279
    %v3756 = vpack.c.b16 %v3284, %v3280
    %v3757 = vpack.c.b16 %v3285, %v3281
    %v3758 = vpack.c.b16 %v3286, %v3282
    %v3759 = vpack.c.b16 %v3291, %v3287
    %v3760 = vpack.c.b16 %v3292, %v3288
    %v3761 = vpack.c.b16 %v3293, %v3289
    %v3762 = vpack.c.b16 %v3294, %v3290
    %v3763 = vpack.c.b16 %v3299, %v3295
    %v3764 = vpack.c.b16 %v3300, %v3296
    %v3765 = vpack.c.b16 %v3301, %v3297
    %v3766 = vpack.c.b16 %v3302, %v3298
    %v3767 = vpack.c.b16 %v3307, %v3303
    %v3768 = vpack.c.b16 %v3308, %v3304
    %v3769 = vpack.c.b16 %v3309, %v3305
    %v3770 = vpack.c.b16 %v3310, %v3306
    %v3771 = vpack.c.b16 %v3315, %v3311
    %v3772 = vpack.c.b16 %v3316, %v3312
    %v3773 = vpack.c.b16 %v3317, %v3313
    %v3774 = vpack.c.b16 %v3318, %v3314
    %v3775 = vpack.c.b16 %v3323, %v3319
    %v3776 = vpack.c.b16 %v3324, %v3320
    %v3777 = vpack.c.b16 %v3325, %v3321
    %v3778 = vpack.c.b16 %v3326, %v3322
    %v3779 = vpack.c.b16 %v3331, %v3327
    %v3780 = vpack.c.b16 %v3332, %v3328
    %v3781 = vpack.c.b16 %v3333, %v3329
    %v3782 = vpack.c.b16 %v3334, %v3330
    %v3783 = vpack.c.b16 %v3339, %v3335
    %v3784 = vpack.c.b16 %v3340, %v3336
    %v3785 = vpack.c.b16 %v3341, %v3337
    %v3786 = vpack.c.b16 %v3342, %v3338
    %v3787 = vpack.c.b16 %v3347, %v3343
    %v3788 = vpack.c.b16 %v3348, %v3344
    %v3789 = vpack.c.b16 %v3349, %v3345
    %v3790 = vpack.c.b16 %v3350, %v3346
    %v3791 = vpack.c.b16 %v3355, %v3351
    %v3792 = vpack.c.b16 %v3356, %v3352
    %v3793 = vpack.c.b16 %v3357, %v3353
    %v3794 = vpack.c.b16 %v3358, %v3354
    %v3795 = vpack.c.b16 %v3363, %v3359
    %v3796 = vpack.c.b16 %v3364, %v3360
    %v3797 = vpack.c.b16 %v3365, %v3361
    %v3798 = vpack.c.b16 %v3366, %v3362
    %v3799 = vpack.c.b16 %v3371, %v3367
    %v3800 = vpack.c.b16 %v3372, %v3368
    %v3801 = vpack.c.b16 %v3373, %v3369
    %v3802 = vpack.c.b16 %v3374, %v3370
    %v3803 = vpack.c.b16 %v3379, %v3375
    %v3804 = vpack.c.b16 %v3380, %v3376
    %v3805 = vpack.c.b16 %v3381, %v3377
    %v3806 = vpack.c.b16 %v3382, %v3378
    %v3807 = vpack.c.b16 %v3387, %v3383
    %v3808 = vpack.c.b16 %v3388, %v3384
    %v3809 = vpack.c.b16 %v3389, %v3385
    %v3810 = vpack.c.b16 %v3390, %v3386
    %v3811 = vpack.c.b16 %v3395, %v3391
    %v3812 = vpack.c.b16 %v3396, %v3392
    %v3813 = vpack.c.b16 %v3397, %v3393
    %v3814 = vpack.c.b16 %v3398, %v3394
    %v3815 = vpack.c.b16 %v3403, %v3399
    %v3816 = vpack.c.b16 %v3404, %v3400
    %v3817 = vpack.c.b16 %v3405, %v3401
    %v3818 = vpack.c.b16 %v3406, %v3402
    %v3819 = vpack.c.b16 %v3411, %v3407
    %v3820 = vpack.c.b16 %v3412, %v3408
    %v3821 = vpack.c.b16 %v3413, %v3409
    %v3822 = vpack.c.b16 %v3414, %v3410
    %v3823 = vpack.c.b16 %v3419, %v3415
    %v3824 = vpack.c.b16 %v3420, %v3416
    %v3825 = vpack.c.b16 %v3421, %v3417
    %v3826 = vpack.c.b16 %v3422, %v3418
    %v3827 = vpack.c.b16 %v3427, %v3423
    %v3828 = vpack.c.b16 %v3428, %v3424
    %v3829 = vpack.c.b16 %v3429, %v3425
    %v3830 = vpack.c.b16 %v3430, %v3426
    %v3831 = vpack.c.b16 %v3435, %v3431
    %v3832 = vpack.c.b16 %v3436, %v3432
    %v3833 = vpack.c.b16 %v3437, %v3433
    %v3834 = vpack.c.b16 %v3438, %v3434
    %v3835 = vpack.c.b16 %v3443, %v3439
    %v3836 = vpack.c.b16 %v3444, %v3440
    %v3837 = vpack.c.b16 %v3445, %v3441
    %v3838 = vpack.c.b16 %v3446, %v3442
    %v3839 = vpack.c.b16 %v3451, %v3447
    %v3840 = vpack.c.b16 %v3452, %v3448
    %v3841 = vpack.c.b16 %v3453, %v3449
    %v3842 = vpack.c.b16 %v3454, %v3450
    %v3843 = vpack.c.b16 %v3459, %v3455
    %v3844 = vpack.c.b16 %v3460, %v3456
    %v3845 = vpack.c.b16 %v3461, %v3457
    %v3846 = vpack.c.b16 %v3462, %v3458
    %v3847 = vpack.c.b16 %v3467, %v3463
    %v3848 = vpack.c.b16 %v3468, %v3464
    %v3849 = vpack.c.b16 %v3469, %v3465
    %v3850 = vpack.c.b16 %v3470, %v3466
    %v3851 = vpack.c.b16 %v3475, %v3471
    %v3852 = vpack.c.b16 %v3476, %v3472
    %v3853 = vpack.c.b16 %v3477, %v3473
    %v3854 = vpack.c.b16 %v3478, %v3474
    %v3855 = vpack.c.b16 %v3483, %v3479
    %v3856 = vpack.c.b16 %v3484, %v3480
    %v3857 = vpack.c.b16 %v3485, %v3481
    %v3858 = vpack.c.b16 %v3486, %v3482
    %v3859 = vpack.c.b16 %v3491, %v3487
    %v3860 = vpack.c.b16 %v3492, %v3488
    %v3861 = vpack.c.b16 %v3493, %v3489
    %v3862 = vpack.c.b16 %v3494, %v3490
    %v3863 = vpack.c.b16 %v3499, %v3495
    %v3864 = vpack.c.b16 %v3500, %v3496
    %v3865 = vpack.c.b16 %v3501, %v3497
    %v3866 = vpack.c.b16 %v3502, %v3498
    %v3867 = vpack.c.b16 %v3507, %v3503
    %v3868 = vpack.c.b16 %v3508, %v3504
    %v3869 = vpack.c.b16 %v3509, %v3505
    %v3870 = vpack.c.b16 %v3510, %v3506
    %v3871 = vpack.c.b16 %v3515, %v3511
    %v3872 = vpack.c.b16 %v3516, %v3512
    %v3873 = vpack.c.b16 %v3517, %v3513
    %v3874 = vpack.c.b16 %v3518, %v3514
    %v3875 = vpack.c.b16 %v3523, %v3519
    %v3876 = vpack.c.b16 %v3524, %v3520
    %v3877 = vpack.c.b16 %v3525, %v3521
    %v3878 = vpack.c.b16 %v3526, %v3522
    %v3879 = vpack.c.b16 %v3531, %v3527
    %v3880 = vpack.c.b16 %v3532, %v3528
    %v3881 = vpack.c.b16 %v3533, %v3529
    %v3882 = vpack.c.b16 %v3534, %v3530
    %v3883 = vpack.c.b16 %v3539, %v3535
    %v3884 = vpack.c.b16 %v3540, %v3536
    %v3885 = vpack.c.b16 %v3541, %v3537
    %v3886 = vpack.c.b16 %v3542, %v3538
    %v3887 = vpack.c.b16 %v3547, %v3543
    %v3888 = vpack.c.b16 %v3548, %v3544
    %v3889 = vpack.c.b16 %v3549, %v3545
    %v3890 = vpack.c.b16 %v3550, %v3546
    %v3891 = vpack.c.b16 %v3555, %v3551
    %v3892 = vpack.c.b16 %v3556, %v3552
    %v3893 = vpack.c.b16 %v3557, %v3553
    %v3894 = vpack.c.b16 %v3558, %v3554
    %v3895 = vpack.c.b16 %v3563, %v3559
    %v3896 = vpack.c.b16 %v3564, %v3560
    %v3897 = vpack.c.b16 %v3565, %v3561
    %v3898 = vpack.c.b16 %v3566, %v3562
    %v3899 = vpack.c.b16 %v3571, %v3567
    %v3900 = vpack.c.b16 %v3572, %v3568
    %v3901 = vpack.c.b16 %v3573, %v3569
    %v3902 = vpack.c.b16 %v3574, %v3570
    %v3903 = vpack.c.b16 %v3579, %v3575
    %v3904 = vpack.c.b16 %v3580, %v3576
    %v3905 = vpack.c.b16 %v3581, %v3577
    %v3906 = vpack.c.b16 %v3582, %v3578
    %v3907 = vpack.c.b16 %v3587, %v3583
    %v3908 = vpack.c.b16 %v3588, %v3584
    %v3909 = vpack.c.b16 %v3589, %v3585
    %v3910 = vpack.c.b16 %v3590, %v3586
    %v3911 = vpack.c.b16 %v3595, %v3591
    %v3912 = vpack.c.b16 %v3596, %v3592
    %v3913 = vpack.c.b16 %v3597, %v3593
    %v3914 = vpack.c.b16 %v3598, %v3594
    %v3915 = vpack.c.b16 %v3603, %v3599
    %v3916 = vpack.c.b16 %v3604, %v3600
    %v3917 = vpack.c.b16 %v3605, %v3601
    %v3918 = vpack.c.b16 %v3606, %v3602
    %v3919 = vpack.c.b16 %v3611, %v3607
    %v3920 = vpack.c.b16 %v3612, %v3608
    %v3921 = vpack.c.b16 %v3613, %v3609
    %v3922 = vpack.c.b16 %v3614, %v3610
    %v3923 = vpack.c.b16 %v3619, %v3615
    %v3924 = vpack.c.b16 %v3620, %v3616
    %v3925 = vpack.c.b16 %v3621, %v3617
    %v3926 = vpack.c.b16 %v3622, %v3618
    %v3927 = vpack.c.b16 %v3627, %v3623
    %v3928 = vpack.c.b16 %v3628, %v3624
    %v3929 = vpack.c.b16 %v3629, %v3625
    %v3930 = vpack.c.b16 %v3630, %v3626
    %v3931 = vpack.c.b16 %v3635, %v3631
    %v3932 = vpack.c.b16 %v3636, %v3632
    %v3933 = vpack.c.b16 %v3637, %v3633
    %v3934 = vpack.c.b16 %v3638, %v3634
    %v3935 = vpack.c.b16 %v3643, %v3639
    %v3936 = vpack.c.b16 %v3644, %v3640
    %v3937 = vpack.c.b16 %v3645, %v3641
    %v3938 = vpack.c.b16 %v3646, %v3642
    %v3939 = vpack.c.b16 %v3651, %v3647
    %v3940 = vpack.c.b16 %v3652, %v3648
    %v3941 = vpack.c.b16 %v3653, %v3649
    %v3942 = vpack.c.b16 %v3654, %v3650
    %4231 = vmatprep.subr.bf16.mxu0 %v3656
    %4232 = vmatpush1.bf16.msra.mxu0 %v3655
    %4233 = vmatprep.subr.bf16.mxu0 %v3660
    %4234 = vmatpush1.bf16.msra.mxu0 %v3659
    %4235 = vmatprep.subr.bf16.mxu0 %v3664
    %4236 = vmatpush1.bf16.msra.mxu0 %v3663
    %4237 = vmatprep.subr.bf16.mxu0 %v3668
    %4238 = vmatpush1.bf16.msra.mxu0 %v3667
    %4239 = vmatprep.subr.bf16.mxu0 %v3672
    %4240 = vmatpush1.bf16.msra.mxu0 %v3671
    %4241 = vmatprep.subr.bf16.mxu0 %v3676
    %4242 = vmatpush1.bf16.msra.mxu0 %v3675
    %4243 = vmatprep.subr.bf16.mxu0 %v3680
    %4244 = vmatpush1.bf16.msra.mxu0 %v3679
    %4245 = vmatprep.subr.bf16.mxu0 %v3684
    %4246 = vmatpush1.bf16.msra.mxu0 %v3683
    %4247 = vmatprep.subr.bf16.mxu0 %v3688
    %4248 = vmatpush1.bf16.msra.mxu0 %v3687
    %4249 = vmatprep.subr.bf16.mxu0 %v3692
    %4250 = vmatpush1.bf16.msra.mxu0 %v3691
    %4251 = vmatprep.subr.bf16.mxu0 %v3696
    %4252 = vmatpush1.bf16.msra.mxu0 %v3695
    %4253 = vmatprep.subr.bf16.mxu0 %v3700
    %4254 = vmatpush1.bf16.msra.mxu0 %v3699
    %4255 = vmatprep.subr.bf16.mxu0 %v3704
    %4256 = vmatpush1.bf16.msra.mxu0 %v3703
    %4257 = vmatprep.subr.bf16.mxu0 %v3708
    %4258 = vmatpush1.bf16.msra.mxu0 %v3707
    %4259 = vmatprep.subr.bf16.mxu0 %v3712
    %4260 = vmatpush1.bf16.msra.mxu0 %v3711
    %4261 = vmatprep.subr.bf16.mxu0 %v3716
    %4262 = vmatpush1.bf16.msra.mxu0 %v3715
    %4263 = vmatprep.mubr.bf16.mxu0 %v2473
    %4264 = vmatmul.mubr.bf16.gmra.mrb[0].mxu0 %v2472
    %v4265 = vpop.f32.mrb[0].mxu0
    %v4266 = vadd.f32 %v2774, %v4265
    %v4267 = vpop.f32.mrb[0].mxu0
    %v4268 = vadd.f32 %v2778, %v4267
    %v4269 = vpop.f32.mrb[0].mxu0
    %v4270 = vpop.f32.mrb[0].mxu0
    %4271 = vdwg.mxu0
    %4272 = vmatprep.subr.bf16.mxu0 %v3720
    %4273 = vmatpush1.bf16.msra.mxu0 %v3719
    %4274 = vmatprep.subr.bf16.mxu0 %v3724
    %4275 = vmatpush1.bf16.msra.mxu0 %v3723
    %4276 = vmatprep.subr.bf16.mxu0 %v3728
    %4277 = vmatpush1.bf16.msra.mxu0 %v3727
    %4278 = vmatprep.subr.bf16.mxu0 %v3732
    %4279 = vmatpush1.bf16.msra.mxu0 %v3731
    %4280 = vmatprep.subr.bf16.mxu0 %v3736
    %4281 = vmatpush1.bf16.msra.mxu0 %v3735
    %4282 = vmatprep.subr.bf16.mxu0 %v3740
    %4283 = vmatpush1.bf16.msra.mxu0 %v3739
    %4284 = vmatprep.subr.bf16.mxu0 %v3744
    %4285 = vmatpush1.bf16.msra.mxu0 %v3743
    %4286 = vmatprep.subr.bf16.mxu0 %v3748
    %4287 = vmatpush1.bf16.msra.mxu0 %v3747
    %4288 = vmatprep.subr.bf16.mxu0 %v3752
    %4289 = vmatpush1.bf16.msra.mxu0 %v3751
    %4290 = vmatprep.subr.bf16.mxu0 %v3756
    %4291 = vmatpush1.bf16.msra.mxu0 %v3755
    %4292 = vmatprep.subr.bf16.mxu0 %v3760
    %4293 = vmatpush1.bf16.msra.mxu0 %v3759
    %4294 = vmatprep.subr.bf16.mxu0 %v3764
    %4295 = vmatpush1.bf16.msra.mxu0 %v3763
    %4296 = vmatprep.subr.bf16.mxu0 %v3768
    %4297 = vmatpush1.bf16.msra.mxu0 %v3767
    %4298 = vmatprep.subr.bf16.mxu0 %v3772
    %4299 = vmatpush1.bf16.msra.mxu0 %v3771
    %4300 = vmatprep.subr.bf16.mxu0 %v3776
    %4301 = vmatpush1.bf16.msra.mxu0 %v3775
    %4302 = vmatprep.subr.bf16.mxu0 %v3780
    %4303 = vmatpush1.bf16.msra.mxu0 %v3779
    %4304 = vmatprep.mubr.bf16.mxu0 %v2475
    %4305 = vmatmul.mubr.bf16.gmra.mrb[0].mxu0 %v2474
    %v4306 = vpop.f32.mrb[0].mxu0
    %v4307 = vadd.f32 %v4266, %v4306
    %v4308 = vpop.f32.mrb[0].mxu0
    %v4309 = vadd.f32 %v4268, %v4308
    %v4310 = vpop.f32.mrb[0].mxu0
    %v4311 = vpop.f32.mrb[0].mxu0
    %4312 = vdwg.mxu0
    %4313 = vmatprep.subr.bf16.mxu0 %v3784
    %4314 = vmatpush1.bf16.msra.mxu0 %v3783
    %4315 = vmatprep.subr.bf16.mxu0 %v3788
    %4316 = vmatpush1.bf16.msra.mxu0 %v3787
    %4317 = vmatprep.subr.bf16.mxu0 %v3792
    %4318 = vmatpush1.bf16.msra.mxu0 %v3791
    %4319 = vmatprep.subr.bf16.mxu0 %v3796
    %4320 = vmatpush1.bf16.msra.mxu0 %v3795
    %4321 = vmatprep.subr.bf16.mxu0 %v3800
    %4322 = vmatpush1.bf16.msra.mxu0 %v3799
    %4323 = vmatprep.subr.bf16.mxu0 %v3804
    %4324 = vmatpush1.bf16.msra.mxu0 %v3803
    %4325 = vmatprep.subr.bf16.mxu0 %v3808
    %4326 = vmatpush1.bf16.msra.mxu0 %v3807
    %4327 = vmatprep.subr.bf16.mxu0 %v3812
    %4328 = vmatpush1.bf16.msra.mxu0 %v3811
    %4329 = vmatprep.subr.bf16.mxu0 %v3816
    %4330 = vmatpush1.bf16.msra.mxu0 %v3815
    %4331 = vmatprep.subr.bf16.mxu0 %v3820
    %4332 = vmatpush1.bf16.msra.mxu0 %v3819
    %4333 = vmatprep.subr.bf16.mxu0 %v3824
    %4334 = vmatpush1.bf16.msra.mxu0 %v3823
    %4335 = vmatprep.subr.bf16.mxu0 %v3828
    %4336 = vmatpush1.bf16.msra.mxu0 %v3827
    %4337 = vmatprep.subr.bf16.mxu0 %v3832
    %4338 = vmatpush1.bf16.msra.mxu0 %v3831
    %4339 = vmatprep.subr.bf16.mxu0 %v3836
    %4340 = vmatpush1.bf16.msra.mxu0 %v3835
    %4341 = vmatprep.subr.bf16.mxu0 %v3840
    %4342 = vmatpush1.bf16.msra.mxu0 %v3839
    %4343 = vmatprep.subr.bf16.mxu0 %v3844
    %4344 = vmatpush1.bf16.msra.mxu0 %v3843
    %4345 = vmatprep.mubr.bf16.mxu0 %v2477
    %4346 = vmatmul.mubr.bf16.gmra.mrb[0].mxu0 %v2476
    %v4347 = vpop.f32.mrb[0].mxu0
    %v4348 = vadd.f32 %v4307, %v4347
    %v4349 = vpop.f32.mrb[0].mxu0
    %v4350 = vadd.f32 %v4309, %v4349
    %v4351 = vpop.f32.mrb[0].mxu0
    %v4352 = vpop.f32.mrb[0].mxu0
    %4353 = vdwg.mxu0
    %4354 = vmatprep.subr.bf16.mxu0 %v3848
    %4355 = vmatpush1.bf16.msra.mxu0 %v3847
    %4356 = vmatprep.subr.bf16.mxu0 %v3852
    %4357 = vmatpush1.bf16.msra.mxu0 %v3851
    %4358 = vmatprep.subr.bf16.mxu0 %v3856
    %4359 = vmatpush1.bf16.msra.mxu0 %v3855
    %4360 = vmatprep.subr.bf16.mxu0 %v3860
    %4361 = vmatpush1.bf16.msra.mxu0 %v3859
    %4362 = vmatprep.subr.bf16.mxu0 %v3864
    %4363 = vmatpush1.bf16.msra.mxu0 %v3863
    %4364 = vmatprep.subr.bf16.mxu0 %v3868
    %4365 = vmatpush1.bf16.msra.mxu0 %v3867
    %4366 = vmatprep.subr.bf16.mxu0 %v3872
    %4367 = vmatpush1.bf16.msra.mxu0 %v3871
    %4368 = vmatprep.subr.bf16.mxu0 %v3876
    %4369 = vmatpush1.bf16.msra.mxu0 %v3875
    %4370 = vmatprep.subr.bf16.mxu0 %v3880
    %4371 = vmatpush1.bf16.msra.mxu0 %v3879
    %4372 = vmatprep.subr.bf16.mxu0 %v3884
    %4373 = vmatpush1.bf16.msra.mxu0 %v3883
    %4374 = vmatprep.subr.bf16.mxu0 %v3888
    %4375 = vmatpush1.bf16.msra.mxu0 %v3887
    %4376 = vmatprep.subr.bf16.mxu0 %v3892
    %4377 = vmatpush1.bf16.msra.mxu0 %v3891
    %4378 = vmatprep.subr.bf16.mxu0 %v3896
    %4379 = vmatpush1.bf16.msra.mxu0 %v3895
    %4380 = vmatprep.subr.bf16.mxu0 %v3900
    %4381 = vmatpush1.bf16.msra.mxu0 %v3899
    %4382 = vmatprep.subr.bf16.mxu0 %v3904
    %4383 = vmatpush1.bf16.msra.mxu0 %v3903
    %4384 = vmatprep.subr.bf16.mxu0 %v3908
    %4385 = vmatpush1.bf16.msra.mxu0 %v3907
    %4386 = vmatprep.mubr.bf16.mxu0 %v2479
    %4387 = vmatmul.mubr.bf16.gmra.mrb[0].mxu0 %v2478
    %v4388 = vpop.f32.mrb[0].mxu0
    %v4389 = vadd.f32 %v4348, %v4388
    %v4390 = vpop.f32.mrb[0].mxu0
    %v4391 = vadd.f32 %v4350, %v4390
    %v4392 = vpop.f32.mrb[0].mxu0
    %v4393 = vpop.f32.mrb[0].mxu0
    %4394 = vdwg.mxu0
    %4395 = vmatprep.subr.bf16.mxu0 %v3912
    %4396 = vmatpush1.bf16.msra.mxu0 %v3911
    %4397 = vmatprep.subr.bf16.mxu0 %v3916
    %4398 = vmatpush1.bf16.msra.mxu0 %v3915
    %4399 = vmatprep.subr.bf16.mxu0 %v3920
    %4400 = vmatpush1.bf16.msra.mxu0 %v3919
    %4401 = vmatprep.subr.bf16.mxu0 %v3924
    %4402 = vmatpush1.bf16.msra.mxu0 %v3923
    %4403 = vmatprep.subr.bf16.mxu0 %v3928
    %4404 = vmatpush1.bf16.msra.mxu0 %v3927
    %4405 = vmatprep.subr.bf16.mxu0 %v3932
    %4406 = vmatpush1.bf16.msra.mxu0 %v3931
    %4407 = vmatprep.subr.bf16.mxu0 %v3936
    %4408 = vmatpush1.bf16.msra.mxu0 %v3935
    %4409 = vmatprep.subr.bf16.mxu0 %v3940
    %4410 = vmatpush1.bf16.msra.mxu0 %v3939
    %4411 = vmatprep.subr.bf16.mxu0 0
    %4412 = vmatpush1.bf16.msra.mxu0 0
    %4413 = vmatprep.subr.bf16.mxu0 0
    %4414 = vmatpush1.bf16.msra.mxu0 0
    %4415 = vmatprep.subr.bf16.mxu0 0
    %4416 = vmatpush1.bf16.msra.mxu0 0
    %4417 = vmatprep.subr.bf16.mxu0 0
    %4418 = vmatpush1.bf16.msra.mxu0 0
    %4419 = vmatprep.subr.bf16.mxu0 0
    %4420 = vmatpush1.bf16.msra.mxu0 0
    %4421 = vmatprep.subr.bf16.mxu0 0
    %4422 = vmatpush1.bf16.msra.mxu0 0
    %4423 = vmatprep.subr.bf16.mxu0 0
    %4424 = vmatpush1.bf16.msra.mxu0 0
    %4425 = vmatprep.subr.bf16.mxu0 0
    %4426 = vmatpush1.bf16.msra.mxu0 0
    %4427 = vmatprep.mubr.bf16.mxu0 0
    %4428 = vmatmul.mubr.bf16.gmra.mrb[0].mxu0 %v2480
    %v4429 = vpop.f32.mrb[0].mxu0
    %v4430 = vadd.f32 %v4389, %v4429
    %v4431 = vpop.f32.mrb[0].mxu0
    %v4432 = vadd.f32 %v4391, %v4431
    %v4433 = vpop.f32.mrb[0].mxu0
    %v4434 = vpop.f32.mrb[0].mxu0
    %4435 = vdwg.mxu0
    %4436 = vmatprep.subr.bf16.mxu0 %v3658
    %4437 = vmatpush1.bf16.msra.mxu0 %v3657
    %4438 = vmatprep.subr.bf16.mxu0 %v3662
    %4439 = vmatpush1.bf16.msra.mxu0 %v3661
    %4440 = vmatprep.subr.bf16.mxu0 %v3666
    %4441 = vmatpush1.bf16.msra.mxu0 %v3665
    %4442 = vmatprep.subr.bf16.mxu0 %v3670
    %4443 = vmatpush1.bf16.msra.mxu0 %v3669
    %4444 = vmatprep.subr.bf16.mxu0 %v3674
    %4445 = vmatpush1.bf16.msra.mxu0 %v3673
    %4446 = vmatprep.subr.bf16.mxu0 %v3678
    %4447 = vmatpush1.bf16.msra.mxu0 %v3677
    %4448 = vmatprep.subr.bf16.mxu0 %v3682
    %4449 = vmatpush1.bf16.msra.mxu0 %v3681
    %4450 = vmatprep.subr.bf16.mxu0 %v3686
    %4451 = vmatpush1.bf16.msra.mxu0 %v3685
    %4452 = vmatprep.subr.bf16.mxu0 %v3690
    %4453 = vmatpush1.bf16.msra.mxu0 %v3689
    %4454 = vmatprep.subr.bf16.mxu0 %v3694
    %4455 = vmatpush1.bf16.msra.mxu0 %v3693
    %4456 = vmatprep.subr.bf16.mxu0 %v3698
    %4457 = vmatpush1.bf16.msra.mxu0 %v3697
    %4458 = vmatprep.subr.bf16.mxu0 %v3702
    %4459 = vmatpush1.bf16.msra.mxu0 %v3701
    %4460 = vmatprep.subr.bf16.mxu0 %v3706
    %4461 = vmatpush1.bf16.msra.mxu0 %v3705
    %4462 = vmatprep.subr.bf16.mxu0 %v3710
    %4463 = vmatpush1.bf16.msra.mxu0 %v3709
    %4464 = vmatprep.subr.bf16.mxu0 %v3714
    %4465 = vmatpush1.bf16.msra.mxu0 %v3713
    %4466 = vmatprep.subr.bf16.mxu0 %v3718
    %4467 = vmatpush1.bf16.msra.mxu0 %v3717
    %4468 = vmatprep.mubr.bf16.mxu0 %v2473
    %4469 = vmatmul.mubr.bf16.gmra.mrb[0].mxu0 %v2472
    %v4470 = vpop.f32.mrb[0].mxu0
    %v4471 = vadd.f32 %v2782, %v4470
    %v4472 = vpop.f32.mrb[0].mxu0
    %v4473 = vadd.f32 %v2786, %v4472
    %v4474 = vpop.f32.mrb[0].mxu0
    %v4475 = vpop.f32.mrb[0].mxu0
    %4476 = vdwg.mxu0
    %4477 = vmatprep.subr.bf16.mxu0 %v3722
    %4478 = vmatpush1.bf16.msra.mxu0 %v3721
    %4479 = vmatprep.subr.bf16.mxu0 %v3726
    %4480 = vmatpush1.bf16.msra.mxu0 %v3725
    %4481 = vmatprep.subr.bf16.mxu0 %v3730
    %4482 = vmatpush1.bf16.msra.mxu0 %v3729
    %4483 = vmatprep.subr.bf16.mxu0 %v3734
    %4484 = vmatpush1.bf16.msra.mxu0 %v3733
    %4485 = vmatprep.subr.bf16.mxu0 %v3738
    %4486 = vmatpush1.bf16.msra.mxu0 %v3737
    %4487 = vmatprep.subr.bf16.mxu0 %v3742
    %4488 = vmatpush1.bf16.msra.mxu0 %v3741
    %4489 = vmatprep.subr.bf16.mxu0 %v3746
    %4490 = vmatpush1.bf16.msra.mxu0 %v3745
    %4491 = vmatprep.subr.bf16.mxu0 %v3750
    %4492 = vmatpush1.bf16.msra.mxu0 %v3749
    %4493 = vmatprep.subr.bf16.mxu0 %v3754
    %4494 = vmatpush1.bf16.msra.mxu0 %v3753
    %4495 = vmatprep.subr.bf16.mxu0 %v3758
    %4496 = vmatpush1.bf16.msra.mxu0 %v3757
    %4497 = vmatprep.subr.bf16.mxu0 %v3762
    %4498 = vmatpush1.bf16.msra.mxu0 %v3761
    %4499 = vmatprep.subr.bf16.mxu0 %v3766
    %4500 = vmatpush1.bf16.msra.mxu0 %v3765
    %4501 = vmatprep.subr.bf16.mxu0 %v3770
    %4502 = vmatpush1.bf16.msra.mxu0 %v3769
    %4503 = vmatprep.subr.bf16.mxu0 %v3774
    %4504 = vmatpush1.bf16.msra.mxu0 %v3773
    %4505 = vmatprep.subr.bf16.mxu0 %v3778
    %4506 = vmatpush1.bf16.msra.mxu0 %v3777
    %4507 = vmatprep.subr.bf16.mxu0 %v3782
    %4508 = vmatpush1.bf16.msra.mxu0 %v3781
    %4509 = vmatprep.mubr.bf16.mxu0 %v2475
    %4510 = vmatmul.mubr.bf16.gmra.mrb[0].mxu0 %v2474
    %v4511 = vpop.f32.mrb[0].mxu0
    %v4512 = vadd.f32 %v4471, %v4511
    %v4513 = vpop.f32.mrb[0].mxu0
    %v4514 = vadd.f32 %v4473, %v4513
    %v4515 = vpop.f32.mrb[0].mxu0
    %v4516 = vpop.f32.mrb[0].mxu0
    %4517 = vdwg.mxu0
    %4518 = vmatprep.subr.bf16.mxu0 %v3786
    %4519 = vmatpush1.bf16.msra.mxu0 %v3785
    %4520 = vmatprep.subr.bf16.mxu0 %v3790
    %4521 = vmatpush1.bf16.msra.mxu0 %v3789
    %4522 = vmatprep.subr.bf16.mxu0 %v3794
    %4523 = vmatpush1.bf16.msra.mxu0 %v3793
    %4524 = vmatprep.subr.bf16.mxu0 %v3798
    %4525 = vmatpush1.bf16.msra.mxu0 %v3797
    %4526 = vmatprep.subr.bf16.mxu0 %v3802
    %4527 = vmatpush1.bf16.msra.mxu0 %v3801
    %4528 = vmatprep.subr.bf16.mxu0 %v3806
    %4529 = vmatpush1.bf16.msra.mxu0 %v3805
    %4530 = vmatprep.subr.bf16.mxu0 %v3810
    %4531 = vmatpush1.bf16.msra.mxu0 %v3809
    %4532 = vmatprep.subr.bf16.mxu0 %v3814
    %4533 = vmatpush1.bf16.msra.mxu0 %v3813
    %4534 = vmatprep.subr.bf16.mxu0 %v3818
    %4535 = vmatpush1.bf16.msra.mxu0 %v3817
    %4536 = vmatprep.subr.bf16.mxu0 %v3822
    %4537 = vmatpush1.bf16.msra.mxu0 %v3821
    %4538 = vmatprep.subr.bf16.mxu0 %v3826
    %4539 = vmatpush1.bf16.msra.mxu0 %v3825
    %4540 = vmatprep.subr.bf16.mxu0 %v3830
    %4541 = vmatpush1.bf16.msra.mxu0 %v3829
    %4542 = vmatprep.subr.bf16.mxu0 %v3834
    %4543 = vmatpush1.bf16.msra.mxu0 %v3833
    %4544 = vmatprep.subr.bf16.mxu0 %v3838
    %4545 = vmatpush1.bf16.msra.mxu0 %v3837
    %4546 = vmatprep.subr.bf16.mxu0 %v3842
    %4547 = vmatpush1.bf16.msra.mxu0 %v3841
    %4548 = vmatprep.subr.bf16.mxu0 %v3846
    %4549 = vmatpush1.bf16.msra.mxu0 %v3845
    %4550 = vmatprep.mubr.bf16.mxu0 %v2477
    %4551 = vmatmul.mubr.bf16.gmra.mrb[0].mxu0 %v2476
    %v4552 = vpop.f32.mrb[0].mxu0
    %v4553 = vadd.f32 %v4512, %v4552
    %v4554 = vpop.f32.mrb[0].mxu0
    %v4555 = vadd.f32 %v4514, %v4554
    %v4556 = vpop.f32.mrb[0].mxu0
    %v4557 = vpop.f32.mrb[0].mxu0
    %4558 = vdwg.mxu0
    %4559 = vmatprep.subr.bf16.mxu0 %v3850
    %4560 = vmatpush1.bf16.msra.mxu0 %v3849
    %4561 = vmatprep.subr.bf16.mxu0 %v3854
    %4562 = vmatpush1.bf16.msra.mxu0 %v3853
    %4563 = vmatprep.subr.bf16.mxu0 %v3858
    %4564 = vmatpush1.bf16.msra.mxu0 %v3857
    %4565 = vmatprep.subr.bf16.mxu0 %v3862
    %4566 = vmatpush1.bf16.msra.mxu0 %v3861
    %4567 = vmatprep.subr.bf16.mxu0 %v3866
    %4568 = vmatpush1.bf16.msra.mxu0 %v3865
    %4569 = vmatprep.subr.bf16.mxu0 %v3870
    %4570 = vmatpush1.bf16.msra.mxu0 %v3869
    %4571 = vmatprep.subr.bf16.mxu0 %v3874
    %4572 = vmatpush1.bf16.msra.mxu0 %v3873
    %4573 = vmatprep.subr.bf16.mxu0 %v3878
    %4574 = vmatpush1.bf16.msra.mxu0 %v3877
    %4575 = vmatprep.subr.bf16.mxu0 %v3882
    %4576 = vmatpush1.bf16.msra.mxu0 %v3881
    %4577 = vmatprep.subr.bf16.mxu0 %v3886
    %4578 = vmatpush1.bf16.msra.mxu0 %v3885
    %4579 = vmatprep.subr.bf16.mxu0 %v3890
    %4580 = vmatpush1.bf16.msra.mxu0 %v3889
    %4581 = vmatprep.subr.bf16.mxu0 %v3894
    %4582 = vmatpush1.bf16.msra.mxu0 %v3893
    %4583 = vmatprep.subr.bf16.mxu0 %v3898
    %4584 = vmatpush1.bf16.msra.mxu0 %v3897
    %4585 = vmatprep.subr.bf16.mxu0 %v3902
    %4586 = vmatpush1.bf16.msra.mxu0 %v3901
    %4587 = vmatprep.subr.bf16.mxu0 %v3906
    %4588 = vmatpush1.bf16.msra.mxu0 %v3905
    %4589 = vmatprep.subr.bf16.mxu0 %v3910
    %4590 = vmatpush1.bf16.msra.mxu0 %v3909
    %4591 = vmatprep.mubr.bf16.mxu0 %v2479
    %4592 = vmatmul.mubr.bf16.gmra.mrb[0].mxu0 %v2478
    %v4593 = vpop.f32.mrb[0].mxu0
    %v4594 = vadd.f32 %v4553, %v4593
    %v4595 = vpop.f32.mrb[0].mxu0
    %v4596 = vadd.f32 %v4555, %v4595
    %v4597 = vpop.f32.mrb[0].mxu0
    %v4598 = vpop.f32.mrb[0].mxu0
    %4599 = vdwg.mxu0
    %4600 = vmatprep.subr.bf16.mxu0 %v3914
    %4601 = vmatpush1.bf16.msra.mxu0 %v3913
    %4602 = vmatprep.subr.bf16.mxu0 %v3918
    %4603 = vmatpush1.bf16.msra.mxu0 %v3917
    %4604 = vmatprep.subr.bf16.mxu0 %v3922
    %4605 = vmatpush1.bf16.msra.mxu0 %v3921
    %4606 = vmatprep.subr.bf16.mxu0 %v3926
    %4607 = vmatpush1.bf16.msra.mxu0 %v3925
    %4608 = vmatprep.subr.bf16.mxu0 %v3930
    %4609 = vmatpush1.bf16.msra.mxu0 %v3929
    %4610 = vmatprep.subr.bf16.mxu0 %v3934
    %4611 = vmatpush1.bf16.msra.mxu0 %v3933
    %4612 = vmatprep.subr.bf16.mxu0 %v3938
    %4613 = vmatpush1.bf16.msra.mxu0 %v3937
    %4614 = vmatprep.subr.bf16.mxu0 %v3942
    %4615 = vmatpush1.bf16.msra.mxu0 %v3941
    %4616 = vmatprep.subr.bf16.mxu0 0
    %4617 = vmatpush1.bf16.msra.mxu0 0
    %4618 = vmatprep.subr.bf16.mxu0 0
    %4619 = vmatpush1.bf16.msra.mxu0 0
    %4620 = vmatprep.subr.bf16.mxu0 0
    %4621 = vmatpush1.bf16.msra.mxu0 0
    %4622 = vmatprep.subr.bf16.mxu0 0
    %4623 = vmatpush1.bf16.msra.mxu0 0
    %4624 = vmatprep.subr.bf16.mxu0 0
    %4625 = vmatpush1.bf16.msra.mxu0 0
    %4626 = vmatprep.subr.bf16.mxu0 0
    %4627 = vmatpush1.bf16.msra.mxu0 0
    %4628 = vmatprep.subr.bf16.mxu0 0
    %4629 = vmatpush1.bf16.msra.mxu0 0
    %4630 = vmatprep.subr.bf16.mxu0 0
    %4631 = vmatpush1.bf16.msra.mxu0 0
    %4632 = vmatprep.mubr.bf16.mxu0 0
    %4633 = vmatmul.mubr.bf16.gmra.mrb[0].mxu0 %v2480
    %v4634 = vpop.f32.mrb[0].mxu0
    %v4635 = vadd.f32 %v4594, %v4634
    %v4636 = vpop.f32.mrb[0].mxu0
    %v4637 = vadd.f32 %v4596, %v4636
    %v4638 = vpop.f32.mrb[0].mxu0
    %v4639 = vpop.f32.mrb[0].mxu0
    %4640 = vdwg.mxu0
    %v4641 = vmax.f32 %v4430, 0.0
    %v4642 = vmax.f32 %v4432, 0.0
    %v4643 = vmax.f32 %v4635, 0.0
    %v4644 = vmax.f32 %v4637, 0.0
    %v4649 = vcombine.low %v4641, %v4642
    %v4650 = vcombine.high %v4641, %v4642
    %v4651 = vcombine.low %v4643, %v4644
    %v4652 = vcombine.high %v4643, %v4644
    %v4654 = vunpack.c.l.s4 1983009808
    %v4655 = vunpack.c.0.s8 %v4654
    %v4656 = vlaneseq
    %v4657 = vshrl.u32 %v4656, 7
    %v4658 = vsub.s32 %v4655, %v4657
    %v4659 = vrot.slane %v4649, %v4658
    %v4661 = vunpack.c.l.s4 1983009808
    %v4662 = vunpack.c.0.s8 %v4661
    %v4663 = vlaneseq
    %v4664 = vshrl.u32 %v4663, 7
    %v4665 = vsub.s32 %v4662, %v4664
    %v4666 = vrot.slane %v4650, %v4665
    %v4668 = vunpack.c.l.s4 1983009808
    %v4669 = vunpack.c.0.s8 %v4668
    %v4670 = vlaneseq
    %v4671 = vshrl.u32 %v4670, 7
    %v4672 = vsub.s32 %v4669, %v4671
    %v4673 = vrot.slane %v4651, %v4672
    %v4675 = vunpack.c.l.s4 1983009808
    %v4676 = vunpack.c.0.s8 %v4675
    %v4677 = vlaneseq
    %v4678 = vshrl.u32 %v4677, 7
    %v4679 = vsub.s32 %v4676, %v4678
    %v4680 = vrot.slane %v4652, %v4679
    %v4681 = vcombine.low %v4659, %v4673
    %v4682 = vcombine.high %v4659, %v4673
    %v4683 = vcombine.low %v4666, %v4680
    %v4684 = vcombine.high %v4666, %v4680
    %v4689 = vrot.slane %v4681, 7
    %v4690 = vrot.slane %v4689, 2
    %v4691 = vrot.slane %v4682, 7
    %v4692 = vrot.slane %v4691, 2
    %v4693 = vrot.slane %v4683, 7
    %v4694 = vrot.slane %v4693, 2
    %v4695 = vrot.slane %v4684, 7
    %v4696 = vrot.slane %v4695, 2
    %v4701 = vmax.f32 %v4681, %v4690
    %v4702 = vmax.f32 %v4682, %v4692
    %v4703 = vmax.f32 %v4683, %v4694
    %v4704 = vmax.f32 %v4684, %v4696
    %v4705 = vmax.f32 %v4701, %v4702
    %v4706 = vmax.f32 %v4703, %v4704
    %v4709 = vlaneseq
    %v4710 = vshrl.u32 %v4709, 7
    %v4711 = vsub.s32 0, %v4710
    %v4712 = vrot.slane %v4705, %v4711
    %v4713 = vlaneseq
    %v4714 = vshrl.u32 %v4713, 7
    %v4715 = vsub.s32 2, %v4714
    %v4716 = vrot.slane %v4705, %v4715
    %v4717 = vlaneseq
    %v4718 = vshrl.u32 %v4717, 7
    %v4719 = vsub.s32 4, %v4718
    %v4720 = vrot.slane %v4705, %v4719
    %v4721 = vlaneseq
    %v4722 = vshrl.u32 %v4721, 7
    %v4723 = vsub.s32 6, %v4722
    %v4724 = vrot.slane %v4705, %v4723
    %v4725 = vlaneseq
    %v4726 = vshrl.u32 %v4725, 7
    %v4727 = vsub.s32 0, %v4726
    %v4728 = vrot.slane %v4706, %v4727
    %v4729 = vlaneseq
    %v4730 = vshrl.u32 %v4729, 7
    %v4731 = vsub.s32 2, %v4730
    %v4732 = vrot.slane %v4706, %v4731
    %v4733 = vlaneseq
    %v4734 = vshrl.u32 %v4733, 7
    %v4735 = vsub.s32 4, %v4734
    %v4736 = vrot.slane %v4706, %v4735
    %v4737 = vlaneseq
    %v4738 = vshrl.u32 %v4737, 7
    %v4739 = vsub.s32 6, %v4738
    %v4740 = vrot.slane %v4706, %v4739
    %v4749 = vpack.c.bf16 %v4712, %v4712
    %v4750 = vpack.c.bf16 %v4716, %v4716
    %v4751 = vpack.c.bf16 %v4720, %v4720
    %v4752 = vpack.c.bf16 %v4724, %v4724
    %v4753 = vpack.c.bf16 %v4728, %v4728
    %v4754 = vpack.c.bf16 %v4732, %v4732
    %v4755 = vpack.c.bf16 %v4736, %v4736
    %v4756 = vpack.c.bf16 %v4740, %v4740
    %v4757 = vld [vmem:[%s7] sm:$0xff]
    %v4758 = vld [vmem:[%s7 + $0x8] sm:$0xff]
    %v4759 = vld [vmem:[%s7 + $0x10] sm:$0xff]
    %v4760 = vld [vmem:[%s7 + $0x18] sm:$0xff]
    %v4761 = vld [vmem:[%s7 + $0x20] sm:$0xff]
    %v4762 = vld [vmem:[%s7 + $0x28] sm:$0xff]
    %v4763 = vld [vmem:[%s7 + $0x30] sm:$0xff]
    %v4764 = vld [vmem:[%s7 + $0x38] sm:$0xff]
    %v4765 = vld [vmem:[%s7 + $0x40] sm:$0xff]
    %v4766 = vld [vmem:[%s7 + $0x48] sm:$0xff]
    %v4767 = vld [vmem:[%s7 + $0x50] sm:$0xff]
    %v4768 = vld [vmem:[%s7 + $0x58] sm:$0xff]
    %v4769 = vld [vmem:[%s7 + $0x60] sm:$0xff]
    %v4770 = vld [vmem:[%s7 + $0x68] sm:$0xff]
    %v4771 = vld [vmem:[%s7 + $0x70] sm:$0xff]
    %v4772 = vld [vmem:[%s7 + $0x78] sm:$0xff]
    %v4773 = vld [vmem:[%s7 + $0x80] sm:$0xff]
    %v4774 = vld [vmem:[%s7 + $0x88] sm:$0xff]
    %v4775 = vld [vmem:[%s7 + $0x90] sm:$0xff]
    %v4776 = vld [vmem:[%s7 + $0x98] sm:$0xff]
    %v4777 = vld [vmem:[%s7 + $0xa0] sm:$0xff]
    %v4778 = vld [vmem:[%s7 + $0xa8] sm:$0xff]
    %v4779 = vld [vmem:[%s7 + $0xb0] sm:$0xff]
    %v4780 = vld [vmem:[%s7 + $0xb8] sm:$0xff]
    %v4781 = vld [vmem:[%s7 + $0xc0] sm:$0xff]
    %v4782 = vld [vmem:[%s7 + $0xc8] sm:$0xff]
    %v4783 = vld [vmem:[%s7 + $0xd0] sm:$0xff]
    %v4784 = vld [vmem:[%s7 + $0xd8] sm:$0xff]
    %v4785 = vld [vmem:[%s7 + $0xe0] sm:$0xff]
    %v4786 = vld [vmem:[%s7 + $0xe8] sm:$0xff]
    %v4787 = vld [vmem:[%s7 + $0xf0] sm:$0xff]
    %v4788 = vld [vmem:[%s7 + $0xf8] sm:$0xff]
    %v4789 = vld [vmem:[%s7 + $0x100] sm:$0xff]
    %v4790 = vld [vmem:[%s7 + $0x108] sm:$0xff]
    %v4791 = vld [vmem:[%s7 + $0x110] sm:$0xff]
    %v4792 = vld [vmem:[%s7 + $0x118] sm:$0xff]
    %v4793 = vld [vmem:[%s7 + $0x120] sm:$0xff]
    %v4794 = vld [vmem:[%s7 + $0x128] sm:$0xff]
    %v4795 = vld [vmem:[%s7 + $0x130] sm:$0xff]
    %v4796 = vld [vmem:[%s7 + $0x138] sm:$0xff]
    %v4797 = vld [vmem:[%s7 + $0x140] sm:$0xff]
    %v4798 = vld [vmem:[%s7 + $0x148] sm:$0xff]
    %v4799 = vld [vmem:[%s7 + $0x150] sm:$0xff]
    %v4800 = vld [vmem:[%s7 + $0x158] sm:$0xff]
    %v4801 = vld [vmem:[%s7 + $0x160] sm:$0xff]
    %v4802 = vld [vmem:[%s7 + $0x168] sm:$0xff]
    %v4803 = vld [vmem:[%s7 + $0x170] sm:$0xff]
    %v4804 = vld [vmem:[%s7 + $0x178] sm:$0xff]
    %v4805 = vld [vmem:[%s7 + $0x180] sm:$0xff]
    %v4806 = vld [vmem:[%s7 + $0x188] sm:$0xff]
    %v4807 = vld [vmem:[%s7 + $0x190] sm:$0xff]
    %v4808 = vld [vmem:[%s7 + $0x198] sm:$0xff]
    %v4809 = vld [vmem:[%s7 + $0x1a0] sm:$0xff]
    %v4810 = vld [vmem:[%s7 + $0x1a8] sm:$0xff]
    %v4811 = vld [vmem:[%s7 + $0x1b0] sm:$0xff]
    %v4812 = vld [vmem:[%s7 + $0x1b8] sm:$0xff]
    %v4813 = vld [vmem:[%s7 + $0x1c0] sm:$0xff]
    %v4814 = vld [vmem:[%s7 + $0x1c8] sm:$0xff]
    %v4815 = vld [vmem:[%s7 + $0x1d0] sm:$0xff]
    %v4816 = vld [vmem:[%s7 + $0x1d8] sm:$0xff]
    %v4817 = vld [vmem:[%s7 + $0x1e0] sm:$0xff]
    %v4818 = vld [vmem:[%s7 + $0x1e8] sm:$0xff]
    %v4819 = vld [vmem:[%s7 + $0x1f0] sm:$0xff]
    %v4820 = vld [vmem:[%s7 + $0x1f8] sm:$0xff]
    %v4821 = vld [vmem:[%s7 + $0x200] sm:$0xff]
    %v4822 = vld [vmem:[%s7 + $0x208] sm:$0xff]
    %v4823 = vld [vmem:[%s7 + $0x210] sm:$0xff]
    %v4824 = vld [vmem:[%s7 + $0x218] sm:$0xff]
    %v4825 = vld [vmem:[%s7 + $0x220] sm:$0xff]
    %v4826 = vld [vmem:[%s7 + $0x228] sm:$0xff]
    %v4827 = vld [vmem:[%s7 + $0x230] sm:$0xff]
    %v4828 = vld [vmem:[%s7 + $0x238] sm:$0xff]
    %v4829 = vld [vmem:[%s7 + $0x240] sm:$0xff]
    %v4830 = vld [vmem:[%s7 + $0x248] sm:$0xff]
    %v4831 = vld [vmem:[%s7 + $0x250] sm:$0xff]
    %v4832 = vld [vmem:[%s7 + $0x258] sm:$0xff]
    %v4833 = vld [vmem:[%s7 + $0x260] sm:$0xff]
    %v4834 = vld [vmem:[%s7 + $0x268] sm:$0xff]
    %v4835 = vld [vmem:[%s7 + $0x270] sm:$0xff]
    %v4836 = vld [vmem:[%s7 + $0x278] sm:$0xff]
    %v4837 = vld [vmem:[%s7 + $0x280] sm:$0xff]
    %v4838 = vld [vmem:[%s7 + $0x288] sm:$0xff]
    %v4839 = vld [vmem:[%s7 + $0x290] sm:$0xff]
    %v4840 = vld [vmem:[%s7 + $0x298] sm:$0xff]
    %v4841 = vld [vmem:[%s7 + $0x2a0] sm:$0xff]
    %v4842 = vld [vmem:[%s7 + $0x2a8] sm:$0xff]
    %v4843 = vld [vmem:[%s7 + $0x2b0] sm:$0xff]
    %v4844 = vld [vmem:[%s7 + $0x2b8] sm:$0xff]
    %v4845 = vld [vmem:[%s7 + $0x2c0] sm:$0xff]
    %v4846 = vld [vmem:[%s7 + $0x2c8] sm:$0xff]
    %v4847 = vld [vmem:[%s7 + $0x2d0] sm:$0xff]
    %v4848 = vld [vmem:[%s7 + $0x2d8] sm:$0xff]
    %v4849 = vld [vmem:[%s7 + $0x2e0] sm:$0xff]
    %v4850 = vld [vmem:[%s7 + $0x2e8] sm:$0xff]
    %v4851 = vld [vmem:[%s7 + $0x2f0] sm:$0xff]
    %v4852 = vld [vmem:[%s7 + $0x2f8] sm:$0xff]
    %v4853 = vld [vmem:[%s7 + $0x300] sm:$0xff]
    %v4854 = vld [vmem:[%s7 + $0x308] sm:$0xff]
    %v4855 = vld [vmem:[%s7 + $0x310] sm:$0xff]
    %v4856 = vld [vmem:[%s7 + $0x318] sm:$0xff]
    %v4857 = vld [vmem:[%s7 + $0x320] sm:$0xff]
    %v4858 = vld [vmem:[%s7 + $0x328] sm:$0xff]
    %v4859 = vld [vmem:[%s7 + $0x330] sm:$0xff]
    %v4860 = vld [vmem:[%s7 + $0x338] sm:$0xff]
    %v4861 = vld [vmem:[%s7 + $0x340] sm:$0xff]
    %v4862 = vld [vmem:[%s7 + $0x348] sm:$0xff]
    %v4863 = vld [vmem:[%s7 + $0x350] sm:$0xff]
    %v4864 = vld [vmem:[%s7 + $0x358] sm:$0xff]
    %v4865 = vld [vmem:[%s7 + $0x360] sm:$0xff]
    %v4866 = vld [vmem:[%s7 + $0x368] sm:$0xff]
    %v4867 = vld [vmem:[%s7 + $0x370] sm:$0xff]
    %v4868 = vld [vmem:[%s7 + $0x378] sm:$0xff]
    %v4869 = vld [vmem:[%s7 + $0x380] sm:$0xff]
    %v4870 = vld [vmem:[%s7 + $0x388] sm:$0xff]
    %v4871 = vld [vmem:[%s7 + $0x390] sm:$0xff]
    %v4872 = vld [vmem:[%s7 + $0x398] sm:$0xff]
    %v4873 = vld [vmem:[%s7 + $0x3a0] sm:$0xff]
    %v4874 = vld [vmem:[%s7 + $0x3a8] sm:$0xff]
    %v4875 = vld [vmem:[%s7 + $0x3b0] sm:$0xff]
    %v4876 = vld [vmem:[%s7 + $0x3b8] sm:$0xff]
    %v4877 = vld [vmem:[%s7 + $0x3c0] sm:$0xff]
    %v4878 = vld [vmem:[%s7 + $0x3c8] sm:$0xff]
    %v4879 = vld [vmem:[%s7 + $0x3d0] sm:$0xff]
    %v4880 = vld [vmem:[%s7 + $0x3d8] sm:$0xff]
    %v4881 = vld [vmem:[%s7 + $0x3e0] sm:$0xff]
    %v4882 = vld [vmem:[%s7 + $0x3e8] sm:$0xff]
    %v4883 = vld [vmem:[%s7 + $0x3f0] sm:$0xff]
    %v4884 = vld [vmem:[%s7 + $0x3f8] sm:$0xff]
    %v4885 = vld [vmem:[#allocation15] sm:$0xf]
    %v4887 = vlaneseq
    %v4888 = vshrl.u32 %v4887, 7
    %v4889 = vsub.s32 0, %v4888
    %v4890 = vrot.slane %v4885, %v4889
    %v4891 = vlaneseq
    %v4892 = vshrl.u32 %v4891, 7
    %v4893 = vsub.s32 1, %v4892
    %v4894 = vrot.slane %v4885, %v4893
    %v4895 = vlaneseq
    %v4896 = vshrl.u32 %v4895, 7
    %v4897 = vsub.s32 2, %v4896
    %v4898 = vrot.slane %v4885, %v4897
    %v4899 = vlaneseq
    %v4900 = vshrl.u32 %v4899, 7
    %v4901 = vsub.s32 3, %v4900
    %v4902 = vrot.slane %v4885, %v4901
    %v4915 = vunpack.c.l.b16 %v4749
    %v4916 = vunpack.c.l.b16 %v4750
    %v4917 = vunpack.c.l.b16 %v4751
    %v4918 = vunpack.c.l.b16 %v4752
    %v4919 = vunpack.c.l.b16 %v4753
    %v4920 = vunpack.c.l.b16 %v4754
    %v4921 = vunpack.c.l.b16 %v4755
    %v4922 = vunpack.c.l.b16 %v4756
    %v4923 = vrot.slane %v4919, 7
    %v4924 = vsel %vm1219, %v4923, %v4915
    %v4925 = vrot.slane %v4920, 7
    %v4926 = vsel %vm1219, %v4925, %v4916
    %v4927 = vrot.slane %v4921, 7
    %v4928 = vsel %vm1219, %v4927, %v4917
    %v4929 = vrot.slane %v4922, 7
    %v4930 = vsel %vm1219, %v4929, %v4918
    %v4931 = vpack.c.b16 %v4924, %v4924
    %v4932 = vpack.c.b16 %v4926, %v4926
    %v4933 = vpack.c.b16 %v4928, %v4928
    %v4934 = vpack.c.b16 %v4930, %v4930
    %v5067 = vunpack.c.l.b16 %v4757
    %v5068 = vunpack.c.h.b16 %v4757
    %v5069 = vunpack.c.l.b16 %v4758
    %v5070 = vunpack.c.h.b16 %v4758
    %v5071 = vunpack.c.l.b16 %v4759
    %v5072 = vunpack.c.h.b16 %v4759
    %v5073 = vunpack.c.l.b16 %v4760
    %v5074 = vunpack.c.h.b16 %v4760
    %v5075 = vunpack.c.l.b16 %v4761
    %v5076 = vunpack.c.h.b16 %v4761
    %v5077 = vunpack.c.l.b16 %v4762
    %v5078 = vunpack.c.h.b16 %v4762
    %v5079 = vunpack.c.l.b16 %v4763
    %v5080 = vunpack.c.h.b16 %v4763
    %v5081 = vunpack.c.l.b16 %v4764
    %v5082 = vunpack.c.h.b16 %v4764
    %v5083 = vunpack.c.l.b16 %v4765
    %v5084 = vunpack.c.h.b16 %v4765
    %v5085 = vunpack.c.l.b16 %v4766
    %v5086 = vunpack.c.h.b16 %v4766
    %v5087 = vunpack.c.l.b16 %v4767
    %v5088 = vunpack.c.h.b16 %v4767
    %v5089 = vunpack.c.l.b16 %v4768
    %v5090 = vunpack.c.h.b16 %v4768
    %v5091 = vunpack.c.l.b16 %v4769
    %v5092 = vunpack.c.h.b16 %v4769
    %v5093 = vunpack.c.l.b16 %v4770
    %v5094 = vunpack.c.h.b16 %v4770
    %v5095 = vunpack.c.l.b16 %v4771
    %v5096 = vunpack.c.h.b16 %v4771
    %v5097 = vunpack.c.l.b16 %v4772
    %v5098 = vunpack.c.h.b16 %v4772
    %v5099 = vunpack.c.l.b16 %v4773
    %v5100 = vunpack.c.h.b16 %v4773
    %v5101 = vunpack.c.l.b16 %v4774
    %v5102 = vunpack.c.h.b16 %v4774
    %v5103 = vunpack.c.l.b16 %v4775
    %v5104 = vunpack.c.h.b16 %v4775
    %v5105 = vunpack.c.l.b16 %v4776
    %v5106 = vunpack.c.h.b16 %v4776
    %v5107 = vunpack.c.l.b16 %v4777
    %v5108 = vunpack.c.h.b16 %v4777
    %v5109 = vunpack.c.l.b16 %v4778
    %v5110 = vunpack.c.h.b16 %v4778
    %v5111 = vunpack.c.l.b16 %v4779
    %v5112 = vunpack.c.h.b16 %v4779
    %v5113 = vunpack.c.l.b16 %v4780
    %v5114 = vunpack.c.h.b16 %v4780
    %v5115 = vunpack.c.l.b16 %v4781
    %v5116 = vunpack.c.h.b16 %v4781
    %v5117 = vunpack.c.l.b16 %v4782
    %v5118 = vunpack.c.h.b16 %v4782
    %v5119 = vunpack.c.l.b16 %v4783
    %v5120 = vunpack.c.h.b16 %v4783
    %v5121 = vunpack.c.l.b16 %v4784
    %v5122 = vunpack.c.h.b16 %v4784
    %v5123 = vunpack.c.l.b16 %v4785
    %v5124 = vunpack.c.h.b16 %v4785
    %v5125 = vunpack.c.l.b16 %v4786
    %v5126 = vunpack.c.h.b16 %v4786
    %v5127 = vunpack.c.l.b16 %v4787
    %v5128 = vunpack.c.h.b16 %v4787
    %v5129 = vunpack.c.l.b16 %v4788
    %v5130 = vunpack.c.h.b16 %v4788
    %v5131 = vunpack.c.l.b16 %v4789
    %v5132 = vunpack.c.h.b16 %v4789
    %v5133 = vunpack.c.l.b16 %v4790
    %v5134 = vunpack.c.h.b16 %v4790
    %v5135 = vunpack.c.l.b16 %v4791
    %v5136 = vunpack.c.h.b16 %v4791
    %v5137 = vunpack.c.l.b16 %v4792
    %v5138 = vunpack.c.h.b16 %v4792
    %v5139 = vunpack.c.l.b16 %v4793
    %v5140 = vunpack.c.h.b16 %v4793
    %v5141 = vunpack.c.l.b16 %v4794
    %v5142 = vunpack.c.h.b16 %v4794
    %v5143 = vunpack.c.l.b16 %v4795
    %v5144 = vunpack.c.h.b16 %v4795
    %v5145 = vunpack.c.l.b16 %v4796
    %v5146 = vunpack.c.h.b16 %v4796
    %v5147 = vunpack.c.l.b16 %v4797
    %v5148 = vunpack.c.h.b16 %v4797
    %v5149 = vunpack.c.l.b16 %v4798
    %v5150 = vunpack.c.h.b16 %v4798
    %v5151 = vunpack.c.l.b16 %v4799
    %v5152 = vunpack.c.h.b16 %v4799
    %v5153 = vunpack.c.l.b16 %v4800
    %v5154 = vunpack.c.h.b16 %v4800
    %v5155 = vunpack.c.l.b16 %v4801
    %v5156 = vunpack.c.h.b16 %v4801
    %v5157 = vunpack.c.l.b16 %v4802
    %v5158 = vunpack.c.h.b16 %v4802
    %v5159 = vunpack.c.l.b16 %v4803
    %v5160 = vunpack.c.h.b16 %v4803
    %v5161 = vunpack.c.l.b16 %v4804
    %v5162 = vunpack.c.h.b16 %v4804
    %v5163 = vunpack.c.l.b16 %v4805
    %v5164 = vunpack.c.h.b16 %v4805
    %v5165 = vunpack.c.l.b16 %v4806
    %v5166 = vunpack.c.h.b16 %v4806
    %v5167 = vunpack.c.l.b16 %v4807
    %v5168 = vunpack.c.h.b16 %v4807
    %v5169 = vunpack.c.l.b16 %v4808
    %v5170 = vunpack.c.h.b16 %v4808
    %v5171 = vunpack.c.l.b16 %v4809
    %v5172 = vunpack.c.h.b16 %v4809
    %v5173 = vunpack.c.l.b16 %v4810
    %v5174 = vunpack.c.h.b16 %v4810
    %v5175 = vunpack.c.l.b16 %v4811
    %v5176 = vunpack.c.h.b16 %v4811
    %v5177 = vunpack.c.l.b16 %v4812
    %v5178 = vunpack.c.h.b16 %v4812
    %v5179 = vunpack.c.l.b16 %v4813
    %v5180 = vunpack.c.h.b16 %v4813
    %v5181 = vunpack.c.l.b16 %v4814
    %v5182 = vunpack.c.h.b16 %v4814
    %v5183 = vunpack.c.l.b16 %v4815
    %v5184 = vunpack.c.h.b16 %v4815
    %v5185 = vunpack.c.l.b16 %v4816
    %v5186 = vunpack.c.h.b16 %v4816
    %v5187 = vunpack.c.l.b16 %v4817
    %v5188 = vunpack.c.h.b16 %v4817
    %v5189 = vunpack.c.l.b16 %v4818
    %v5190 = vunpack.c.h.b16 %v4818
    %v5191 = vunpack.c.l.b16 %v4819
    %v5192 = vunpack.c.h.b16 %v4819
    %v5193 = vunpack.c.l.b16 %v4820
    %v5194 = vunpack.c.h.b16 %v4820
    %v5195 = vunpack.c.l.b16 %v4821
    %v5196 = vunpack.c.h.b16 %v4821
    %v5197 = vunpack.c.l.b16 %v4822
    %v5198 = vunpack.c.h.b16 %v4822
    %v5199 = vunpack.c.l.b16 %v4823
    %v5200 = vunpack.c.h.b16 %v4823
    %v5201 = vunpack.c.l.b16 %v4824
    %v5202 = vunpack.c.h.b16 %v4824
    %v5203 = vunpack.c.l.b16 %v4825
    %v5204 = vunpack.c.h.b16 %v4825
    %v5205 = vunpack.c.l.b16 %v4826
    %v5206 = vunpack.c.h.b16 %v4826
    %v5207 = vunpack.c.l.b16 %v4827
    %v5208 = vunpack.c.h.b16 %v4827
    %v5209 = vunpack.c.l.b16 %v4828
    %v5210 = vunpack.c.h.b16 %v4828
    %v5211 = vunpack.c.l.b16 %v4829
    %v5212 = vunpack.c.h.b16 %v4829
    %v5213 = vunpack.c.l.b16 %v4830
    %v5214 = vunpack.c.h.b16 %v4830
    %v5215 = vunpack.c.l.b16 %v4831
    %v5216 = vunpack.c.h.b16 %v4831
    %v5217 = vunpack.c.l.b16 %v4832
    %v5218 = vunpack.c.h.b16 %v4832
    %v5219 = vunpack.c.l.b16 %v4833
    %v5220 = vunpack.c.h.b16 %v4833
    %v5221 = vunpack.c.l.b16 %v4834
    %v5222 = vunpack.c.h.b16 %v4834
    %v5223 = vunpack.c.l.b16 %v4835
    %v5224 = vunpack.c.h.b16 %v4835
    %v5225 = vunpack.c.l.b16 %v4836
    %v5226 = vunpack.c.h.b16 %v4836
    %v5227 = vunpack.c.l.b16 %v4837
    %v5228 = vunpack.c.h.b16 %v4837
    %v5229 = vunpack.c.l.b16 %v4838
    %v5230 = vunpack.c.h.b16 %v4838
    %v5231 = vunpack.c.l.b16 %v4839
    %v5232 = vunpack.c.h.b16 %v4839
    %v5233 = vunpack.c.l.b16 %v4840
    %v5234 = vunpack.c.h.b16 %v4840
    %v5235 = vunpack.c.l.b16 %v4841
    %v5236 = vunpack.c.h.b16 %v4841
    %v5237 = vunpack.c.l.b16 %v4842
    %v5238 = vunpack.c.h.b16 %v4842
    %v5239 = vunpack.c.l.b16 %v4843
    %v5240 = vunpack.c.h.b16 %v4843
    %v5241 = vunpack.c.l.b16 %v4844
    %v5242 = vunpack.c.h.b16 %v4844
    %v5243 = vunpack.c.l.b16 %v4845
    %v5244 = vunpack.c.h.b16 %v4845
    %v5245 = vunpack.c.l.b16 %v4846
    %v5246 = vunpack.c.h.b16 %v4846
    %v5247 = vunpack.c.l.b16 %v4847
    %v5248 = vunpack.c.h.b16 %v4847
    %v5249 = vunpack.c.l.b16 %v4848
    %v5250 = vunpack.c.h.b16 %v4848
    %v5251 = vunpack.c.l.b16 %v4849
    %v5252 = vunpack.c.h.b16 %v4849
    %v5253 = vunpack.c.l.b16 %v4850
    %v5254 = vunpack.c.h.b16 %v4850
    %v5255 = vunpack.c.l.b16 %v4851
    %v5256 = vunpack.c.h.b16 %v4851
    %v5257 = vunpack.c.l.b16 %v4852
    %v5258 = vunpack.c.h.b16 %v4852
    %v5259 = vunpack.c.l.b16 %v4853
    %v5260 = vunpack.c.h.b16 %v4853
    %v5261 = vunpack.c.l.b16 %v4854
    %v5262 = vunpack.c.h.b16 %v4854
    %v5263 = vunpack.c.l.b16 %v4855
    %v5264 = vunpack.c.h.b16 %v4855
    %v5265 = vunpack.c.l.b16 %v4856
    %v5266 = vunpack.c.h.b16 %v4856
    %v5267 = vunpack.c.l.b16 %v4857
    %v5268 = vunpack.c.h.b16 %v4857
    %v5269 = vunpack.c.l.b16 %v4858
    %v5270 = vunpack.c.h.b16 %v4858
    %v5271 = vunpack.c.l.b16 %v4859
    %v5272 = vunpack.c.h.b16 %v4859
    %v5273 = vunpack.c.l.b16 %v4860
    %v5274 = vunpack.c.h.b16 %v4860
    %v5275 = vunpack.c.l.b16 %v4861
    %v5276 = vunpack.c.h.b16 %v4861
    %v5277 = vunpack.c.l.b16 %v4862
    %v5278 = vunpack.c.h.b16 %v4862
    %v5279 = vunpack.c.l.b16 %v4863
    %v5280 = vunpack.c.h.b16 %v4863
    %v5281 = vunpack.c.l.b16 %v4864
    %v5282 = vunpack.c.h.b16 %v4864
    %v5283 = vunpack.c.l.b16 %v4865
    %v5284 = vunpack.c.h.b16 %v4865
    %v5285 = vunpack.c.l.b16 %v4866
    %v5286 = vunpack.c.h.b16 %v4866
    %v5287 = vunpack.c.l.b16 %v4867
    %v5288 = vunpack.c.h.b16 %v4867
    %v5289 = vunpack.c.l.b16 %v4868
    %v5290 = vunpack.c.h.b16 %v4868
    %v5291 = vunpack.c.l.b16 %v4869
    %v5292 = vunpack.c.h.b16 %v4869
    %v5293 = vunpack.c.l.b16 %v4870
    %v5294 = vunpack.c.h.b16 %v4870
    %v5295 = vunpack.c.l.b16 %v4871
    %v5296 = vunpack.c.h.b16 %v4871
    %v5297 = vunpack.c.l.b16 %v4872
    %v5298 = vunpack.c.h.b16 %v4872
    %v5299 = vunpack.c.l.b16 %v4873
    %v5300 = vunpack.c.h.b16 %v4873
    %v5301 = vunpack.c.l.b16 %v4874
    %v5302 = vunpack.c.h.b16 %v4874
    %v5303 = vunpack.c.l.b16 %v4875
    %v5304 = vunpack.c.h.b16 %v4875
    %v5305 = vunpack.c.l.b16 %v4876
    %v5306 = vunpack.c.h.b16 %v4876
    %v5307 = vunpack.c.l.b16 %v4877
    %v5308 = vunpack.c.h.b16 %v4877
    %v5309 = vunpack.c.l.b16 %v4878
    %v5310 = vunpack.c.h.b16 %v4878
    %v5311 = vunpack.c.l.b16 %v4879
    %v5312 = vunpack.c.h.b16 %v4879
    %v5313 = vunpack.c.l.b16 %v4880
    %v5314 = vunpack.c.h.b16 %v4880
    %v5315 = vunpack.c.l.b16 %v4881
    %v5316 = vunpack.c.h.b16 %v4881
    %v5317 = vunpack.c.l.b16 %v4882
    %v5318 = vunpack.c.h.b16 %v4882
    %v5319 = vunpack.c.l.b16 %v4883
    %v5320 = vunpack.c.h.b16 %v4883
    %v5321 = vunpack.c.l.b16 %v4884
    %v5322 = vunpack.c.h.b16 %v4884
    %v5323 = vpack.c.b16 %v5071, %v5067
    %v5324 = vpack.c.b16 %v5072, %v5068
    %v5325 = vpack.c.b16 %v5073, %v5069
    %v5326 = vpack.c.b16 %v5074, %v5070
    %v5327 = vpack.c.b16 %v5079, %v5075
    %v5328 = vpack.c.b16 %v5080, %v5076
    %v5329 = vpack.c.b16 %v5081, %v5077
    %v5330 = vpack.c.b16 %v5082, %v5078
    %v5331 = vpack.c.b16 %v5087, %v5083
    %v5332 = vpack.c.b16 %v5088, %v5084
    %v5333 = vpack.c.b16 %v5089, %v5085
    %v5334 = vpack.c.b16 %v5090, %v5086
    %v5335 = vpack.c.b16 %v5095, %v5091
    %v5336 = vpack.c.b16 %v5096, %v5092
    %v5337 = vpack.c.b16 %v5097, %v5093
    %v5338 = vpack.c.b16 %v5098, %v5094
    %v5339 = vpack.c.b16 %v5103, %v5099
    %v5340 = vpack.c.b16 %v5104, %v5100
    %v5341 = vpack.c.b16 %v5105, %v5101
    %v5342 = vpack.c.b16 %v5106, %v5102
    %v5343 = vpack.c.b16 %v5111, %v5107
    %v5344 = vpack.c.b16 %v5112, %v5108
    %v5345 = vpack.c.b16 %v5113, %v5109
    %v5346 = vpack.c.b16 %v5114, %v5110
    %v5347 = vpack.c.b16 %v5119, %v5115
    %v5348 = vpack.c.b16 %v5120, %v5116
    %v5349 = vpack.c.b16 %v5121, %v5117
    %v5350 = vpack.c.b16 %v5122, %v5118
    %v5351 = vpack.c.b16 %v5127, %v5123
    %v5352 = vpack.c.b16 %v5128, %v5124
    %v5353 = vpack.c.b16 %v5129, %v5125
    %v5354 = vpack.c.b16 %v5130, %v5126
    %v5355 = vpack.c.b16 %v5135, %v5131
    %v5356 = vpack.c.b16 %v5136, %v5132
    %v5357 = vpack.c.b16 %v5137, %v5133
    %v5358 = vpack.c.b16 %v5138, %v5134
    %v5359 = vpack.c.b16 %v5143, %v5139
    %v5360 = vpack.c.b16 %v5144, %v5140
    %v5361 = vpack.c.b16 %v5145, %v5141
    %v5362 = vpack.c.b16 %v5146, %v5142
    %v5363 = vpack.c.b16 %v5151, %v5147
    %v5364 = vpack.c.b16 %v5152, %v5148
    %v5365 = vpack.c.b16 %v5153, %v5149
    %v5366 = vpack.c.b16 %v5154, %v5150
    %v5367 = vpack.c.b16 %v5159, %v5155
    %v5368 = vpack.c.b16 %v5160, %v5156
    %v5369 = vpack.c.b16 %v5161, %v5157
    %v5370 = vpack.c.b16 %v5162, %v5158
    %v5371 = vpack.c.b16 %v5167, %v5163
    %v5372 = vpack.c.b16 %v5168, %v5164
    %v5373 = vpack.c.b16 %v5169, %v5165
    %v5374 = vpack.c.b16 %v5170, %v5166
    %v5375 = vpack.c.b16 %v5175, %v5171
    %v5376 = vpack.c.b16 %v5176, %v5172
    %v5377 = vpack.c.b16 %v5177, %v5173
    %v5378 = vpack.c.b16 %v5178, %v5174
    %v5379 = vpack.c.b16 %v5183, %v5179
    %v5380 = vpack.c.b16 %v5184, %v5180
    %v5381 = vpack.c.b16 %v5185, %v5181
    %v5382 = vpack.c.b16 %v5186, %v5182
    %v5383 = vpack.c.b16 %v5191, %v5187
    %v5384 = vpack.c.b16 %v5192, %v5188
    %v5385 = vpack.c.b16 %v5193, %v5189
    %v5386 = vpack.c.b16 %v5194, %v5190
    %v5387 = vpack.c.b16 %v5199, %v5195
    %v5388 = vpack.c.b16 %v5200, %v5196
    %v5389 = vpack.c.b16 %v5201, %v5197
    %v5390 = vpack.c.b16 %v5202, %v5198
    %v5391 = vpack.c.b16 %v5207, %v5203
    %v5392 = vpack.c.b16 %v5208, %v5204
    %v5393 = vpack.c.b16 %v5209, %v5205
    %v5394 = vpack.c.b16 %v5210, %v5206
    %v5395 = vpack.c.b16 %v5215, %v5211
    %v5396 = vpack.c.b16 %v5216, %v5212
    %v5397 = vpack.c.b16 %v5217, %v5213
    %v5398 = vpack.c.b16 %v5218, %v5214
    %v5399 = vpack.c.b16 %v5223, %v5219
    %v5400 = vpack.c.b16 %v5224, %v5220
    %v5401 = vpack.c.b16 %v5225, %v5221
    %v5402 = vpack.c.b16 %v5226, %v5222
    %v5403 = vpack.c.b16 %v5231, %v5227
    %v5404 = vpack.c.b16 %v5232, %v5228
    %v5405 = vpack.c.b16 %v5233, %v5229
    %v5406 = vpack.c.b16 %v5234, %v5230
    %v5407 = vpack.c.b16 %v5239, %v5235
    %v5408 = vpack.c.b16 %v5240, %v5236
    %v5409 = vpack.c.b16 %v5241, %v5237
    %v5410 = vpack.c.b16 %v5242, %v5238
    %v5411 = vpack.c.b16 %v5247, %v5243
    %v5412 = vpack.c.b16 %v5248, %v5244
    %v5413 = vpack.c.b16 %v5249, %v5245
    %v5414 = vpack.c.b16 %v5250, %v5246
    %v5415 = vpack.c.b16 %v5255, %v5251
    %v5416 = vpack.c.b16 %v5256, %v5252
    %v5417 = vpack.c.b16 %v5257, %v5253
    %v5418 = vpack.c.b16 %v5258, %v5254
    %v5419 = vpack.c.b16 %v5263, %v5259
    %v5420 = vpack.c.b16 %v5264, %v5260
    %v5421 = vpack.c.b16 %v5265, %v5261
    %v5422 = vpack.c.b16 %v5266, %v5262
    %v5423 = vpack.c.b16 %v5271, %v5267
    %v5424 = vpack.c.b16 %v5272, %v5268
    %v5425 = vpack.c.b16 %v5273, %v5269
    %v5426 = vpack.c.b16 %v5274, %v5270
    %v5427 = vpack.c.b16 %v5279, %v5275
    %v5428 = vpack.c.b16 %v5280, %v5276
    %v5429 = vpack.c.b16 %v5281, %v5277
    %v5430 = vpack.c.b16 %v5282, %v5278
    %v5431 = vpack.c.b16 %v5287, %v5283
    %v5432 = vpack.c.b16 %v5288, %v5284
    %v5433 = vpack.c.b16 %v5289, %v5285
    %v5434 = vpack.c.b16 %v5290, %v5286
    %v5435 = vpack.c.b16 %v5295, %v5291
    %v5436 = vpack.c.b16 %v5296, %v5292
    %v5437 = vpack.c.b16 %v5297, %v5293
    %v5438 = vpack.c.b16 %v5298, %v5294
    %v5439 = vpack.c.b16 %v5303, %v5299
    %v5440 = vpack.c.b16 %v5304, %v5300
    %v5441 = vpack.c.b16 %v5305, %v5301
    %v5442 = vpack.c.b16 %v5306, %v5302
    %v5443 = vpack.c.b16 %v5311, %v5307
    %v5444 = vpack.c.b16 %v5312, %v5308
    %v5445 = vpack.c.b16 %v5313, %v5309
    %v5446 = vpack.c.b16 %v5314, %v5310
    %v5447 = vpack.c.b16 %v5319, %v5315
    %v5448 = vpack.c.b16 %v5320, %v5316
    %v5449 = vpack.c.b16 %v5321, %v5317
    %v5450 = vpack.c.b16 %v5322, %v5318
    %5579 = vmatprep.subr.bf16.mxu0 %v5324
    %5580 = vmatpush1.bf16.msra.mxu0 %v5323
    %5581 = vmatprep.subr.bf16.mxu0 %v5328
    %5582 = vmatpush1.bf16.msra.mxu0 %v5327
    %5583 = vmatprep.subr.bf16.mxu0 %v5332
    %5584 = vmatpush1.bf16.msra.mxu0 %v5331
    %5585 = vmatprep.subr.bf16.mxu0 %v5336
    %5586 = vmatpush1.bf16.msra.mxu0 %v5335
    %5587 = vmatprep.subr.bf16.mxu0 %v5340
    %5588 = vmatpush1.bf16.msra.mxu0 %v5339
    %5589 = vmatprep.subr.bf16.mxu0 %v5344
    %5590 = vmatpush1.bf16.msra.mxu0 %v5343
    %5591 = vmatprep.subr.bf16.mxu0 %v5348
    %5592 = vmatpush1.bf16.msra.mxu0 %v5347
    %5593 = vmatprep.subr.bf16.mxu0 %v5352
    %5594 = vmatpush1.bf16.msra.mxu0 %v5351
    %5595 = vmatprep.subr.bf16.mxu0 %v5356
    %5596 = vmatpush1.bf16.msra.mxu0 %v5355
    %5597 = vmatprep.subr.bf16.mxu0 %v5360
    %5598 = vmatpush1.bf16.msra.mxu0 %v5359
    %5599 = vmatprep.subr.bf16.mxu0 %v5364
    %5600 = vmatpush1.bf16.msra.mxu0 %v5363
    %5601 = vmatprep.subr.bf16.mxu0 %v5368
    %5602 = vmatpush1.bf16.msra.mxu0 %v5367
    %5603 = vmatprep.subr.bf16.mxu0 %v5372
    %5604 = vmatpush1.bf16.msra.mxu0 %v5371
    %5605 = vmatprep.subr.bf16.mxu0 %v5376
    %5606 = vmatpush1.bf16.msra.mxu0 %v5375
    %5607 = vmatprep.subr.bf16.mxu0 %v5380
    %5608 = vmatpush1.bf16.msra.mxu0 %v5379
    %5609 = vmatprep.subr.bf16.mxu0 %v5384
    %5610 = vmatpush1.bf16.msra.mxu0 %v5383
    %5611 = vmatprep.mubr.bf16.mxu0 %v4932
    %5612 = vmatmul.mubr.bf16.gmra.mrb[0].mxu0 %v4931
    %v5613 = vpop.f32.mrb[0].mxu0
    %v5614 = vadd.f32 %v4890, %v5613
    %v5615 = vpop.f32.mrb[0].mxu0
    %v5616 = vadd.f32 %v4894, %v5615
    %v5617 = vpop.f32.mrb[0].mxu0
    %v5618 = vpop.f32.mrb[0].mxu0
    %5619 = vdwg.mxu0
    %5620 = vmatprep.subr.bf16.mxu0 %v5388
    %5621 = vmatpush1.bf16.msra.mxu0 %v5387
    %5622 = vmatprep.subr.bf16.mxu0 %v5392
    %5623 = vmatpush1.bf16.msra.mxu0 %v5391
    %5624 = vmatprep.subr.bf16.mxu0 %v5396
    %5625 = vmatpush1.bf16.msra.mxu0 %v5395
    %5626 = vmatprep.subr.bf16.mxu0 %v5400
    %5627 = vmatpush1.bf16.msra.mxu0 %v5399
    %5628 = vmatprep.subr.bf16.mxu0 %v5404
    %5629 = vmatpush1.bf16.msra.mxu0 %v5403
    %5630 = vmatprep.subr.bf16.mxu0 %v5408
    %5631 = vmatpush1.bf16.msra.mxu0 %v5407
    %5632 = vmatprep.subr.bf16.mxu0 %v5412
    %5633 = vmatpush1.bf16.msra.mxu0 %v5411
    %5634 = vmatprep.subr.bf16.mxu0 %v5416
    %5635 = vmatpush1.bf16.msra.mxu0 %v5415
    %5636 = vmatprep.subr.bf16.mxu0 %v5420
    %5637 = vmatpush1.bf16.msra.mxu0 %v5419
    %5638 = vmatprep.subr.bf16.mxu0 %v5424
    %5639 = vmatpush1.bf16.msra.mxu0 %v5423
    %5640 = vmatprep.subr.bf16.mxu0 %v5428
    %5641 = vmatpush1.bf16.msra.mxu0 %v5427
    %5642 = vmatprep.subr.bf16.mxu0 %v5432
    %5643 = vmatpush1.bf16.msra.mxu0 %v5431
    %5644 = vmatprep.subr.bf16.mxu0 %v5436
    %5645 = vmatpush1.bf16.msra.mxu0 %v5435
    %5646 = vmatprep.subr.bf16.mxu0 %v5440
    %5647 = vmatpush1.bf16.msra.mxu0 %v5439
    %5648 = vmatprep.subr.bf16.mxu0 %v5444
    %5649 = vmatpush1.bf16.msra.mxu0 %v5443
    %5650 = vmatprep.subr.bf16.mxu0 %v5448
    %5651 = vmatpush1.bf16.msra.mxu0 %v5447
    %5652 = vmatprep.mubr.bf16.mxu0 %v4934
    %5653 = vmatmul.mubr.bf16.gmra.mrb[0].mxu0 %v4933
    %v5654 = vpop.f32.mrb[0].mxu0
    %v5655 = vadd.f32 %v5614, %v5654
    %v5656 = vpop.f32.mrb[0].mxu0
    %v5657 = vadd.f32 %v5616, %v5656
    %v5658 = vpop.f32.mrb[0].mxu0
    %v5659 = vpop.f32.mrb[0].mxu0
    %5660 = vdwg.mxu0
    %5661 = vmatprep.subr.bf16.mxu0 %v5326
    %5662 = vmatpush1.bf16.msra.mxu0 %v5325
    %5663 = vmatprep.subr.bf16.mxu0 %v5330
    %5664 = vmatpush1.bf16.msra.mxu0 %v5329
    %5665 = vmatprep.subr.bf16.mxu0 %v5334
    %5666 = vmatpush1.bf16.msra.mxu0 %v5333
    %5667 = vmatprep.subr.bf16.mxu0 %v5338
    %5668 = vmatpush1.bf16.msra.mxu0 %v5337
    %5669 = vmatprep.subr.bf16.mxu0 %v5342
    %5670 = vmatpush1.bf16.msra.mxu0 %v5341
    %5671 = vmatprep.subr.bf16.mxu0 %v5346
    %5672 = vmatpush1.bf16.msra.mxu0 %v5345
    %5673 = vmatprep.subr.bf16.mxu0 %v5350
    %5674 = vmatpush1.bf16.msra.mxu0 %v5349
    %5675 = vmatprep.subr.bf16.mxu0 %v5354
    %5676 = vmatpush1.bf16.msra.mxu0 %v5353
    %5677 = vmatprep.subr.bf16.mxu0 %v5358
    %5678 = vmatpush1.bf16.msra.mxu0 %v5357
    %5679 = vmatprep.subr.bf16.mxu0 %v5362
    %5680 = vmatpush1.bf16.msra.mxu0 %v5361
    %5681 = vmatprep.subr.bf16.mxu0 %v5366
    %5682 = vmatpush1.bf16.msra.mxu0 %v5365
    %5683 = vmatprep.subr.bf16.mxu0 %v5370
    %5684 = vmatpush1.bf16.msra.mxu0 %v5369
    %5685 = vmatprep.subr.bf16.mxu0 %v5374
    %5686 = vmatpush1.bf16.msra.mxu0 %v5373
    %5687 = vmatprep.subr.bf16.mxu0 %v5378
    %5688 = vmatpush1.bf16.msra.mxu0 %v5377
    %5689 = vmatprep.subr.bf16.mxu0 %v5382
    %5690 = vmatpush1.bf16.msra.mxu0 %v5381
    %5691 = vmatprep.subr.bf16.mxu0 %v5386
    %5692 = vmatpush1.bf16.msra.mxu0 %v5385
    %5693 = vmatprep.mubr.bf16.mxu0 %v4932
    %5694 = vmatmul.mubr.bf16.gmra.mrb[0].mxu0 %v4931
    %v5695 = vpop.f32.mrb[0].mxu0
    %v5696 = vadd.f32 %v4898, %v5695
    %v5697 = vpop.f32.mrb[0].mxu0
    %v5698 = vadd.f32 %v4902, %v5697
    %v5699 = vpop.f32.mrb[0].mxu0
    %v5700 = vpop.f32.mrb[0].mxu0
    %5701 = vdwg.mxu0
    %5702 = vmatprep.subr.bf16.mxu0 %v5390
    %5703 = vmatpush1.bf16.msra.mxu0 %v5389
    %5704 = vmatprep.subr.bf16.mxu0 %v5394
    %5705 = vmatpush1.bf16.msra.mxu0 %v5393
    %5706 = vmatprep.subr.bf16.mxu0 %v5398
    %5707 = vmatpush1.bf16.msra.mxu0 %v5397
    %5708 = vmatprep.subr.bf16.mxu0 %v5402
    %5709 = vmatpush1.bf16.msra.mxu0 %v5401
    %5710 = vmatprep.subr.bf16.mxu0 %v5406
    %5711 = vmatpush1.bf16.msra.mxu0 %v5405
    %5712 = vmatprep.subr.bf16.mxu0 %v5410
    %5713 = vmatpush1.bf16.msra.mxu0 %v5409
    %5714 = vmatprep.subr.bf16.mxu0 %v5414
    %5715 = vmatpush1.bf16.msra.mxu0 %v5413
    %5716 = vmatprep.subr.bf16.mxu0 %v5418
    %5717 = vmatpush1.bf16.msra.mxu0 %v5417
    %5718 = vmatprep.subr.bf16.mxu0 %v5422
    %5719 = vmatpush1.bf16.msra.mxu0 %v5421
    %5720 = vmatprep.subr.bf16.mxu0 %v5426
    %5721 = vmatpush1.bf16.msra.mxu0 %v5425
    %5722 = vmatprep.subr.bf16.mxu0 %v5430
    %5723 = vmatpush1.bf16.msra.mxu0 %v5429
    %5724 = vmatprep.subr.bf16.mxu0 %v5434
    %5725 = vmatpush1.bf16.msra.mxu0 %v5433
    %5726 = vmatprep.subr.bf16.mxu0 %v5438
    %5727 = vmatpush1.bf16.msra.mxu0 %v5437
    %5728 = vmatprep.subr.bf16.mxu0 %v5442
    %5729 = vmatpush1.bf16.msra.mxu0 %v5441
    %5730 = vmatprep.subr.bf16.mxu0 %v5446
    %5731 = vmatpush1.bf16.msra.mxu0 %v5445
    %5732 = vmatprep.subr.bf16.mxu0 %v5450
    %5733 = vmatpush1.bf16.msra.mxu0 %v5449
    %5734 = vmatprep.mubr.bf16.mxu0 %v4934
    %5735 = vmatmul.mubr.bf16.gmra.mrb[0].mxu0 %v4933
    %v5736 = vpop.f32.mrb[0].mxu0
    %v5737 = vadd.f32 %v5696, %v5736
    %v5738 = vpop.f32.mrb[0].mxu0
    %v5739 = vadd.f32 %v5698, %v5738
    %v5740 = vpop.f32.mrb[0].mxu0
    %v5741 = vpop.f32.mrb[0].mxu0
    %5742 = vdwg.mxu0
    %v5743 = vmax.f32 %v5655, 0.0
    %v5744 = vmax.f32 %v5657, 0.0
    %v5745 = vmax.f32 %v5737, 0.0
    %v5746 = vmax.f32 %v5739, 0.0
    %v5747 = vpack.c.bf16 %v5743, %v5743
    %v5748 = vpack.c.bf16 %v5744, %v5744
    %v5749 = vpack.c.bf16 %v5745, %v5745
    %v5750 = vpack.c.bf16 %v5746, %v5746
    %v5751 = vld [vmem:[%s9] sm:$0xff]
    %v5752 = vld [vmem:[%s9 + $0x8] sm:$0xff]
    %v5753 = vld [vmem:[%s9 + $0x10] sm:$0xff]
    %v5754 = vld [vmem:[%s9 + $0x18] sm:$0xff]
    %v5755 = vld [vmem:[%s9 + $0x20] sm:$0xff]
    %v5756 = vld [vmem:[%s9 + $0x28] sm:$0xff]
    %v5757 = vld [vmem:[%s9 + $0x30] sm:$0xff]
    %v5758 = vld [vmem:[%s9 + $0x38] sm:$0xff]
    %v5759 = vld [vmem:[%s9 + $0x40] sm:$0xff]
    %v5760 = vld [vmem:[%s9 + $0x48] sm:$0xff]
    %v5761 = vld [vmem:[%s9 + $0x50] sm:$0xff]
    %v5762 = vld [vmem:[%s9 + $0x58] sm:$0xff]
    %v5763 = vld [vmem:[%s9 + $0x60] sm:$0xff]
    %v5764 = vld [vmem:[%s9 + $0x68] sm:$0xff]
    %v5765 = vld [vmem:[%s9 + $0x70] sm:$0xff]
    %v5766 = vld [vmem:[%s9 + $0x78] sm:$0xff]
    %v5767 = vld [vmem:[%s9 + $0x80] sm:$0xff]
    %v5768 = vld [vmem:[%s9 + $0x88] sm:$0xff]
    %v5769 = vld [vmem:[%s9 + $0x90] sm:$0xff]
    %v5770 = vld [vmem:[%s9 + $0x98] sm:$0xff]
    %v5771 = vld [vmem:[%s9 + $0xa0] sm:$0xff]
    %v5772 = vld [vmem:[%s9 + $0xa8] sm:$0xff]
    %v5773 = vld [vmem:[%s9 + $0xb0] sm:$0xff]
    %v5774 = vld [vmem:[%s9 + $0xb8] sm:$0xff]
    %v5775 = vld [vmem:[%s9 + $0xc0] sm:$0xff]
    %v5776 = vld [vmem:[%s9 + $0xc8] sm:$0xff]
    %v5777 = vld [vmem:[%s9 + $0xd0] sm:$0xff]
    %v5778 = vld [vmem:[%s9 + $0xd8] sm:$0xff]
    %v5779 = vld [vmem:[%s9 + $0xe0] sm:$0xff]
    %v5780 = vld [vmem:[%s9 + $0xe8] sm:$0xff]
    %v5781 = vld [vmem:[%s9 + $0xf0] sm:$0xff]
    %v5782 = vld [vmem:[%s9 + $0xf8] sm:$0xff]
    %v5783 = vld [vmem:[%s9 + $0x100] sm:$0xff]
    %v5784 = vld [vmem:[%s9 + $0x108] sm:$0xff]
    %v5785 = vld [vmem:[%s9 + $0x110] sm:$0xff]
    %v5786 = vld [vmem:[%s9 + $0x118] sm:$0xff]
    %v5787 = vld [vmem:[%s9 + $0x120] sm:$0xff]
    %v5788 = vld [vmem:[%s9 + $0x128] sm:$0xff]
    %v5789 = vld [vmem:[%s9 + $0x130] sm:$0xff]
    %v5790 = vld [vmem:[%s9 + $0x138] sm:$0xff]
    %v5791 = vld [vmem:[%s9 + $0x140] sm:$0xff]
    %v5792 = vld [vmem:[%s9 + $0x148] sm:$0xff]
    %v5793 = vld [vmem:[%s9 + $0x150] sm:$0xff]
    %v5794 = vld [vmem:[%s9 + $0x158] sm:$0xff]
    %v5795 = vld [vmem:[%s9 + $0x160] sm:$0xff]
    %v5796 = vld [vmem:[%s9 + $0x168] sm:$0xff]
    %v5797 = vld [vmem:[%s9 + $0x170] sm:$0xff]
    %v5798 = vld [vmem:[%s9 + $0x178] sm:$0xff]
    %v5799 = vld [vmem:[%s9 + $0x180] sm:$0xff]
    %v5800 = vld [vmem:[%s9 + $0x188] sm:$0xff]
    %v5801 = vld [vmem:[%s9 + $0x190] sm:$0xff]
    %v5802 = vld [vmem:[%s9 + $0x198] sm:$0xff]
    %v5803 = vld [vmem:[%s9 + $0x1a0] sm:$0xff]
    %v5804 = vld [vmem:[%s9 + $0x1a8] sm:$0xff]
    %v5805 = vld [vmem:[%s9 + $0x1b0] sm:$0xff]
    %v5806 = vld [vmem:[%s9 + $0x1b8] sm:$0xff]
    %v5807 = vld [vmem:[%s9 + $0x1c0] sm:$0xff]
    %v5808 = vld [vmem:[%s9 + $0x1c8] sm:$0xff]
    %v5809 = vld [vmem:[%s9 + $0x1d0] sm:$0xff]
    %v5810 = vld [vmem:[%s9 + $0x1d8] sm:$0xff]
    %v5811 = vld [vmem:[%s9 + $0x1e0] sm:$0xff]
    %v5812 = vld [vmem:[%s9 + $0x1e8] sm:$0xff]
    %v5813 = vld [vmem:[%s9 + $0x1f0] sm:$0xff]
    %v5814 = vld [vmem:[%s9 + $0x1f8] sm:$0xff]
    %v5815 = vld [vmem:[%s9 + $0x200] sm:$0xff]
    %v5816 = vld [vmem:[%s9 + $0x208] sm:$0xff]
    %v5817 = vld [vmem:[%s9 + $0x210] sm:$0xff]
    %v5818 = vld [vmem:[%s9 + $0x218] sm:$0xff]
    %v5819 = vld [vmem:[%s9 + $0x220] sm:$0xff]
    %v5820 = vld [vmem:[%s9 + $0x228] sm:$0xff]
    %v5821 = vld [vmem:[%s9 + $0x230] sm:$0xff]
    %v5822 = vld [vmem:[%s9 + $0x238] sm:$0xff]
    %v5823 = vld [vmem:[%s9 + $0x240] sm:$0xff]
    %v5824 = vld [vmem:[%s9 + $0x248] sm:$0xff]
    %v5825 = vld [vmem:[%s9 + $0x250] sm:$0xff]
    %v5826 = vld [vmem:[%s9 + $0x258] sm:$0xff]
    %v5827 = vld [vmem:[%s9 + $0x260] sm:$0xff]
    %v5828 = vld [vmem:[%s9 + $0x268] sm:$0xff]
    %v5829 = vld [vmem:[%s9 + $0x270] sm:$0xff]
    %v5830 = vld [vmem:[%s9 + $0x278] sm:$0xff]
    %v5831 = vld [vmem:[%s9 + $0x280] sm:$0xff]
    %v5832 = vld [vmem:[%s9 + $0x288] sm:$0xff]
    %v5833 = vld [vmem:[%s9 + $0x290] sm:$0xff]
    %v5834 = vld [vmem:[%s9 + $0x298] sm:$0xff]
    %v5835 = vld [vmem:[%s9 + $0x2a0] sm:$0xff]
    %v5836 = vld [vmem:[%s9 + $0x2a8] sm:$0xff]
    %v5837 = vld [vmem:[%s9 + $0x2b0] sm:$0xff]
    %v5838 = vld [vmem:[%s9 + $0x2b8] sm:$0xff]
    %v5839 = vld [vmem:[%s9 + $0x2c0] sm:$0xff]
    %v5840 = vld [vmem:[%s9 + $0x2c8] sm:$0xff]
    %v5841 = vld [vmem:[%s9 + $0x2d0] sm:$0xff]
    %v5842 = vld [vmem:[%s9 + $0x2d8] sm:$0xff]
    %v5843 = vld [vmem:[%s9 + $0x2e0] sm:$0xff]
    %v5844 = vld [vmem:[%s9 + $0x2e8] sm:$0xff]
    %v5845 = vld [vmem:[%s9 + $0x2f0] sm:$0xff]
    %v5846 = vld [vmem:[%s9 + $0x2f8] sm:$0xff]
    %v5847 = vld [vmem:[%s9 + $0x300] sm:$0xff]
    %v5848 = vld [vmem:[%s9 + $0x308] sm:$0xff]
    %v5849 = vld [vmem:[%s9 + $0x310] sm:$0xff]
    %v5850 = vld [vmem:[%s9 + $0x318] sm:$0xff]
    %v5851 = vld [vmem:[%s9 + $0x320] sm:$0xff]
    %v5852 = vld [vmem:[%s9 + $0x328] sm:$0xff]
    %v5853 = vld [vmem:[%s9 + $0x330] sm:$0xff]
    %v5854 = vld [vmem:[%s9 + $0x338] sm:$0xff]
    %v5855 = vld [vmem:[%s9 + $0x340] sm:$0xff]
    %v5856 = vld [vmem:[%s9 + $0x348] sm:$0xff]
    %v5857 = vld [vmem:[%s9 + $0x350] sm:$0xff]
    %v5858 = vld [vmem:[%s9 + $0x358] sm:$0xff]
    %v5859 = vld [vmem:[%s9 + $0x360] sm:$0xff]
    %v5860 = vld [vmem:[%s9 + $0x368] sm:$0xff]
    %v5861 = vld [vmem:[%s9 + $0x370] sm:$0xff]
    %v5862 = vld [vmem:[%s9 + $0x378] sm:$0xff]
    %v5863 = vld [vmem:[%s9 + $0x380] sm:$0xff]
    %v5864 = vld [vmem:[%s9 + $0x388] sm:$0xff]
    %v5865 = vld [vmem:[%s9 + $0x390] sm:$0xff]
    %v5866 = vld [vmem:[%s9 + $0x398] sm:$0xff]
    %v5867 = vld [vmem:[%s9 + $0x3a0] sm:$0xff]
    %v5868 = vld [vmem:[%s9 + $0x3a8] sm:$0xff]
    %v5869 = vld [vmem:[%s9 + $0x3b0] sm:$0xff]
    %v5870 = vld [vmem:[%s9 + $0x3b8] sm:$0xff]
    %v5871 = vld [vmem:[%s9 + $0x3c0] sm:$0xff]
    %v5872 = vld [vmem:[%s9 + $0x3c8] sm:$0xff]
    %v5873 = vld [vmem:[%s9 + $0x3d0] sm:$0xff]
    %v5874 = vld [vmem:[%s9 + $0x3d8] sm:$0xff]
    %v5875 = vld [vmem:[%s9 + $0x3e0] sm:$0xff]
    %v5876 = vld [vmem:[%s9 + $0x3e8] sm:$0xff]
    %v5877 = vld [vmem:[%s9 + $0x3f0] sm:$0xff]
    %v5878 = vld [vmem:[%s9 + $0x3f8] sm:$0xff]
    %v5879 = vld [vmem:[#allocation16] sm:$0xf]
    %v5881 = vlaneseq
    %v5882 = vshrl.u32 %v5881, 7
    %v5883 = vsub.s32 0, %v5882
    %v5884 = vrot.slane %v5879, %v5883
    %v5885 = vlaneseq
    %v5886 = vshrl.u32 %v5885, 7
    %v5887 = vsub.s32 1, %v5886
    %v5888 = vrot.slane %v5879, %v5887
    %v5889 = vlaneseq
    %v5890 = vshrl.u32 %v5889, 7
    %v5891 = vsub.s32 2, %v5890
    %v5892 = vrot.slane %v5879, %v5891
    %v5893 = vlaneseq
    %v5894 = vshrl.u32 %v5893, 7
    %v5895 = vsub.s32 3, %v5894
    %v5896 = vrot.slane %v5879, %v5895
    %v6029 = vunpack.c.l.b16 %v5751
    %v6030 = vunpack.c.h.b16 %v5751
    %v6031 = vunpack.c.l.b16 %v5752
    %v6032 = vunpack.c.h.b16 %v5752
    %v6033 = vunpack.c.l.b16 %v5753
    %v6034 = vunpack.c.h.b16 %v5753
    %v6035 = vunpack.c.l.b16 %v5754
    %v6036 = vunpack.c.h.b16 %v5754
    %v6037 = vunpack.c.l.b16 %v5755
    %v6038 = vunpack.c.h.b16 %v5755
    %v6039 = vunpack.c.l.b16 %v5756
    %v6040 = vunpack.c.h.b16 %v5756
    %v6041 = vunpack.c.l.b16 %v5757
    %v6042 = vunpack.c.h.b16 %v5757
    %v6043 = vunpack.c.l.b16 %v5758
    %v6044 = vunpack.c.h.b16 %v5758
    %v6045 = vunpack.c.l.b16 %v5759
    %v6046 = vunpack.c.h.b16 %v5759
    %v6047 = vunpack.c.l.b16 %v5760
    %v6048 = vunpack.c.h.b16 %v5760
    %v6049 = vunpack.c.l.b16 %v5761
    %v6050 = vunpack.c.h.b16 %v5761
    %v6051 = vunpack.c.l.b16 %v5762
    %v6052 = vunpack.c.h.b16 %v5762
    %v6053 = vunpack.c.l.b16 %v5763
    %v6054 = vunpack.c.h.b16 %v5763
    %v6055 = vunpack.c.l.b16 %v5764
    %v6056 = vunpack.c.h.b16 %v5764
    %v6057 = vunpack.c.l.b16 %v5765
    %v6058 = vunpack.c.h.b16 %v5765
    %v6059 = vunpack.c.l.b16 %v5766
    %v6060 = vunpack.c.h.b16 %v5766
    %v6061 = vunpack.c.l.b16 %v5767
    %v6062 = vunpack.c.h.b16 %v5767
    %v6063 = vunpack.c.l.b16 %v5768
    %v6064 = vunpack.c.h.b16 %v5768
    %v6065 = vunpack.c.l.b16 %v5769
    %v6066 = vunpack.c.h.b16 %v5769
    %v6067 = vunpack.c.l.b16 %v5770
    %v6068 = vunpack.c.h.b16 %v5770
    %v6069 = vunpack.c.l.b16 %v5771
    %v6070 = vunpack.c.h.b16 %v5771
    %v6071 = vunpack.c.l.b16 %v5772
    %v6072 = vunpack.c.h.b16 %v5772
    %v6073 = vunpack.c.l.b16 %v5773
    %v6074 = vunpack.c.h.b16 %v5773
    %v6075 = vunpack.c.l.b16 %v5774
    %v6076 = vunpack.c.h.b16 %v5774
    %v6077 = vunpack.c.l.b16 %v5775
    %v6078 = vunpack.c.h.b16 %v5775
    %v6079 = vunpack.c.l.b16 %v5776
    %v6080 = vunpack.c.h.b16 %v5776
    %v6081 = vunpack.c.l.b16 %v5777
    %v6082 = vunpack.c.h.b16 %v5777
    %v6083 = vunpack.c.l.b16 %v5778
    %v6084 = vunpack.c.h.b16 %v5778
    %v6085 = vunpack.c.l.b16 %v5779
    %v6086 = vunpack.c.h.b16 %v5779
    %v6087 = vunpack.c.l.b16 %v5780
    %v6088 = vunpack.c.h.b16 %v5780
    %v6089 = vunpack.c.l.b16 %v5781
    %v6090 = vunpack.c.h.b16 %v5781
    %v6091 = vunpack.c.l.b16 %v5782
    %v6092 = vunpack.c.h.b16 %v5782
    %v6093 = vunpack.c.l.b16 %v5783
    %v6094 = vunpack.c.h.b16 %v5783
    %v6095 = vunpack.c.l.b16 %v5784
    %v6096 = vunpack.c.h.b16 %v5784
    %v6097 = vunpack.c.l.b16 %v5785
    %v6098 = vunpack.c.h.b16 %v5785
    %v6099 = vunpack.c.l.b16 %v5786
    %v6100 = vunpack.c.h.b16 %v5786
    %v6101 = vunpack.c.l.b16 %v5787
    %v6102 = vunpack.c.h.b16 %v5787
    %v6103 = vunpack.c.l.b16 %v5788
    %v6104 = vunpack.c.h.b16 %v5788
    %v6105 = vunpack.c.l.b16 %v5789
    %v6106 = vunpack.c.h.b16 %v5789
    %v6107 = vunpack.c.l.b16 %v5790
    %v6108 = vunpack.c.h.b16 %v5790
    %v6109 = vunpack.c.l.b16 %v5791
    %v6110 = vunpack.c.h.b16 %v5791
    %v6111 = vunpack.c.l.b16 %v5792
    %v6112 = vunpack.c.h.b16 %v5792
    %v6113 = vunpack.c.l.b16 %v5793
    %v6114 = vunpack.c.h.b16 %v5793
    %v6115 = vunpack.c.l.b16 %v5794
    %v6116 = vunpack.c.h.b16 %v5794
    %v6117 = vunpack.c.l.b16 %v5795
    %v6118 = vunpack.c.h.b16 %v5795
    %v6119 = vunpack.c.l.b16 %v5796
    %v6120 = vunpack.c.h.b16 %v5796
    %v6121 = vunpack.c.l.b16 %v5797
    %v6122 = vunpack.c.h.b16 %v5797
    %v6123 = vunpack.c.l.b16 %v5798
    %v6124 = vunpack.c.h.b16 %v5798
    %v6125 = vunpack.c.l.b16 %v5799
    %v6126 = vunpack.c.h.b16 %v5799
    %v6127 = vunpack.c.l.b16 %v5800
    %v6128 = vunpack.c.h.b16 %v5800
    %v6129 = vunpack.c.l.b16 %v5801
    %v6130 = vunpack.c.h.b16 %v5801
    %v6131 = vunpack.c.l.b16 %v5802
    %v6132 = vunpack.c.h.b16 %v5802
    %v6133 = vunpack.c.l.b16 %v5803
    %v6134 = vunpack.c.h.b16 %v5803
    %v6135 = vunpack.c.l.b16 %v5804
    %v6136 = vunpack.c.h.b16 %v5804
    %v6137 = vunpack.c.l.b16 %v5805
    %v6138 = vunpack.c.h.b16 %v5805
    %v6139 = vunpack.c.l.b16 %v5806
    %v6140 = vunpack.c.h.b16 %v5806
    %v6141 = vunpack.c.l.b16 %v5807
    %v6142 = vunpack.c.h.b16 %v5807
    %v6143 = vunpack.c.l.b16 %v5808
    %v6144 = vunpack.c.h.b16 %v5808
    %v6145 = vunpack.c.l.b16 %v5809
    %v6146 = vunpack.c.h.b16 %v5809
    %v6147 = vunpack.c.l.b16 %v5810
    %v6148 = vunpack.c.h.b16 %v5810
    %v6149 = vunpack.c.l.b16 %v5811
    %v6150 = vunpack.c.h.b16 %v5811
    %v6151 = vunpack.c.l.b16 %v5812
    %v6152 = vunpack.c.h.b16 %v5812
    %v6153 = vunpack.c.l.b16 %v5813
    %v6154 = vunpack.c.h.b16 %v5813
    %v6155 = vunpack.c.l.b16 %v5814
    %v6156 = vunpack.c.h.b16 %v5814
    %v6157 = vunpack.c.l.b16 %v5815
    %v6158 = vunpack.c.h.b16 %v5815
    %v6159 = vunpack.c.l.b16 %v5816
    %v6160 = vunpack.c.h.b16 %v5816
    %v6161 = vunpack.c.l.b16 %v5817
    %v6162 = vunpack.c.h.b16 %v5817
    %v6163 = vunpack.c.l.b16 %v5818
    %v6164 = vunpack.c.h.b16 %v5818
    %v6165 = vunpack.c.l.b16 %v5819
    %v6166 = vunpack.c.h.b16 %v5819
    %v6167 = vunpack.c.l.b16 %v5820
    %v6168 = vunpack.c.h.b16 %v5820
    %v6169 = vunpack.c.l.b16 %v5821
    %v6170 = vunpack.c.h.b16 %v5821
    %v6171 = vunpack.c.l.b16 %v5822
    %v6172 = vunpack.c.h.b16 %v5822
    %v6173 = vunpack.c.l.b16 %v5823
    %v6174 = vunpack.c.h.b16 %v5823
    %v6175 = vunpack.c.l.b16 %v5824
    %v6176 = vunpack.c.h.b16 %v5824
    %v6177 = vunpack.c.l.b16 %v5825
    %v6178 = vunpack.c.h.b16 %v5825
    %v6179 = vunpack.c.l.b16 %v5826
    %v6180 = vunpack.c.h.b16 %v5826
    %v6181 = vunpack.c.l.b16 %v5827
    %v6182 = vunpack.c.h.b16 %v5827
    %v6183 = vunpack.c.l.b16 %v5828
    %v6184 = vunpack.c.h.b16 %v5828
    %v6185 = vunpack.c.l.b16 %v5829
    %v6186 = vunpack.c.h.b16 %v5829
    %v6187 = vunpack.c.l.b16 %v5830
    %v6188 = vunpack.c.h.b16 %v5830
    %v6189 = vunpack.c.l.b16 %v5831
    %v6190 = vunpack.c.h.b16 %v5831
    %v6191 = vunpack.c.l.b16 %v5832
    %v6192 = vunpack.c.h.b16 %v5832
    %v6193 = vunpack.c.l.b16 %v5833
    %v6194 = vunpack.c.h.b16 %v5833
    %v6195 = vunpack.c.l.b16 %v5834
    %v6196 = vunpack.c.h.b16 %v5834
    %v6197 = vunpack.c.l.b16 %v5835
    %v6198 = vunpack.c.h.b16 %v5835
    %v6199 = vunpack.c.l.b16 %v5836
    %v6200 = vunpack.c.h.b16 %v5836
    %v6201 = vunpack.c.l.b16 %v5837
    %v6202 = vunpack.c.h.b16 %v5837
    %v6203 = vunpack.c.l.b16 %v5838
    %v6204 = vunpack.c.h.b16 %v5838
    %v6205 = vunpack.c.l.b16 %v5839
    %v6206 = vunpack.c.h.b16 %v5839
    %v6207 = vunpack.c.l.b16 %v5840
    %v6208 = vunpack.c.h.b16 %v5840
    %v6209 = vunpack.c.l.b16 %v5841
    %v6210 = vunpack.c.h.b16 %v5841
    %v6211 = vunpack.c.l.b16 %v5842
    %v6212 = vunpack.c.h.b16 %v5842
    %v6213 = vunpack.c.l.b16 %v5843
    %v6214 = vunpack.c.h.b16 %v5843
    %v6215 = vunpack.c.l.b16 %v5844
    %v6216 = vunpack.c.h.b16 %v5844
    %v6217 = vunpack.c.l.b16 %v5845
    %v6218 = vunpack.c.h.b16 %v5845
    %v6219 = vunpack.c.l.b16 %v5846
    %v6220 = vunpack.c.h.b16 %v5846
    %v6221 = vunpack.c.l.b16 %v5847
    %v6222 = vunpack.c.h.b16 %v5847
    %v6223 = vunpack.c.l.b16 %v5848
    %v6224 = vunpack.c.h.b16 %v5848
    %v6225 = vunpack.c.l.b16 %v5849
    %v6226 = vunpack.c.h.b16 %v5849
    %v6227 = vunpack.c.l.b16 %v5850
    %v6228 = vunpack.c.h.b16 %v5850
    %v6229 = vunpack.c.l.b16 %v5851
    %v6230 = vunpack.c.h.b16 %v5851
    %v6231 = vunpack.c.l.b16 %v5852
    %v6232 = vunpack.c.h.b16 %v5852
    %v6233 = vunpack.c.l.b16 %v5853
    %v6234 = vunpack.c.h.b16 %v5853
    %v6235 = vunpack.c.l.b16 %v5854
    %v6236 = vunpack.c.h.b16 %v5854
    %v6237 = vunpack.c.l.b16 %v5855
    %v6238 = vunpack.c.h.b16 %v5855
    %v6239 = vunpack.c.l.b16 %v5856
    %v6240 = vunpack.c.h.b16 %v5856
    %v6241 = vunpack.c.l.b16 %v5857
    %v6242 = vunpack.c.h.b16 %v5857
    %v6243 = vunpack.c.l.b16 %v5858
    %v6244 = vunpack.c.h.b16 %v5858
    %v6245 = vunpack.c.l.b16 %v5859
    %v6246 = vunpack.c.h.b16 %v5859
    %v6247 = vunpack.c.l.b16 %v5860
    %v6248 = vunpack.c.h.b16 %v5860
    %v6249 = vunpack.c.l.b16 %v5861
    %v6250 = vunpack.c.h.b16 %v5861
    %v6251 = vunpack.c.l.b16 %v5862
    %v6252 = vunpack.c.h.b16 %v5862
    %v6253 = vunpack.c.l.b16 %v5863
    %v6254 = vunpack.c.h.b16 %v5863
    %v6255 = vunpack.c.l.b16 %v5864
    %v6256 = vunpack.c.h.b16 %v5864
    %v6257 = vunpack.c.l.b16 %v5865
    %v6258 = vunpack.c.h.b16 %v5865
    %v6259 = vunpack.c.l.b16 %v5866
    %v6260 = vunpack.c.h.b16 %v5866
    %v6261 = vunpack.c.l.b16 %v5867
    %v6262 = vunpack.c.h.b16 %v5867
    %v6263 = vunpack.c.l.b16 %v5868
    %v6264 = vunpack.c.h.b16 %v5868
    %v6265 = vunpack.c.l.b16 %v5869
    %v6266 = vunpack.c.h.b16 %v5869
    %v6267 = vunpack.c.l.b16 %v5870
    %v6268 = vunpack.c.h.b16 %v5870
    %v6269 = vunpack.c.l.b16 %v5871
    %v6270 = vunpack.c.h.b16 %v5871
    %v6271 = vunpack.c.l.b16 %v5872
    %v6272 = vunpack.c.h.b16 %v5872
    %v6273 = vunpack.c.l.b16 %v5873
    %v6274 = vunpack.c.h.b16 %v5873
    %v6275 = vunpack.c.l.b16 %v5874
    %v6276 = vunpack.c.h.b16 %v5874
    %v6277 = vunpack.c.l.b16 %v5875
    %v6278 = vunpack.c.h.b16 %v5875
    %v6279 = vunpack.c.l.b16 %v5876
    %v6280 = vunpack.c.h.b16 %v5876
    %v6281 = vunpack.c.l.b16 %v5877
    %v6282 = vunpack.c.h.b16 %v5877
    %v6283 = vunpack.c.l.b16 %v5878
    %v6284 = vunpack.c.h.b16 %v5878
    %v6285 = vpack.c.b16 %v6033, %v6029
    %v6286 = vpack.c.b16 %v6034, %v6030
    %v6287 = vpack.c.b16 %v6035, %v6031
    %v6288 = vpack.c.b16 %v6036, %v6032
    %v6289 = vpack.c.b16 %v6041, %v6037
    %v6290 = vpack.c.b16 %v6042, %v6038
    %v6291 = vpack.c.b16 %v6043, %v6039
    %v6292 = vpack.c.b16 %v6044, %v6040
    %v6293 = vpack.c.b16 %v6049, %v6045
    %v6294 = vpack.c.b16 %v6050, %v6046
    %v6295 = vpack.c.b16 %v6051, %v6047
    %v6296 = vpack.c.b16 %v6052, %v6048
    %v6297 = vpack.c.b16 %v6057, %v6053
    %v6298 = vpack.c.b16 %v6058, %v6054
    %v6299 = vpack.c.b16 %v6059, %v6055
    %v6300 = vpack.c.b16 %v6060, %v6056
    %v6301 = vpack.c.b16 %v6065, %v6061
    %v6302 = vpack.c.b16 %v6066, %v6062
    %v6303 = vpack.c.b16 %v6067, %v6063
    %v6304 = vpack.c.b16 %v6068, %v6064
    %v6305 = vpack.c.b16 %v6073, %v6069
    %v6306 = vpack.c.b16 %v6074, %v6070
    %v6307 = vpack.c.b16 %v6075, %v6071
    %v6308 = vpack.c.b16 %v6076, %v6072
    %v6309 = vpack.c.b16 %v6081, %v6077
    %v6310 = vpack.c.b16 %v6082, %v6078
    %v6311 = vpack.c.b16 %v6083, %v6079
    %v6312 = vpack.c.b16 %v6084, %v6080
    %v6313 = vpack.c.b16 %v6089, %v6085
    %v6314 = vpack.c.b16 %v6090, %v6086
    %v6315 = vpack.c.b16 %v6091, %v6087
    %v6316 = vpack.c.b16 %v6092, %v6088
    %v6317 = vpack.c.b16 %v6097, %v6093
    %v6318 = vpack.c.b16 %v6098, %v6094
    %v6319 = vpack.c.b16 %v6099, %v6095
    %v6320 = vpack.c.b16 %v6100, %v6096
    %v6321 = vpack.c.b16 %v6105, %v6101
    %v6322 = vpack.c.b16 %v6106, %v6102
    %v6323 = vpack.c.b16 %v6107, %v6103
    %v6324 = vpack.c.b16 %v6108, %v6104
    %v6325 = vpack.c.b16 %v6113, %v6109
    %v6326 = vpack.c.b16 %v6114, %v6110
    %v6327 = vpack.c.b16 %v6115, %v6111
    %v6328 = vpack.c.b16 %v6116, %v6112
    %v6329 = vpack.c.b16 %v6121, %v6117
    %v6330 = vpack.c.b16 %v6122, %v6118
    %v6331 = vpack.c.b16 %v6123, %v6119
    %v6332 = vpack.c.b16 %v6124, %v6120
    %v6333 = vpack.c.b16 %v6129, %v6125
    %v6334 = vpack.c.b16 %v6130, %v6126
    %v6335 = vpack.c.b16 %v6131, %v6127
    %v6336 = vpack.c.b16 %v6132, %v6128
    %v6337 = vpack.c.b16 %v6137, %v6133
    %v6338 = vpack.c.b16 %v6138, %v6134
    %v6339 = vpack.c.b16 %v6139, %v6135
    %v6340 = vpack.c.b16 %v6140, %v6136
    %v6341 = vpack.c.b16 %v6145, %v6141
    %v6342 = vpack.c.b16 %v6146, %v6142
    %v6343 = vpack.c.b16 %v6147, %v6143
    %v6344 = vpack.c.b16 %v6148, %v6144
    %v6345 = vpack.c.b16 %v6153, %v6149
    %v6346 = vpack.c.b16 %v6154, %v6150
    %v6347 = vpack.c.b16 %v6155, %v6151
    %v6348 = vpack.c.b16 %v6156, %v6152
    %v6349 = vpack.c.b16 %v6161, %v6157
    %v6350 = vpack.c.b16 %v6162, %v6158
    %v6351 = vpack.c.b16 %v6163, %v6159
    %v6352 = vpack.c.b16 %v6164, %v6160
    %v6353 = vpack.c.b16 %v6169, %v6165
    %v6354 = vpack.c.b16 %v6170, %v6166
    %v6355 = vpack.c.b16 %v6171, %v6167
    %v6356 = vpack.c.b16 %v6172, %v6168
    %v6357 = vpack.c.b16 %v6177, %v6173
    %v6358 = vpack.c.b16 %v6178, %v6174
    %v6359 = vpack.c.b16 %v6179, %v6175
    %v6360 = vpack.c.b16 %v6180, %v6176
    %v6361 = vpack.c.b16 %v6185, %v6181
    %v6362 = vpack.c.b16 %v6186, %v6182
    %v6363 = vpack.c.b16 %v6187, %v6183
    %v6364 = vpack.c.b16 %v6188, %v6184
    %v6365 = vpack.c.b16 %v6193, %v6189
    %v6366 = vpack.c.b16 %v6194, %v6190
    %v6367 = vpack.c.b16 %v6195, %v6191
    %v6368 = vpack.c.b16 %v6196, %v6192
    %v6369 = vpack.c.b16 %v6201, %v6197
    %v6370 = vpack.c.b16 %v6202, %v6198
    %v6371 = vpack.c.b16 %v6203, %v6199
    %v6372 = vpack.c.b16 %v6204, %v6200
    %v6373 = vpack.c.b16 %v6209, %v6205
    %v6374 = vpack.c.b16 %v6210, %v6206
    %v6375 = vpack.c.b16 %v6211, %v6207
    %v6376 = vpack.c.b16 %v6212, %v6208
    %v6377 = vpack.c.b16 %v6217, %v6213
    %v6378 = vpack.c.b16 %v6218, %v6214
    %v6379 = vpack.c.b16 %v6219, %v6215
    %v6380 = vpack.c.b16 %v6220, %v6216
    %v6381 = vpack.c.b16 %v6225, %v6221
    %v6382 = vpack.c.b16 %v6226, %v6222
    %v6383 = vpack.c.b16 %v6227, %v6223
    %v6384 = vpack.c.b16 %v6228, %v6224
    %v6385 = vpack.c.b16 %v6233, %v6229
    %v6386 = vpack.c.b16 %v6234, %v6230
    %v6387 = vpack.c.b16 %v6235, %v6231
    %v6388 = vpack.c.b16 %v6236, %v6232
    %v6389 = vpack.c.b16 %v6241, %v6237
    %v6390 = vpack.c.b16 %v6242, %v6238
    %v6391 = vpack.c.b16 %v6243, %v6239
    %v6392 = vpack.c.b16 %v6244, %v6240
    %v6393 = vpack.c.b16 %v6249, %v6245
    %v6394 = vpack.c.b16 %v6250, %v6246
    %v6395 = vpack.c.b16 %v6251, %v6247
    %v6396 = vpack.c.b16 %v6252, %v6248
    %v6397 = vpack.c.b16 %v6257, %v6253
    %v6398 = vpack.c.b16 %v6258, %v6254
    %v6399 = vpack.c.b16 %v6259, %v6255
    %v6400 = vpack.c.b16 %v6260, %v6256
    %v6401 = vpack.c.b16 %v6265, %v6261
    %v6402 = vpack.c.b16 %v6266, %v6262
    %v6403 = vpack.c.b16 %v6267, %v6263
    %v6404 = vpack.c.b16 %v6268, %v6264
    %v6405 = vpack.c.b16 %v6273, %v6269
    %v6406 = vpack.c.b16 %v6274, %v6270
    %v6407 = vpack.c.b16 %v6275, %v6271
    %v6408 = vpack.c.b16 %v6276, %v6272
    %v6409 = vpack.c.b16 %v6281, %v6277
    %v6410 = vpack.c.b16 %v6282, %v6278
    %v6411 = vpack.c.b16 %v6283, %v6279
    %v6412 = vpack.c.b16 %v6284, %v6280
    %6541 = vmatprep.subr.bf16.mxu0 %v6286
    %6542 = vmatpush1.bf16.msra.mxu0 %v6285
    %6543 = vmatprep.subr.bf16.mxu0 %v6290
    %6544 = vmatpush1.bf16.msra.mxu0 %v6289
    %6545 = vmatprep.subr.bf16.mxu0 %v6294
    %6546 = vmatpush1.bf16.msra.mxu0 %v6293
    %6547 = vmatprep.subr.bf16.mxu0 %v6298
    %6548 = vmatpush1.bf16.msra.mxu0 %v6297
    %6549 = vmatprep.subr.bf16.mxu0 %v6302
    %6550 = vmatpush1.bf16.msra.mxu0 %v6301
    %6551 = vmatprep.subr.bf16.mxu0 %v6306
    %6552 = vmatpush1.bf16.msra.mxu0 %v6305
    %6553 = vmatprep.subr.bf16.mxu0 %v6310
    %6554 = vmatpush1.bf16.msra.mxu0 %v6309
    %6555 = vmatprep.subr.bf16.mxu0 %v6314
    %6556 = vmatpush1.bf16.msra.mxu0 %v6313
    %6557 = vmatprep.subr.bf16.mxu0 %v6318
    %6558 = vmatpush1.bf16.msra.mxu0 %v6317
    %6559 = vmatprep.subr.bf16.mxu0 %v6322
    %6560 = vmatpush1.bf16.msra.mxu0 %v6321
    %6561 = vmatprep.subr.bf16.mxu0 %v6326
    %6562 = vmatpush1.bf16.msra.mxu0 %v6325
    %6563 = vmatprep.subr.bf16.mxu0 %v6330
    %6564 = vmatpush1.bf16.msra.mxu0 %v6329
    %6565 = vmatprep.subr.bf16.mxu0 %v6334
    %6566 = vmatpush1.bf16.msra.mxu0 %v6333
    %6567 = vmatprep.subr.bf16.mxu0 %v6338
    %6568 = vmatpush1.bf16.msra.mxu0 %v6337
    %6569 = vmatprep.subr.bf16.mxu0 %v6342
    %6570 = vmatpush1.bf16.msra.mxu0 %v6341
    %6571 = vmatprep.subr.bf16.mxu0 %v6346
    %6572 = vmatpush1.bf16.msra.mxu0 %v6345
    %6573 = vmatprep.mubr.bf16.mxu0 %v5748
    %6574 = vmatmul.mubr.bf16.gmra.mrb[0].mxu0 %v5747
    %v6575 = vpop.f32.mrb[0].mxu0
    %v6576 = vadd.f32 %v5884, %v6575
    %v6577 = vpop.f32.mrb[0].mxu0
    %v6578 = vadd.f32 %v5888, %v6577
    %v6579 = vpop.f32.mrb[0].mxu0
    %v6580 = vpop.f32.mrb[0].mxu0
    %6581 = vdwg.mxu0
    %6582 = vmatprep.subr.bf16.mxu0 %v6350
    %6583 = vmatpush1.bf16.msra.mxu0 %v6349
    %6584 = vmatprep.subr.bf16.mxu0 %v6354
    %6585 = vmatpush1.bf16.msra.mxu0 %v6353
    %6586 = vmatprep.subr.bf16.mxu0 %v6358
    %6587 = vmatpush1.bf16.msra.mxu0 %v6357
    %6588 = vmatprep.subr.bf16.mxu0 %v6362
    %6589 = vmatpush1.bf16.msra.mxu0 %v6361
    %6590 = vmatprep.subr.bf16.mxu0 %v6366
    %6591 = vmatpush1.bf16.msra.mxu0 %v6365
    %6592 = vmatprep.subr.bf16.mxu0 %v6370
    %6593 = vmatpush1.bf16.msra.mxu0 %v6369
    %6594 = vmatprep.subr.bf16.mxu0 %v6374
    %6595 = vmatpush1.bf16.msra.mxu0 %v6373
    %6596 = vmatprep.subr.bf16.mxu0 %v6378
    %6597 = vmatpush1.bf16.msra.mxu0 %v6377
    %6598 = vmatprep.subr.bf16.mxu0 %v6382
    %6599 = vmatpush1.bf16.msra.mxu0 %v6381
    %6600 = vmatprep.subr.bf16.mxu0 %v6386
    %6601 = vmatpush1.bf16.msra.mxu0 %v6385
    %6602 = vmatprep.subr.bf16.mxu0 %v6390
    %6603 = vmatpush1.bf16.msra.mxu0 %v6389
    %6604 = vmatprep.subr.bf16.mxu0 %v6394
    %6605 = vmatpush1.bf16.msra.mxu0 %v6393
    %6606 = vmatprep.subr.bf16.mxu0 %v6398
    %6607 = vmatpush1.bf16.msra.mxu0 %v6397
    %6608 = vmatprep.subr.bf16.mxu0 %v6402
    %6609 = vmatpush1.bf16.msra.mxu0 %v6401
    %6610 = vmatprep.subr.bf16.mxu0 %v6406
    %6611 = vmatpush1.bf16.msra.mxu0 %v6405
    %6612 = vmatprep.subr.bf16.mxu0 %v6410
    %6613 = vmatpush1.bf16.msra.mxu0 %v6409
    %6614 = vmatprep.mubr.bf16.mxu0 %v5750
    %6615 = vmatmul.mubr.bf16.gmra.mrb[0].mxu0 %v5749
    %v6616 = vpop.f32.mrb[0].mxu0
    %v6617 = vadd.f32 %v6576, %v6616
    %v6618 = vpop.f32.mrb[0].mxu0
    %v6619 = vadd.f32 %v6578, %v6618
    %v6620 = vpop.f32.mrb[0].mxu0
    %v6621 = vpop.f32.mrb[0].mxu0
    %6622 = vdwg.mxu0
    %6623 = vmatprep.subr.bf16.mxu0 %v6288
    %6624 = vmatpush1.bf16.msra.mxu0 %v6287
    %6625 = vmatprep.subr.bf16.mxu0 %v6292
    %6626 = vmatpush1.bf16.msra.mxu0 %v6291
    %6627 = vmatprep.subr.bf16.mxu0 %v6296
    %6628 = vmatpush1.bf16.msra.mxu0 %v6295
    %6629 = vmatprep.subr.bf16.mxu0 %v6300
    %6630 = vmatpush1.bf16.msra.mxu0 %v6299
    %6631 = vmatprep.subr.bf16.mxu0 %v6304
    %6632 = vmatpush1.bf16.msra.mxu0 %v6303
    %6633 = vmatprep.subr.bf16.mxu0 %v6308
    %6634 = vmatpush1.bf16.msra.mxu0 %v6307
    %6635 = vmatprep.subr.bf16.mxu0 %v6312
    %6636 = vmatpush1.bf16.msra.mxu0 %v6311
    %6637 = vmatprep.subr.bf16.mxu0 %v6316
    %6638 = vmatpush1.bf16.msra.mxu0 %v6315
    %6639 = vmatprep.subr.bf16.mxu0 %v6320
    %6640 = vmatpush1.bf16.msra.mxu0 %v6319
    %6641 = vmatprep.subr.bf16.mxu0 %v6324
    %6642 = vmatpush1.bf16.msra.mxu0 %v6323
    %6643 = vmatprep.subr.bf16.mxu0 %v6328
    %6644 = vmatpush1.bf16.msra.mxu0 %v6327
    %6645 = vmatprep.subr.bf16.mxu0 %v6332
    %6646 = vmatpush1.bf16.msra.mxu0 %v6331
    %6647 = vmatprep.subr.bf16.mxu0 %v6336
    %6648 = vmatpush1.bf16.msra.mxu0 %v6335
    %6649 = vmatprep.subr.bf16.mxu0 %v6340
    %6650 = vmatpush1.bf16.msra.mxu0 %v6339
    %6651 = vmatprep.subr.bf16.mxu0 %v6344
    %6652 = vmatpush1.bf16.msra.mxu0 %v6343
    %6653 = vmatprep.subr.bf16.mxu0 %v6348
    %6654 = vmatpush1.bf16.msra.mxu0 %v6347
    %6655 = vmatprep.mubr.bf16.mxu0 %v5748
    %6656 = vmatmul.mubr.bf16.gmra.mrb[0].mxu0 %v5747
    %v6657 = vpop.f32.mrb[0].mxu0
    %v6658 = vadd.f32 %v5892, %v6657
    %v6659 = vpop.f32.mrb[0].mxu0
    %v6660 = vadd.f32 %v5896, %v6659
    %v6661 = vpop.f32.mrb[0].mxu0
    %v6662 = vpop.f32.mrb[0].mxu0
    %6663 = vdwg.mxu0
    %6664 = vmatprep.subr.bf16.mxu0 %v6352
    %6665 = vmatpush1.bf16.msra.mxu0 %v6351
    %6666 = vmatprep.subr.bf16.mxu0 %v6356
    %6667 = vmatpush1.bf16.msra.mxu0 %v6355
    %6668 = vmatprep.subr.bf16.mxu0 %v6360
    %6669 = vmatpush1.bf16.msra.mxu0 %v6359
    %6670 = vmatprep.subr.bf16.mxu0 %v6364
    %6671 = vmatpush1.bf16.msra.mxu0 %v6363
    %6672 = vmatprep.subr.bf16.mxu0 %v6368
    %6673 = vmatpush1.bf16.msra.mxu0 %v6367
    %6674 = vmatprep.subr.bf16.mxu0 %v6372
    %6675 = vmatpush1.bf16.msra.mxu0 %v6371
    %6676 = vmatprep.subr.bf16.mxu0 %v6376
    %6677 = vmatpush1.bf16.msra.mxu0 %v6375
    %6678 = vmatprep.subr.bf16.mxu0 %v6380
    %6679 = vmatpush1.bf16.msra.mxu0 %v6379
    %6680 = vmatprep.subr.bf16.mxu0 %v6384
    %6681 = vmatpush1.bf16.msra.mxu0 %v6383
    %6682 = vmatprep.subr.bf16.mxu0 %v6388
    %6683 = vmatpush1.bf16.msra.mxu0 %v6387
    %6684 = vmatprep.subr.bf16.mxu0 %v6392
    %6685 = vmatpush1.bf16.msra.mxu0 %v6391
    %6686 = vmatprep.subr.bf16.mxu0 %v6396
    %6687 = vmatpush1.bf16.msra.mxu0 %v6395
    %6688 = vmatprep.subr.bf16.mxu0 %v6400
    %6689 = vmatpush1.bf16.msra.mxu0 %v6399
    %6690 = vmatprep.subr.bf16.mxu0 %v6404
    %6691 = vmatpush1.bf16.msra.mxu0 %v6403
    %6692 = vmatprep.subr.bf16.mxu0 %v6408
    %6693 = vmatpush1.bf16.msra.mxu0 %v6407
    %6694 = vmatprep.subr.bf16.mxu0 %v6412
    %6695 = vmatpush1.bf16.msra.mxu0 %v6411
    %6696 = vmatprep.mubr.bf16.mxu0 %v5750
    %6697 = vmatmul.mubr.bf16.gmra.mrb[0].mxu0 %v5749
    %v6698 = vpop.f32.mrb[0].mxu0
    %v6699 = vadd.f32 %v6658, %v6698
    %v6700 = vpop.f32.mrb[0].mxu0
    %v6701 = vadd.f32 %v6660, %v6700
    %v6702 = vpop.f32.mrb[0].mxu0
    %v6703 = vpop.f32.mrb[0].mxu0
    %6704 = vdwg.mxu0
    %v6705 = vmax.f32 %v6617, 0.0
    %v6706 = vmax.f32 %v6619, 0.0
    %v6707 = vmax.f32 %v6699, 0.0
    %v6708 = vmax.f32 %v6701, 0.0
    %v6713 = vcombine.low %v6705, %v6706
    %v6714 = vcombine.low %v6707, %v6708
    %v6716 = vunpack.c.l.s4 1983009808
    %v6717 = vunpack.c.0.s8 %v6716
    %v6718 = vlaneseq
    %v6719 = vshrl.u32 %v6718, 7
    %v6720 = vsub.s32 %v6717, %v6719
    %v6721 = vrot.slane %v6713, %v6720
    %v6723 = vunpack.c.l.s4 1983009808
    %v6724 = vunpack.c.0.s8 %v6723
    %v6725 = vlaneseq
    %v6726 = vshrl.u32 %v6725, 7
    %v6727 = vsub.s32 %v6724, %v6726
    %v6728 = vrot.slane %v6714, %v6727
    %v6729 = vcombine.low %v6721, %v6728
    %6731 = vst [vmem:[#allocation21] sm:$0xff] %v6729
    %v6732 = vpack.c.bf16 %v6705, %v6705
    %v6733 = vpack.c.bf16 %v6706, %v6706
    %v6734 = vpack.c.bf16 %v6707, %v6707
    %v6735 = vpack.c.bf16 %v6708, %v6708
    %v6736 = vld [vmem:[#allocation18] sm:$0xf]
    %v6737 = vld [vmem:[#allocation18 + $0x4] sm:$0xf]
    %v6738 = vld [vmem:[#allocation18 + $0x8] sm:$0xf]
    %v6739 = vld [vmem:[#allocation18 + $0xc] sm:$0xf]
    %v6740 = vld [vmem:[#allocation18 + $0x10] sm:$0xf]
    %v6741 = vld [vmem:[#allocation18 + $0x14] sm:$0xf]
    %v6742 = vld [vmem:[#allocation18 + $0x18] sm:$0xf]
    %v6743 = vld [vmem:[#allocation18 + $0x1c] sm:$0xf]
    %v6744 = vld [vmem:[#allocation18 + $0x20] sm:$0xf]
    %v6745 = vld [vmem:[#allocation18 + $0x24] sm:$0xf]
    %v6746 = vld [vmem:[#allocation18 + $0x28] sm:$0xf]
    %v6747 = vld [vmem:[#allocation18 + $0x2c] sm:$0xf]
    %v6748 = vld [vmem:[#allocation18 + $0x30] sm:$0xf]
    %v6749 = vld [vmem:[#allocation18 + $0x34] sm:$0xf]
    %v6750 = vld [vmem:[#allocation18 + $0x38] sm:$0xf]
    %v6751 = vld [vmem:[#allocation18 + $0x3c] sm:$0xf]
    %v6752 = vld [vmem:[#allocation18 + $0x40] sm:$0xf]
    %v6753 = vld [vmem:[#allocation18 + $0x44] sm:$0xf]
    %v6754 = vld [vmem:[#allocation18 + $0x48] sm:$0xf]
    %v6755 = vld [vmem:[#allocation18 + $0x4c] sm:$0xf]
    %v6756 = vld [vmem:[#allocation18 + $0x50] sm:$0xf]
    %v6757 = vld [vmem:[#allocation18 + $0x54] sm:$0xf]
    %v6758 = vld [vmem:[#allocation18 + $0x58] sm:$0xf]
    %v6759 = vld [vmem:[#allocation18 + $0x5c] sm:$0xf]
    %v6760 = vld [vmem:[#allocation18 + $0x60] sm:$0xf]
    %v6761 = vld [vmem:[#allocation18 + $0x64] sm:$0xf]
    %v6762 = vld [vmem:[#allocation18 + $0x68] sm:$0xf]
    %v6763 = vld [vmem:[#allocation18 + $0x6c] sm:$0xf]
    %v6764 = vld [vmem:[#allocation18 + $0x70] sm:$0xf]
    %v6765 = vld [vmem:[#allocation18 + $0x74] sm:$0xf]
    %v6766 = vld [vmem:[#allocation18 + $0x78] sm:$0xf]
    %v6767 = vld [vmem:[#allocation18 + $0x7c] sm:$0xf]
    %v6768 = vld [vmem:[#allocation18 + $0x80] sm:$0xf]
    %v6769 = vld [vmem:[#allocation18 + $0x84] sm:$0xf]
    %v6770 = vld [vmem:[#allocation18 + $0x88] sm:$0xf]
    %v6771 = vld [vmem:[#allocation18 + $0x8c] sm:$0xf]
    %v6772 = vld [vmem:[#allocation18 + $0x90] sm:$0xf]
    %v6773 = vld [vmem:[#allocation18 + $0x94] sm:$0xf]
    %v6774 = vld [vmem:[#allocation18 + $0x98] sm:$0xf]
    %v6775 = vld [vmem:[#allocation18 + $0x9c] sm:$0xf]
    %v6776 = vld [vmem:[#allocation18 + $0xa0] sm:$0xf]
    %v6777 = vld [vmem:[#allocation18 + $0xa4] sm:$0xf]
    %v6778 = vld [vmem:[#allocation18 + $0xa8] sm:$0xf]
    %v6779 = vld [vmem:[#allocation18 + $0xac] sm:$0xf]
    %v6780 = vld [vmem:[#allocation18 + $0xb0] sm:$0xf]
    %v6781 = vld [vmem:[#allocation18 + $0xb4] sm:$0xf]
    %v6782 = vld [vmem:[#allocation18 + $0xb8] sm:$0xf]
    %v6783 = vld [vmem:[#allocation18 + $0xbc] sm:$0xf]
    %v6784 = vld [vmem:[#allocation18 + $0xc0] sm:$0xf]
    %v6785 = vld [vmem:[#allocation18 + $0xc4] sm:$0xf]
    %v6786 = vld [vmem:[#allocation18 + $0xc8] sm:$0xf]
    %v6787 = vld [vmem:[#allocation18 + $0xcc] sm:$0xf]
    %v6788 = vld [vmem:[#allocation18 + $0xd0] sm:$0xf]
    %v6789 = vld [vmem:[#allocation18 + $0xd4] sm:$0xf]
    %v6790 = vld [vmem:[#allocation18 + $0xd8] sm:$0xf]
    %v6791 = vld [vmem:[#allocation18 + $0xdc] sm:$0xf]
    %v6792 = vld [vmem:[#allocation18 + $0xe0] sm:$0xf]
    %v6793 = vld [vmem:[#allocation18 + $0xe4] sm:$0xf]
    %v6794 = vld [vmem:[#allocation18 + $0xe8] sm:$0xf]
    %v6795 = vld [vmem:[#allocation18 + $0xec] sm:$0xf]
    %v6796 = vld [vmem:[#allocation18 + $0xf0] sm:$0xf]
    %v6797 = vld [vmem:[#allocation18 + $0xf4] sm:$0xf]
    %v6798 = vld [vmem:[#allocation18 + $0xf8] sm:$0xf]
    %v6799 = vld [vmem:[#allocation18 + $0xfc] sm:$0xf]
    %v6800 = vld [vmem:[#allocation19] sm:$0x1]
    %v6802 = vlaneseq
    %v6803 = vshrl.u32 %v6802, 7
    %v6804 = vsub.s32 0, %v6803
    %v6805 = vrot.slane %v6800, %v6804
    %v6871 = vunpack.c.l.b16 %v6736
    %v6872 = vunpack.c.l.b16 %v6737
    %v6873 = vunpack.c.l.b16 %v6738
    %v6874 = vunpack.c.l.b16 %v6739
    %v6875 = vunpack.c.l.b16 %v6740
    %v6876 = vunpack.c.l.b16 %v6741
    %v6877 = vunpack.c.l.b16 %v6742
    %v6878 = vunpack.c.l.b16 %v6743
    %v6879 = vunpack.c.l.b16 %v6744
    %v6880 = vunpack.c.l.b16 %v6745
    %v6881 = vunpack.c.l.b16 %v6746
    %v6882 = vunpack.c.l.b16 %v6747
    %v6883 = vunpack.c.l.b16 %v6748
    %v6884 = vunpack.c.l.b16 %v6749
    %v6885 = vunpack.c.l.b16 %v6750
    %v6886 = vunpack.c.l.b16 %v6751
    %v6887 = vunpack.c.l.b16 %v6752
    %v6888 = vunpack.c.l.b16 %v6753
    %v6889 = vunpack.c.l.b16 %v6754
    %v6890 = vunpack.c.l.b16 %v6755
    %v6891 = vunpack.c.l.b16 %v6756
    %v6892 = vunpack.c.l.b16 %v6757
    %v6893 = vunpack.c.l.b16 %v6758
    %v6894 = vunpack.c.l.b16 %v6759
    %v6895 = vunpack.c.l.b16 %v6760
    %v6896 = vunpack.c.l.b16 %v6761
    %v6897 = vunpack.c.l.b16 %v6762
    %v6898 = vunpack.c.l.b16 %v6763
    %v6899 = vunpack.c.l.b16 %v6764
    %v6900 = vunpack.c.l.b16 %v6765
    %v6901 = vunpack.c.l.b16 %v6766
    %v6902 = vunpack.c.l.b16 %v6767
    %v6903 = vunpack.c.l.b16 %v6768
    %v6904 = vunpack.c.l.b16 %v6769
    %v6905 = vunpack.c.l.b16 %v6770
    %v6906 = vunpack.c.l.b16 %v6771
    %v6907 = vunpack.c.l.b16 %v6772
    %v6908 = vunpack.c.l.b16 %v6773
    %v6909 = vunpack.c.l.b16 %v6774
    %v6910 = vunpack.c.l.b16 %v6775
    %v6911 = vunpack.c.l.b16 %v6776
    %v6912 = vunpack.c.l.b16 %v6777
    %v6913 = vunpack.c.l.b16 %v6778
    %v6914 = vunpack.c.l.b16 %v6779
    %v6915 = vunpack.c.l.b16 %v6780
    %v6916 = vunpack.c.l.b16 %v6781
    %v6917 = vunpack.c.l.b16 %v6782
    %v6918 = vunpack.c.l.b16 %v6783
    %v6919 = vunpack.c.l.b16 %v6784
    %v6920 = vunpack.c.l.b16 %v6785
    %v6921 = vunpack.c.l.b16 %v6786
    %v6922 = vunpack.c.l.b16 %v6787
    %v6923 = vunpack.c.l.b16 %v6788
    %v6924 = vunpack.c.l.b16 %v6789
    %v6925 = vunpack.c.l.b16 %v6790
    %v6926 = vunpack.c.l.b16 %v6791
    %v6927 = vunpack.c.l.b16 %v6792
    %v6928 = vunpack.c.l.b16 %v6793
    %v6929 = vunpack.c.l.b16 %v6794
    %v6930 = vunpack.c.l.b16 %v6795
    %v6931 = vunpack.c.l.b16 %v6796
    %v6932 = vunpack.c.l.b16 %v6797
    %v6933 = vunpack.c.l.b16 %v6798
    %v6934 = vunpack.c.l.b16 %v6799
    %v6935 = vpack.c.b16 %v6872, %v6871
    %v6936 = vpack.c.b16 %v6874, %v6873
    %v6937 = vpack.c.b16 %v6876, %v6875
    %v6938 = vpack.c.b16 %v6878, %v6877
    %v6939 = vpack.c.b16 %v6880, %v6879
    %v6940 = vpack.c.b16 %v6882, %v6881
    %v6941 = vpack.c.b16 %v6884, %v6883
    %v6942 = vpack.c.b16 %v6886, %v6885
    %v6943 = vpack.c.b16 %v6888, %v6887
    %v6944 = vpack.c.b16 %v6890, %v6889
    %v6945 = vpack.c.b16 %v6892, %v6891
    %v6946 = vpack.c.b16 %v6894, %v6893
    %v6947 = vpack.c.b16 %v6896, %v6895
    %v6948 = vpack.c.b16 %v6898, %v6897
    %v6949 = vpack.c.b16 %v6900, %v6899
    %v6950 = vpack.c.b16 %v6902, %v6901
    %v6951 = vpack.c.b16 %v6904, %v6903
    %v6952 = vpack.c.b16 %v6906, %v6905
    %v6953 = vpack.c.b16 %v6908, %v6907
    %v6954 = vpack.c.b16 %v6910, %v6909
    %v6955 = vpack.c.b16 %v6912, %v6911
    %v6956 = vpack.c.b16 %v6914, %v6913
    %v6957 = vpack.c.b16 %v6916, %v6915
    %v6958 = vpack.c.b16 %v6918, %v6917
    %v6959 = vpack.c.b16 %v6920, %v6919
    %v6960 = vpack.c.b16 %v6922, %v6921
    %v6961 = vpack.c.b16 %v6924, %v6923
    %v6962 = vpack.c.b16 %v6926, %v6925
    %v6963 = vpack.c.b16 %v6928, %v6927
    %v6964 = vpack.c.b16 %v6930, %v6929
    %v6965 = vpack.c.b16 %v6932, %v6931
    %v6966 = vpack.c.b16 %v6934, %v6933
    %6999 = vmatprep.subr.bf16.mxu0 0
    %7000 = vmatpush1.bf16.msra.mxu0 %v6935
    %7001 = vmatprep.subr.bf16.mxu0 0
    %7002 = vmatpush1.bf16.msra.mxu0 %v6936
    %7003 = vmatprep.subr.bf16.mxu0 0
    %7004 = vmatpush1.bf16.msra.mxu0 %v6937
    %7005 = vmatprep.subr.bf16.mxu0 0
    %7006 = vmatpush1.bf16.msra.mxu0 %v6938
    %7007 = vmatprep.subr.bf16.mxu0 0
    %7008 = vmatpush1.bf16.msra.mxu0 %v6939
    %7009 = vmatprep.subr.bf16.mxu0 0
    %7010 = vmatpush1.bf16.msra.mxu0 %v6940
    %7011 = vmatprep.subr.bf16.mxu0 0
    %7012 = vmatpush1.bf16.msra.mxu0 %v6941
    %7013 = vmatprep.subr.bf16.mxu0 0
    %7014 = vmatpush1.bf16.msra.mxu0 %v6942
    %7015 = vmatprep.subr.bf16.mxu0 0
    %7016 = vmatpush1.bf16.msra.mxu0 %v6943
    %7017 = vmatprep.subr.bf16.mxu0 0
    %7018 = vmatpush1.bf16.msra.mxu0 %v6944
    %7019 = vmatprep.subr.bf16.mxu0 0
    %7020 = vmatpush1.bf16.msra.mxu0 %v6945
    %7021 = vmatprep.subr.bf16.mxu0 0
    %7022 = vmatpush1.bf16.msra.mxu0 %v6946
    %7023 = vmatprep.subr.bf16.mxu0 0
    %7024 = vmatpush1.bf16.msra.mxu0 %v6947
    %7025 = vmatprep.subr.bf16.mxu0 0
    %7026 = vmatpush1.bf16.msra.mxu0 %v6948
    %7027 = vmatprep.subr.bf16.mxu0 0
    %7028 = vmatpush1.bf16.msra.mxu0 %v6949
    %7029 = vmatprep.subr.bf16.mxu0 0
    %7030 = vmatpush1.bf16.msra.mxu0 %v6950
    %7031 = vmatprep.mubr.bf16.mxu0 %v6733
    %7032 = vmatmul.mubr.bf16.gmra.mrb[0].mxu0 %v6732
    %v7033 = vpop.f32.mrb[0].mxu0
    %v7034 = vadd.f32 %v6805, %v7033
    %v7035 = vpop.f32.mrb[0].mxu0
    %v7036 = vpop.f32.mrb[0].mxu0
    %v7037 = vpop.f32.mrb[0].mxu0
    %7038 = vdwg.mxu0
    %7039 = vmatprep.subr.bf16.mxu0 0
    %7040 = vmatpush1.bf16.msra.mxu0 %v6951
    %7041 = vmatprep.subr.bf16.mxu0 0
    %7042 = vmatpush1.bf16.msra.mxu0 %v6952
    %7043 = vmatprep.subr.bf16.mxu0 0
    %7044 = vmatpush1.bf16.msra.mxu0 %v6953
    %7045 = vmatprep.subr.bf16.mxu0 0
    %7046 = vmatpush1.bf16.msra.mxu0 %v6954
    %7047 = vmatprep.subr.bf16.mxu0 0
    %7048 = vmatpush1.bf16.msra.mxu0 %v6955
    %7049 = vmatprep.subr.bf16.mxu0 0
    %7050 = vmatpush1.bf16.msra.mxu0 %v6956
    %7051 = vmatprep.subr.bf16.mxu0 0
    %7052 = vmatpush1.bf16.msra.mxu0 %v6957
    %7053 = vmatprep.subr.bf16.mxu0 0
    %7054 = vmatpush1.bf16.msra.mxu0 %v6958
    %7055 = vmatprep.subr.bf16.mxu0 0
    %7056 = vmatpush1.bf16.msra.mxu0 %v6959
    %7057 = vmatprep.subr.bf16.mxu0 0
    %7058 = vmatpush1.bf16.msra.mxu0 %v6960
    %7059 = vmatprep.subr.bf16.mxu0 0
    %7060 = vmatpush1.bf16.msra.mxu0 %v6961
    %7061 = vmatprep.subr.bf16.mxu0 0
    %7062 = vmatpush1.bf16.msra.mxu0 %v6962
    %7063 = vmatprep.subr.bf16.mxu0 0
    %7064 = vmatpush1.bf16.msra.mxu0 %v6963
    %7065 = vmatprep.subr.bf16.mxu0 0
    %7066 = vmatpush1.bf16.msra.mxu0 %v6964
    %7067 = vmatprep.subr.bf16.mxu0 0
    %7068 = vmatpush1.bf16.msra.mxu0 %v6965
    %7069 = vmatprep.subr.bf16.mxu0 0
    %7070 = vmatpush1.bf16.msra.mxu0 %v6966
    %7071 = vmatprep.mubr.bf16.mxu0 %v6735
    %7072 = vmatmul.mubr.bf16.gmra.mrb[0].mxu0 %v6734
    %v7073 = vpop.f32.mrb[0].mxu0
    %v7074 = vadd.f32 %v7034, %v7073
    %v7075 = vpop.f32.mrb[0].mxu0
    %v7076 = vpop.f32.mrb[0].mxu0
    %v7077 = vpop.f32.mrb[0].mxu0
    %7078 = vdwg.mxu0
    %v7079 = vlaneseq
    %v7080 = vand.u32 %v7079, 127
    %vm7081 = vcmp.lt.s32.totalorder %v7080, 64
    %v7082 = vmul.f32 %v7074, %v7074
    %v7083 = vsel %vm7081, %v7082, 0.0
    %v7084 = vsel %vm1326, %v7083, 0.0
    %7085 = vadd.xlane.f32.xlu0 %v7084
    %v7086 = vpop.xlane.xlu0 %7085
    %v7087 = vrsqrt.pop %v7086
    %v7088 = vmul.f32 %v7086, %v7087
    %vm7089 = vcmp.eq.f32.partialorder %v7086, inf
    %v7090 = vsel %vm7089, %v7086, %v7088
    %vm7091 = vcmp.eq.f32.partialorder %v7086, 0.0
    %v7092 = vand.u32 %v7086, 2147483648
    %v7093 = vsel %vm7091, %v7092, %v7090
    %v7094 = vmax.f32 %v7093, 1e-12
    %v7095 = vrcp.pop %v7094
    %v7096 = vmul.f32 %v7074, %v7095
    %v7097 = vsel %vm7081, %v7096, %v7074
    %7098 = vst [vmem:[%s13] sm:$0x3] %v7097
    // Predicated region
    $region94: #{vgg_forward.1} parent=1 // pred_check
      _
    $region95: #{vgg_forward.1} parent=1 // pred_check_branch
      %7100 = sbr.rel (0) target = $region97
    $region96: #{vgg_forward.1} parent=1 // pred_region
      _
    $region97: #{vgg_forward.1} parent=1 // pred_fallthru
      _
    // Predicated region
    $region98: #{vgg_forward.1} parent=1 // pred_check
      _
    $region99: #{vgg_forward.1} parent=1 // pred_check_branch
      %7102 = sbr.rel (0) target = $region101
    $region100: #{vgg_forward.1} parent=1 // pred_region
      %s7104 = ssub.s32 128, 128
      %7105 = vsyncadd [#allocation6], %s7104
      %s7107 = sshll.u32 [#allocation21], 4
      %s7108 = int_to_ptr.vmem [resolvable:$true] %s7107
      %7110 = dma.vmem_to_hbm [thread:$0]  %s7108, 128, %s14, [#allocation6]
    $region101: #{vgg_forward.1} parent=1 // pred_fallthru
      _
    // Predicated region
    $region102: #{vgg_forward.1} parent=1 // pred_check
      _
    $region103: #{vgg_forward.1} parent=1 // pred_check_branch
      %7112 = sbr.rel (0) target = $region105
    $region104: #{vgg_forward.1} parent=1 // pred_region
      _
    $region105: #{vgg_forward.1} parent=1 // pred_fallthru
      _
    // Predicated region
    $region106: #{vgg_forward.1} parent=1 // pred_check
      _
    $region107: #{vgg_forward.1} parent=1 // pred_check_branch
      %7114 = sbr.rel (0) target = $region109
    $region108: #{vgg_forward.1} parent=1 // pred_region
      %7115 = dma.done [#allocation6], 128
    $region109: #{vgg_forward.1} parent=1 // pred_fallthru
      _
    %7116 = vsyncpa [#allocation5], 1
    %7117 = vsyncpa [#allocation8], 1
    %7118 = vsyncpa [#allocation11], 1
    %7119 = vsyncpa [#allocation14], 1
    %7120 = vsyncpa [#allocation17], 1
    %7121 = vsyncpa [#allocation20], 1
    %7122 = vsyncpa [#allocation6], 1

</llo_original>
